<compile_context>
chip_gen: v5e
topology: v5e:2x2
jax: 0.10.0
libtpu: 0.0.40
codegen_flags: <defaults>
</compile_context>

<pallas_src>
import numpy as np
import jax
import jax.numpy as jnp
from jax.experimental import pallas as pl
from jax.experimental.pallas import tpu as pltpu

# ----------------------------------------------------------------------------
# Graph schema (copied from the PyTorch module)
# ----------------------------------------------------------------------------
RELATIONS = [
    ('campaign', 'hosted_on', 'platform'),
    ('platform', 'rev_hosted_on', 'campaign'),
    ('campaign', 'uses', 'channel'),
    ('channel', 'rev_uses', 'campaign'),
    ('platform', 'supports', 'channel'),
    ('campaign', 'uses', 'creative'),
    ('creative', 'rev_uses', 'campaign'),
    ('creative', 'designed_with', 'template'),
    ('campaign', 'associated_with', 'keywords'),
    ('keywords', 'rev_associated_with', 'campaign'),
    ('campaign', 'managed_by', 'network'),
    ('platform', 'optimized_for', 'keywords'),
    ('campaign', 'belongs_to', 'advertiser'),
    ('campaign', 'targeted_with', 'search_tag'),
    ('search_tag', 'rev_targeted_with', 'campaign'),
    ('campaign', 'targeted_in', 'region'),
    ('campaign', 'uses', 'currency'),
]
# order used in torch.cat(..., dim=1); every node type is also a destination.
CONCAT_ORDER = ['campaign', 'platform', 'channel', 'creative', 'keywords',
                'search_tag', 'advertiser', 'network', 'template', 'region',
                'currency']

NUM_LAYERS = 3
N_NODES = 8        # nodes per node type (small synthetic graph)
IN_DIM = 16        # raw feature dim (SAGEConv((-1,-1), H) is lazy)
HIDDEN = 32        # hidden_dim
N_EDGES = 24       # edges per relation
NEG_SLOPE = 0.01
LN_EPS = 1e-5
LANE = 128         # lane-dense output width

T = len(CONCAT_ORDER)       # 11 node types
R = len(RELATIONS)          # 17 relations
RP = R + T                  # 28 = real relations + one "root" pseudo-relation/type
TIX = {t: i for i, t in enumerate(CONCAT_ORDER)}
DST_COUNT = [0] * T         # relations per destination type (HeteroConv mean)
for (_s, _r, _d) in RELATIONS:
    DST_COUNT[TIX[_d]] += 1

_VMEM = pl.BlockSpec(memory_space=pltpu.MemorySpace.VMEM)


# ----------------------------------------------------------------------------
# The single fused Pallas kernel (whole forward pass)
# ----------------------------------------------------------------------------
def _fused_forward_kernel(x0_ref, biga_ref, scat_ref, w_ref, b_ref,
                          lng_ref, lnb_ref, fcw_ref, sel_ref, fcb_ref, o_ref):
    """Whole HeteroGCN forward in one kernel.  Shapes (f32):

      x0   [T*N, H]       packed node features (IN_DIM zero-padded to H)
      biga [RP*N, T*N]    block row r (real): A_r / R_dst(r) at the src-type
                          column block; rows R..RP-1 (pseudo): I_N at dst block
      scat [T*N, RP*N]    block (t, r) = I_N where dst(r) == t (relation sum)
      w    [L, RP, H, H]  block r = W_l_r (real) or mean_r W_r_r (root pseudo)
      b    [L, T*N, H]    per-dst-type mean bias, broadcast over node rows
      lng/lnb [L, T*N, H] shared per-layer LayerNorm gamma/beta (pre-broadcast)
      fcw  [T*N, H]       row block t = fc weight slice fc_w[t*H:(t+1)*H]
      sel  [N, T*N]       sel[i, t*N+j] = (i == j); sums type blocks per node
      fcb  [1, 1]         fc bias
      o    [N, LANE]      sigmoid(fc(concat)) broadcast across lanes
    """
    f32 = jnp.float32
    x = x0_ref[...]                                                    # [T*N, H]
    for l in range(NUM_LAYERS):
        # 1) every relation's (mean-normalized) neighbour aggregation + the
        #    root-feature gather, in ONE GEMM:
        ag = jnp.dot(biga_ref[...], x, preferred_element_type=f32)     # [RP*N, H]
        # 2) every relation's linear layer as a batched block matmul
        #    (sublane split 224 -> 28x8 is tile-aligned; no dense RP*H
        #    intermediate, no mask / ti):
        ag3 = ag.reshape(RP, N_NODES, HIDDEN)                          # [RP, N, H]
        y3 = jnp.einsum('rnh,rhk->rnk', ag3, w_ref[l],
                        preferred_element_type=f32)                    # [RP, N, H]
        y = y3.reshape(RP * N_NODES, HIDDEN)                           # [RP*N, H]
        # 3) sum relations into their destination node type (+ mean'd bias):
        pre = jnp.dot(scat_ref[...], y, preferred_element_type=f32) + b_ref[l]
        # leaky_relu(0.01) + shared LayerNorm, all resident in VMEM/vregs:
        act = jnp.where(pre >= 0.0, pre, NEG_SLOPE * pre)
        mu = jnp.mean(act, axis=-1, keepdims=True)
        var = jnp.mean((act - mu) ** 2, axis=-1, keepdims=True)
        xn = (act - mu) * jax.lax.rsqrt(var + LN_EPS)
        x = xn * lng_ref[l] + lnb_ref[l]                               # [T*N, H]

    # final Linear(11*H -> 1) + sigmoid without materializing the concat:
    #   z[i] = sum_t sum_h x[t*N + i, h] * fc_w[t*H + h]
    rowsum = jnp.sum(x * fcw_ref[...], axis=-1, keepdims=True)         # [T*N, 1] (XLU)
    z = jnp.dot(sel_ref[...], rowsum, preferred_element_type=f32) + fcb_ref[...]
    o_ref[...] = jnp.broadcast_to(jax.nn.sigmoid(z), (N_NODES, LANE))  # lane-dense store


def hetero_gcn_forward_fused(ops):
    """One pallas_call for the whole 3-layer forward; returns [N_NODES]."""
    out = pl.pallas_call(
        _fused_forward_kernel,
        out_shape=jax.ShapeDtypeStruct((N_NODES, LANE), jnp.float32),
        in_specs=[_VMEM] * 10,
        out_specs=_VMEM,
    )(ops['x0'], ops['biga'], ops['scat'], ops['w'], ops['b'],
      ops['lng'], ops['lnb'], ops['fcw'], ops['sel'], ops['fcb'])
    return out[:, 0]


# ----------------------------------------------------------------------------
# Host-side glue: pack block-structured constant operands (done once)
# ----------------------------------------------------------------------------
def build_fused_operands(x_dict, adj_dict, params):
    N, H, L = N_NODES, HIDDEN, NUM_LAYERS

    # packed node features, zero-padded IN_DIM -> H so all layers see [T*N, H]
    x0 = np.zeros((T * N, H), np.float32)
    for t, name in enumerate(CONCAT_ORDER):
        x0[t * N:(t + 1) * N, :IN_DIM] = np.asarray(x_dict[name])

    biga = np.zeros((RP * N, T * N), np.float32)
    scat = np.zeros((T * N, RP * N), np.float32)
    eye_n = np.eye(N, dtype=np.float32)
    for r, (s, _rel, d) in enumerate(RELATIONS):
        si, di = TIX[s], TIX[d]
        adj = np.asarray(adj_dict[RELATIONS[r]], np.float32)           # [Nd, Ns]
        biga[r * N:(r + 1) * N, si * N:(si + 1) * N] = adj / DST_COUNT[di]
        scat[di * N:(di + 1) * N, r * N:(r + 1) * N] = eye_n
    for t in range(T):                                                 # root path
        rr = R + t
        biga[rr * N:(rr + 1) * N, t * N:(t + 1) * N] = eye_n
        scat[t * N:(t + 1) * N, rr * N:(rr + 1) * N] = eye_n

    # per-relation weight blocks [L, RP, H, H] (layer-0 rows beyond IN_DIM = 0)
    # TODO(synk): cast the MXU-only constants (biga/scat/w/x0) to bf16 on
    # v6e/v7x for half the DMA bytes; needs the 1e-4 parity check loosened.
    w = np.zeros((L, RP, H, H), np.float32)
    b = np.zeros((L, T * N, H), np.float32)
    lng = np.zeros((L, T * N, H), np.float32)
    lnb = np.zeros((L, T * N, H), np.float32)
    for l in range(L):
        fin = IN_DIM if l == 0 else HIDDEN
        lp = params['layers'][l]
        for r in range(R):
            w[l, r, :fin, :] = np.asarray(lp['rel'][r]['w_l'])
        for t in range(T):
            wr_sum = np.zeros((fin, H), np.float32)
            b_sum = np.zeros((H,), np.float32)
            for r, (_s, _rel, d) in enumerate(RELATIONS):
                if TIX[d] == t:
                    wr_sum += np.asarray(lp['rel'][r]['w_r'])
                    b_sum += np.asarray(lp['rel'][r]['b_l'])[0]
            w[l, R + t, :fin, :] = wr_sum / DST_COUNT[t]
            b[l, t * N:(t + 1) * N, :] = b_sum / DST_COUNT[t]
        lng[l, :, :] = np.asarray(lp['ln_w'])[0]
        lnb[l, :, :] = np.asarray(lp['ln_b'])[0]

    fc_w = np.asarray(params['fc_w'])[:, 0]                            # [T*H]
    fcw = np.zeros((T * N, H), np.float32)
    for t in range(T):
        fcw[t * N:(t + 1) * N, :] = fc_w[t * H:(t + 1) * H]
    sel = np.tile(np.eye(N, dtype=np.float32), (1, T))                 # [N, T*N]
    fcb = np.full((1, 1), np.asarray(params['fc_b'])[0, 0], np.float32)

    arrays = dict(x0=x0, biga=biga, scat=scat, w=w, b=b,
                  lng=lng, lnb=lnb, fcw=fcw, sel=sel, fcb=fcb)
    return {k: jnp.asarray(v, jnp.float32) for k, v in arrays.items()}


# ----------------------------------------------------------------------------
# Parameter init (deterministic, synthetic)
# ----------------------------------------------------------------------------
def init_params(key):
    params = {'layers': []}
    for layer in range(NUM_LAYERS):
        fin = IN_DIM if layer == 0 else HIDDEN
        scale = 1.0 / jnp.sqrt(jnp.float32(fin))
        rel_params = []
        for r_i in range(R):
            k = jax.random.fold_in(jax.random.fold_in(key, layer), r_i)
            k1, k2, k3 = jax.random.split(k, 3)
            rel_params.append({
                'w_l': jax.random.normal(k1, (fin, HIDDEN), jnp.float32) * scale,
                'b_l': jax.random.normal(k2, (1, HIDDEN), jnp.float32) * 0.01,
                'w_r': jax.random.normal(k3, (fin, HIDDEN), jnp.float32) * scale,
            })
        params['layers'].append({
            'rel': rel_params,
            'ln_w': jnp.ones((1, HIDDEN), jnp.float32),   # LayerNorm default init
            'ln_b': jnp.zeros((1, HIDDEN), jnp.float32),
        })
    kf = jax.random.fold_in(key, 999)
    kf1, kf2 = jax.random.split(kf)
    params['fc_w'] = jax.random.normal(kf1, (HIDDEN * T, 1), jnp.float32) * (
        1.0 / jnp.sqrt(jnp.float32(HIDDEN * T)))
    params['fc_b'] = jax.random.normal(kf2, (1, 1), jnp.float32) * 0.01
    return params


# ----------------------------------------------------------------------------
# Glue: dense row-normalized (mean) adjacency from edge_index [2, E]
# (matches PyG scatter-mean over incoming edges; isolated dst rows -> 0)
# ----------------------------------------------------------------------------
def mean_adjacency(edge_index, num_src, num_dst):
    src, dst = edge_index[0], edge_index[1]
    a = jnp.zeros((num_dst, num_src), jnp.float32).at[dst, src].add(1.0)
    deg = jnp.sum(a, axis=1, keepdims=True)
    return a / jnp.maximum(deg, 1.0)


# ----------------------------------------------------------------------------
# Pure-JAX reference (mirrors the PyTorch forward, per relation) for checking
# ----------------------------------------------------------------------------
def hetero_gcn_forward_ref(x_dict, adj_dict, params):
    for layer in range(NUM_LAYERS):
        lp = params['layers'][layer]
        per_dst = {t: [] for t in CONCAT_ORDER}
        for r_i, (src, _rel, dst) in enumerate(RELATIONS):
            p = lp['rel'][r_i]
            agg = adj_dict[RELATIONS[r_i]] @ x_dict[src]
            per_dst[dst].append(agg @ p['w_l'] + p['b_l'] + x_dict[dst] @ p['w_r'])
        new_x = {}
        for t in CONCAT_ORDER:
            xm = sum(per_dst[t]) / len(per_dst[t])           # HeteroConv 'mean'
            xm = jnp.where(xm >= 0.0, xm, NEG_SLOPE * xm)    # leaky_relu(0.01)
            mu = jnp.mean(xm, axis=-1, keepdims=True)
            var = jnp.mean((xm - mu) ** 2, axis=-1, keepdims=True)
            new_x[t] = (xm - mu) * jax.lax.rsqrt(var + LN_EPS) * lp['ln_w'] + lp['ln_b']
        x_dict = new_x
    x_comb = jnp.concatenate([x_dict[t] for t in CONCAT_ORDER], axis=1)
    z = x_comb @ params['fc_w'] + params['fc_b']
    return jax.nn.sigmoid(z)[:, 0]


# ----------------------------------------------------------------------------
# Main
# ----------------------------------------------------------------------------
if __name__ == "__main__":
    key = jax.random.PRNGKey(0)
    k_param, k_feat, k_edge = jax.random.split(key, 3)

    params = init_params(k_param)

    # node features: every node type has [N_NODES, IN_DIM] float32 features
    x_dict = {}
    for i, t in enumerate(CONCAT_ORDER):
        x_dict[t] = jax.random.normal(
            jax.random.fold_in(k_feat, i), (N_NODES, IN_DIM), jnp.float32)

    # random edge_index per relation, then dense mean adjacency (glue)
    adj_dict = {}
    for r_i, rel in enumerate(RELATIONS):
        kk = jax.random.fold_in(k_edge, r_i)
        ks, kd = jax.random.split(kk)
        src_idx = jax.random.randint(ks, (N_EDGES,), 0, N_NODES)
        dst_idx = jax.random.randint(kd, (N_EDGES,), 0, N_NODES)
        edge_index = jnp.stack([src_idx, dst_idx], axis=0)   # [2, E]
        adj_dict[rel] = mean_adjacency(edge_index, N_NODES, N_NODES)

    ops = build_fused_operands(x_dict, adj_dict, params)
    out = jax.block_until_ready(hetero_gcn_forward_fused(ops))      # [N_NODES]

    ref = jax.block_until_ready(hetero_gcn_forward_ref(x_dict, adj_dict, params))

    assert out.shape == (N_NODES,)
    assert bool(jnp.all(jnp.isfinite(out)))
    assert bool(jnp.all((out >= 0.0) & (out <= 1.0)))
    assert bool(jnp.allclose(out, ref, rtol=1e-4, atol=1e-4))
    print("KERNEL_OK")
</pallas_src>

<mosaic_0001>
module attributes {stable_mosaic.version = 11 : i64} {
  func.func @_fused_forward_kernel(%arg0: memref<88x32xf32, #tpu.memory_space<vmem>>, %arg1: memref<224x88xf32, #tpu.memory_space<vmem>>, %arg2: memref<88x224xf32, #tpu.memory_space<vmem>>, %arg3: memref<3x28x32x32xf32, #tpu.memory_space<vmem>>, %arg4: memref<3x88x32xf32, #tpu.memory_space<vmem>>, %arg5: memref<3x88x32xf32, #tpu.memory_space<vmem>>, %arg6: memref<3x88x32xf32, #tpu.memory_space<vmem>>, %arg7: memref<88x32xf32, #tpu.memory_space<vmem>>, %arg8: memref<8x88xf32, #tpu.memory_space<vmem>>, %arg9: memref<1x1xf32, #tpu.memory_space<vmem>>, %arg10: memref<8x128xf32, #tpu.memory_space<vmem>>) attributes {dimension_semantics = [], scalar_prefetch = 0 : i64, scratch_operands = 0 : i64, tpu.core_type = #tpu.core_type<tc>} {
    %c0 = arith.constant 0 : index
    %c0_0 = arith.constant 0 : index
    %0 = vector.load %arg0[%c0, %c0_0] : memref<88x32xf32, #tpu.memory_space<vmem>>, vector<88x32xf32>
    %c0_1 = arith.constant 0 : index
    %c0_2 = arith.constant 0 : index
    %1 = vector.load %arg1[%c0_1, %c0_2] : memref<224x88xf32, #tpu.memory_space<vmem>>, vector<224x88xf32>
    %cst = arith.constant dense<0.000000e+00> : vector<224x32xf32>
    %2 = tpu.matmul %1, %0, %cst {dimension_numbers = #tpu.dot_dimension_numbers<[1], [0], [0], [1], [0, 0, 1, 1], [], []>} : vector<224x88xf32>, vector<88x32xf32>, vector<224x32xf32> -> vector<224x32xf32>
    %3 = vector.shape_cast %2 : vector<224x32xf32> to vector<28x8x32xf32>
    %c0_3 = arith.constant 0 : index
    %c0_4 = arith.constant 0 : index
    %c0_5 = arith.constant 0 : index
    %c0_6 = arith.constant 0 : index
    %4 = vector.load %arg3[%c0_3, %c0_4, %c0_5, %c0_6] : memref<3x28x32x32xf32, #tpu.memory_space<vmem>>, vector<1x28x32x32xf32>
    %5 = vector.shape_cast %4 : vector<1x28x32x32xf32> to vector<28x32x32xf32>
    "tpu.trace_start"() <{level = 10 : i32, message = "rnh,rhk->rnk"}> : () -> ()
    %cst_7 = arith.constant dense<0.000000e+00> : vector<28x8x32xf32>
    %6 = tpu.matmul %3, %5, %cst_7 {dimension_numbers = #tpu.dot_dimension_numbers<[2], [1], [1], [2], [0, 0, 0, 1, 1, 2], [0], [0]>} : vector<28x8x32xf32>, vector<28x32x32xf32>, vector<28x8x32xf32> -> vector<28x8x32xf32>
    "tpu.trace_stop"() : () -> ()
    %7 = vector.shape_cast %6 : vector<28x8x32xf32> to vector<224x32xf32>
    %c0_8 = arith.constant 0 : index
    %c0_9 = arith.constant 0 : index
    %8 = vector.load %arg2[%c0_8, %c0_9] : memref<88x224xf32, #tpu.memory_space<vmem>>, vector<88x224xf32>
    %cst_10 = arith.constant dense<0.000000e+00> : vector<88x32xf32>
    %9 = tpu.matmul %8, %7, %cst_10 {dimension_numbers = #tpu.dot_dimension_numbers<[1], [0], [0], [1], [0, 0, 1, 1], [], []>} : vector<88x224xf32>, vector<224x32xf32>, vector<88x32xf32> -> vector<88x32xf32>
    %c0_11 = arith.constant 0 : index
    %c0_12 = arith.constant 0 : index
    %c0_13 = arith.constant 0 : index
    %10 = vector.load %arg4[%c0_11, %c0_12, %c0_13] : memref<3x88x32xf32, #tpu.memory_space<vmem>>, vector<1x88x32xf32>
    %11 = vector.shape_cast %10 : vector<1x88x32xf32> to vector<88x32xf32>
    %12 = arith.addf %9, %11 : vector<88x32xf32>
    %cst_14 = arith.constant 0.000000e+00 : f32
    %13 = vector.broadcast %cst_14 : f32 to vector<88x32xf32>
    %14 = arith.cmpf oge, %12, %13 : vector<88x32xf32>
    %cst_15 = arith.constant 0.00999999977 : f32
    %15 = vector.broadcast %cst_15 : f32 to vector<88x32xf32>
    %16 = arith.mulf %15, %12 : vector<88x32xf32>
    %17 = arith.select %14, %12, %16 : vector<88x32xi1>, vector<88x32xf32>
    %cst_16 = arith.constant dense<0.000000e+00> : vector<88xf32>
    %18 = vector.multi_reduction <add>, %17, %cst_16 [1] : vector<88x32xf32> to vector<88xf32>
    %19 = vector.shape_cast %18 : vector<88xf32> to vector<88x1xf32>
    %cst_17 = arith.constant 3.200000e+01 : f32
    %20 = vector.broadcast %cst_17 : f32 to vector<88x1xf32>
    %21 = arith.divf %19, %20 : vector<88x1xf32>
    %22 = vector.broadcast %21 : vector<88x1xf32> to vector<88x32xf32>
    %23 = arith.subf %17, %22 : vector<88x32xf32>
    %24 = arith.mulf %23, %23 : vector<88x32xf32>
    %cst_18 = arith.constant dense<0.000000e+00> : vector<88xf32>
    %25 = vector.multi_reduction <add>, %24, %cst_18 [1] : vector<88x32xf32> to vector<88xf32>
    %26 = vector.shape_cast %25 : vector<88xf32> to vector<88x1xf32>
    %cst_19 = arith.constant 3.200000e+01 : f32
    %27 = vector.broadcast %cst_19 : f32 to vector<88x1xf32>
    %28 = arith.divf %26, %27 : vector<88x1xf32>
    %29 = vector.broadcast %21 : vector<88x1xf32> to vector<88x32xf32>
    %30 = arith.subf %17, %29 : vector<88x32xf32>
    %cst_20 = arith.constant 9.99999974E-6 : f32
    %31 = vector.broadcast %cst_20 : f32 to vector<88x1xf32>
    %32 = arith.addf %28, %31 : vector<88x1xf32>
    %33 = math.rsqrt %32 : vector<88x1xf32>
    %34 = vector.broadcast %33 : vector<88x1xf32> to vector<88x32xf32>
    %35 = arith.mulf %30, %34 : vector<88x32xf32>
    %c0_21 = arith.constant 0 : index
    %c0_22 = arith.constant 0 : index
    %c0_23 = arith.constant 0 : index
    %36 = vector.load %arg5[%c0_21, %c0_22, %c0_23] : memref<3x88x32xf32, #tpu.memory_space<vmem>>, vector<1x88x32xf32>
    %37 = vector.shape_cast %36 : vector<1x88x32xf32> to vector<88x32xf32>
    %38 = arith.mulf %35, %37 : vector<88x32xf32>
    %c0_24 = arith.constant 0 : index
    %c0_25 = arith.constant 0 : index
    %c0_26 = arith.constant 0 : index
    %39 = vector.load %arg6[%c0_24, %c0_25, %c0_26] : memref<3x88x32xf32, #tpu.memory_space<vmem>>, vector<1x88x32xf32>
    %40 = vector.shape_cast %39 : vector<1x88x32xf32> to vector<88x32xf32>
    %41 = arith.addf %38, %40 : vector<88x32xf32>
    %c0_27 = arith.constant 0 : index
    %c0_28 = arith.constant 0 : index
    %42 = vector.load %arg1[%c0_27, %c0_28] : memref<224x88xf32, #tpu.memory_space<vmem>>, vector<224x88xf32>
    %cst_29 = arith.constant dense<0.000000e+00> : vector<224x32xf32>
    %43 = tpu.matmul %42, %41, %cst_29 {dimension_numbers = #tpu.dot_dimension_numbers<[1], [0], [0], [1], [0, 0, 1, 1], [], []>} : vector<224x88xf32>, vector<88x32xf32>, vector<224x32xf32> -> vector<224x32xf32>
    %44 = vector.shape_cast %43 : vector<224x32xf32> to vector<28x8x32xf32>
    %c1 = arith.constant 1 : index
    %c0_30 = arith.constant 0 : index
    %c0_31 = arith.constant 0 : index
    %c0_32 = arith.constant 0 : index
    %45 = vector.load %arg3[%c1, %c0_30, %c0_31, %c0_32] : memref<3x28x32x32xf32, #tpu.memory_space<vmem>>, vector<1x28x32x32xf32>
    %46 = vector.shape_cast %45 : vector<1x28x32x32xf32> to vector<28x32x32xf32>
    "tpu.trace_start"() <{level = 10 : i32, message = "rnh,rhk->rnk"}> : () -> ()
    %cst_33 = arith.constant dense<0.000000e+00> : vector<28x8x32xf32>
    %47 = tpu.matmul %44, %46, %cst_33 {dimension_numbers = #tpu.dot_dimension_numbers<[2], [1], [1], [2], [0, 0, 0, 1, 1, 2], [0], [0]>} : vector<28x8x32xf32>, vector<28x32x32xf32>, vector<28x8x32xf32> -> vector<28x8x32xf32>
    "tpu.trace_stop"() : () -> ()
    %48 = vector.shape_cast %47 : vector<28x8x32xf32> to vector<224x32xf32>
    %c0_34 = arith.constant 0 : index
    %c0_35 = arith.constant 0 : index
    %49 = vector.load %arg2[%c0_34, %c0_35] : memref<88x224xf32, #tpu.memory_space<vmem>>, vector<88x224xf32>
    %cst_36 = arith.constant dense<0.000000e+00> : vector<88x32xf32>
    %50 = tpu.matmul %49, %48, %cst_36 {dimension_numbers = #tpu.dot_dimension_numbers<[1], [0], [0], [1], [0, 0, 1, 1], [], []>} : vector<88x224xf32>, vector<224x32xf32>, vector<88x32xf32> -> vector<88x32xf32>
    %c1_37 = arith.constant 1 : index
    %c0_38 = arith.constant 0 : index
    %c0_39 = arith.constant 0 : index
    %51 = vector.load %arg4[%c1_37, %c0_38, %c0_39] : memref<3x88x32xf32, #tpu.memory_space<vmem>>, vector<1x88x32xf32>
    %52 = vector.shape_cast %51 : vector<1x88x32xf32> to vector<88x32xf32>
    %53 = arith.addf %50, %52 : vector<88x32xf32>
    %cst_40 = arith.constant 0.000000e+00 : f32
    %54 = vector.broadcast %cst_40 : f32 to vector<88x32xf32>
    %55 = arith.cmpf oge, %53, %54 : vector<88x32xf32>
    %cst_41 = arith.constant 0.00999999977 : f32
    %56 = vector.broadcast %cst_41 : f32 to vector<88x32xf32>
    %57 = arith.mulf %56, %53 : vector<88x32xf32>
    %58 = arith.select %55, %53, %57 : vector<88x32xi1>, vector<88x32xf32>
    %cst_42 = arith.constant dense<0.000000e+00> : vector<88xf32>
    %59 = vector.multi_reduction <add>, %58, %cst_42 [1] : vector<88x32xf32> to vector<88xf32>
    %60 = vector.shape_cast %59 : vector<88xf32> to vector<88x1xf32>
    %cst_43 = arith.constant 3.200000e+01 : f32
    %61 = vector.broadcast %cst_43 : f32 to vector<88x1xf32>
    %62 = arith.divf %60, %61 : vector<88x1xf32>
    %63 = vector.broadcast %62 : vector<88x1xf32> to vector<88x32xf32>
    %64 = arith.subf %58, %63 : vector<88x32xf32>
    %65 = arith.mulf %64, %64 : vector<88x32xf32>
    %cst_44 = arith.constant dense<0.000000e+00> : vector<88xf32>
    %66 = vector.multi_reduction <add>, %65, %cst_44 [1] : vector<88x32xf32> to vector<88xf32>
    %67 = vector.shape_cast %66 : vector<88xf32> to vector<88x1xf32>
    %cst_45 = arith.constant 3.200000e+01 : f32
    %68 = vector.broadcast %cst_45 : f32 to vector<88x1xf32>
    %69 = arith.divf %67, %68 : vector<88x1xf32>
    %70 = vector.broadcast %62 : vector<88x1xf32> to vector<88x32xf32>
    %71 = arith.subf %58, %70 : vector<88x32xf32>
    %cst_46 = arith.constant 9.99999974E-6 : f32
    %72 = vector.broadcast %cst_46 : f32 to vector<88x1xf32>
    %73 = arith.addf %69, %72 : vector<88x1xf32>
    %74 = math.rsqrt %73 : vector<88x1xf32>
    %75 = vector.broadcast %74 : vector<88x1xf32> to vector<88x32xf32>
    %76 = arith.mulf %71, %75 : vector<88x32xf32>
    %c1_47 = arith.constant 1 : index
    %c0_48 = arith.constant 0 : index
    %c0_49 = arith.constant 0 : index
    %77 = vector.load %arg5[%c1_47, %c0_48, %c0_49] : memref<3x88x32xf32, #tpu.memory_space<vmem>>, vector<1x88x32xf32>
    %78 = vector.shape_cast %77 : vector<1x88x32xf32> to vector<88x32xf32>
    %79 = arith.mulf %76, %78 : vector<88x32xf32>
    %c1_50 = arith.constant 1 : index
    %c0_51 = arith.constant 0 : index
    %c0_52 = arith.constant 0 : index
    %80 = vector.load %arg6[%c1_50, %c0_51, %c0_52] : memref<3x88x32xf32, #tpu.memory_space<vmem>>, vector<1x88x32xf32>
    %81 = vector.shape_cast %80 : vector<1x88x32xf32> to vector<88x32xf32>
    %82 = arith.addf %79, %81 : vector<88x32xf32>
    %c0_53 = arith.constant 0 : index
    %c0_54 = arith.constant 0 : index
    %83 = vector.load %arg1[%c0_53, %c0_54] : memref<224x88xf32, #tpu.memory_space<vmem>>, vector<224x88xf32>
    %cst_55 = arith.constant dense<0.000000e+00> : vector<224x32xf32>
    %84 = tpu.matmul %83, %82, %cst_55 {dimension_numbers = #tpu.dot_dimension_numbers<[1], [0], [0], [1], [0, 0, 1, 1], [], []>} : vector<224x88xf32>, vector<88x32xf32>, vector<224x32xf32> -> vector<224x32xf32>
    %85 = vector.shape_cast %84 : vector<224x32xf32> to vector<28x8x32xf32>
    %c2 = arith.constant 2 : index
    %c0_56 = arith.constant 0 : index
    %c0_57 = arith.constant 0 : index
    %c0_58 = arith.constant 0 : index
    %86 = vector.load %arg3[%c2, %c0_56, %c0_57, %c0_58] : memref<3x28x32x32xf32, #tpu.memory_space<vmem>>, vector<1x28x32x32xf32>
    %87 = vector.shape_cast %86 : vector<1x28x32x32xf32> to vector<28x32x32xf32>
    "tpu.trace_start"() <{level = 10 : i32, message = "rnh,rhk->rnk"}> : () -> ()
    %cst_59 = arith.constant dense<0.000000e+00> : vector<28x8x32xf32>
    %88 = tpu.matmul %85, %87, %cst_59 {dimension_numbers = #tpu.dot_dimension_numbers<[2], [1], [1], [2], [0, 0, 0, 1, 1, 2], [0], [0]>} : vector<28x8x32xf32>, vector<28x32x32xf32>, vector<28x8x32xf32> -> vector<28x8x32xf32>
    "tpu.trace_stop"() : () -> ()
    %89 = vector.shape_cast %88 : vector<28x8x32xf32> to vector<224x32xf32>
    %c0_60 = arith.constant 0 : index
    %c0_61 = arith.constant 0 : index
    %90 = vector.load %arg2[%c0_60, %c0_61] : memref<88x224xf32, #tpu.memory_space<vmem>>, vector<88x224xf32>
    %cst_62 = arith.constant dense<0.000000e+00> : vector<88x32xf32>
    %91 = tpu.matmul %90, %89, %cst_62 {dimension_numbers = #tpu.dot_dimension_numbers<[1], [0], [0], [1], [0, 0, 1, 1], [], []>} : vector<88x224xf32>, vector<224x32xf32>, vector<88x32xf32> -> vector<88x32xf32>
    %c2_63 = arith.constant 2 : index
    %c0_64 = arith.constant 0 : index
    %c0_65 = arith.constant 0 : index
    %92 = vector.load %arg4[%c2_63, %c0_64, %c0_65] : memref<3x88x32xf32, #tpu.memory_space<vmem>>, vector<1x88x32xf32>
    %93 = vector.shape_cast %92 : vector<1x88x32xf32> to vector<88x32xf32>
    %94 = arith.addf %91, %93 : vector<88x32xf32>
    %cst_66 = arith.constant 0.000000e+00 : f32
    %95 = vector.broadcast %cst_66 : f32 to vector<88x32xf32>
    %96 = arith.cmpf oge, %94, %95 : vector<88x32xf32>
    %cst_67 = arith.constant 0.00999999977 : f32
    %97 = vector.broadcast %cst_67 : f32 to vector<88x32xf32>
    %98 = arith.mulf %97, %94 : vector<88x32xf32>
    %99 = arith.select %96, %94, %98 : vector<88x32xi1>, vector<88x32xf32>
    %cst_68 = arith.constant dense<0.000000e+00> : vector<88xf32>
    %100 = vector.multi_reduction <add>, %99, %cst_68 [1] : vector<88x32xf32> to vector<88xf32>
    %101 = vector.shape_cast %100 : vector<88xf32> to vector<88x1xf32>
    %cst_69 = arith.constant 3.200000e+01 : f32
    %102 = vector.broadcast %cst_69 : f32 to vector<88x1xf32>
    %103 = arith.divf %101, %102 : vector<88x1xf32>
    %104 = vector.broadcast %103 : vector<88x1xf32> to vector<88x32xf32>
    %105 = arith.subf %99, %104 : vector<88x32xf32>
    %106 = arith.mulf %105, %105 : vector<88x32xf32>
    %cst_70 = arith.constant dense<0.000000e+00> : vector<88xf32>
    %107 = vector.multi_reduction <add>, %106, %cst_70 [1] : vector<88x32xf32> to vector<88xf32>
    %108 = vector.shape_cast %107 : vector<88xf32> to vector<88x1xf32>
    %cst_71 = arith.constant 3.200000e+01 : f32
    %109 = vector.broadcast %cst_71 : f32 to vector<88x1xf32>
    %110 = arith.divf %108, %109 : vector<88x1xf32>
    %111 = vector.broadcast %103 : vector<88x1xf32> to vector<88x32xf32>
    %112 = arith.subf %99, %111 : vector<88x32xf32>
    %cst_72 = arith.constant 9.99999974E-6 : f32
    %113 = vector.broadcast %cst_72 : f32 to vector<88x1xf32>
    %114 = arith.addf %110, %113 : vector<88x1xf32>
    %115 = math.rsqrt %114 : vector<88x1xf32>
    %116 = vector.broadcast %115 : vector<88x1xf32> to vector<88x32xf32>
    %117 = arith.mulf %112, %116 : vector<88x32xf32>
    %c2_73 = arith.constant 2 : index
    %c0_74 = arith.constant 0 : index
    %c0_75 = arith.constant 0 : index
    %118 = vector.load %arg5[%c2_73, %c0_74, %c0_75] : memref<3x88x32xf32, #tpu.memory_space<vmem>>, vector<1x88x32xf32>
    %119 = vector.shape_cast %118 : vector<1x88x32xf32> to vector<88x32xf32>
    %120 = arith.mulf %117, %119 : vector<88x32xf32>
    %c2_76 = arith.constant 2 : index
    %c0_77 = arith.constant 0 : index
    %c0_78 = arith.constant 0 : index
    %121 = vector.load %arg6[%c2_76, %c0_77, %c0_78] : memref<3x88x32xf32, #tpu.memory_space<vmem>>, vector<1x88x32xf32>
    %122 = vector.shape_cast %121 : vector<1x88x32xf32> to vector<88x32xf32>
    %123 = arith.addf %120, %122 : vector<88x32xf32>
    %c0_79 = arith.constant 0 : index
    %c0_80 = arith.constant 0 : index
    %124 = vector.load %arg7[%c0_79, %c0_80] : memref<88x32xf32, #tpu.memory_space<vmem>>, vector<88x32xf32>
    %125 = arith.mulf %123, %124 : vector<88x32xf32>
    %cst_81 = arith.constant dense<0.000000e+00> : vector<88xf32>
    %126 = vector.multi_reduction <add>, %125, %cst_81 [1] : vector<88x32xf32> to vector<88xf32>
    %127 = vector.shape_cast %126 : vector<88xf32> to vector<88x1xf32>
    %c0_82 = arith.constant 0 : index
    %c0_83 = arith.constant 0 : index
    %128 = vector.load %arg8[%c0_82, %c0_83] : memref<8x88xf32, #tpu.memory_space<vmem>>, vector<8x88xf32>
    %cst_84 = arith.constant dense<0.000000e+00> : vector<8x1xf32>
    %129 = tpu.matmul %128, %127, %cst_84 {dimension_numbers = #tpu.dot_dimension_numbers<[1], [0], [0], [1], [0, 0, 1, 1], [], []>} : vector<8x88xf32>, vector<88x1xf32>, vector<8x1xf32> -> vector<8x1xf32>
    %c0_85 = arith.constant 0 : index
    %c0_86 = arith.constant 0 : index
    %130 = vector.load %arg9[%c0_85, %c0_86] : memref<1x1xf32, #tpu.memory_space<vmem>>, vector<1x1xf32>
    %131 = vector.broadcast %130 : vector<1x1xf32> to vector<8x1xf32>
    %132 = arith.addf %129, %131 : vector<8x1xf32>
    %133 = arith.negf %132 : vector<8x1xf32>
    %134 = math.exp %133 : vector<8x1xf32>
    %cst_87 = arith.constant 1.000000e+00 : f32
    %135 = vector.broadcast %cst_87 : f32 to vector<8x1xf32>
    %136 = arith.addf %135, %134 : vector<8x1xf32>
    %137 = arith.divf %135, %136 : vector<8x1xf32>
    %138 = vector.shape_cast %137 : vector<8x1xf32> to vector<8x1xf32>
    %139 = vector.broadcast %138 : vector<8x1xf32> to vector<8x128xf32>
    %c0_88 = arith.constant 0 : index
    %c0_89 = arith.constant 0 : index
    %140 = vector.load %arg10[%c0_88, %c0_89] : memref<8x128xf32, #tpu.memory_space<vmem>>, vector<8x128xf32>
    tpu.vector_store %arg10[%c0_88, %c0_89], %139 {strides = array<i32>} : memref<8x128xf32, #tpu.memory_space<vmem>>, vector<8x128xf32>,
    return
  }
}

</mosaic_0001>

<llo_original>
// kernel: tpu_custom_call.1
$region0: #{tpu_custom_call.1}
  #allocation0 [shape = 'u32[]', space=smem, size = 0x4, offset = 0x4, fixed_abs, tag = 'smem constant byte address 0x4 - core index']
  #allocation1 [shape = 'u32[72,128]{1,0:T(1,128)}', space=vmem, size = 0x9000, scoped, tag = 'internal scratch']
  #allocation2 [shape = 'f32[1,1]{1,0:T(1,128)S(1)}', space=vmem, size = 0x200, scoped, tag = 'scoped memory for tpu_custom_call.1']
  %s0 = inlined_call_operand.vmem [shape: f32[88,32], index: 0, kind: input, shape index: {}]
  %s1 = inlined_call_operand.vmem [shape: f32[224,88], index: 1, kind: input, shape index: {}]
  %s2 = inlined_call_operand.hbm [shape: f32[88,224], index: 2, kind: input, shape index: {}]
  %s3 = inlined_call_operand.hbm [shape: f32[3,28,32,32], index: 3, kind: input, shape index: {}]
  %s4 = inlined_call_operand.vmem [shape: f32[3,88,32], index: 4, kind: input, shape index: {}]
  %s5 = inlined_call_operand.vmem [shape: f32[3,88,32], index: 5, kind: input, shape index: {}]
  %s6 = inlined_call_operand.vmem [shape: f32[3,88,32], index: 6, kind: input, shape index: {}]
  %s7 = inlined_call_operand.vmem [shape: f32[88,32], index: 7, kind: input, shape index: {}]
  %s8 = inlined_call_operand.hbm [shape: f32[8,88], index: 8, kind: input, shape index: {}]
  %s9 = inlined_call_operand.<no memory space> [shape: f32[1,1], index: 9, kind: input, shape index: {}]
  %s10 = inlined_call_operand.hbm [shape: f32[8,128], index: 10, kind: output, shape index: {}]
  %s11 = sld [smem:[#allocation0]]
  $region62: #{tpu_custom_call.1} parent=0
    _
  %s13 = ssub.s32 1, %s11
  %s14 = scalar_select 0, %s13, %s11
  %v15 = vstv %s9
  %16 = vst [vmem:[#allocation2] sm:$0x1] %v15
  $region1: #{tpu_custom_call.1} parent=0
    #allocation3 [shape = 'u8[90112]{0}', space=vmem, size = 0x16000, scoped, tag = 'input window, operand 2, single buffered']
    #allocation4 [shape = 's32[1]{0}', space=sflag, size = 0x4, scoped, tag = 'scoped memory for tpu_custom_call.1']
    #allocation5 [shape = 's32[1]{0}', space=sflag, size = 0x4, scoped, tag = 'scoped memory for tpu_custom_call.1']
    #allocation6 [shape = 'u8[1376256]{0}', space=vmem, size = 0x150000, scoped, tag = 'input window, operand 3, single buffered']
    #allocation7 [shape = 's32[1]{0}', space=sflag, size = 0x4, scoped, tag = 'scoped memory for tpu_custom_call.1']
    #allocation8 [shape = 'u8[4096]{0}', space=vmem, size = 0x1000, scoped, tag = 'input window, operand 8, single buffered']
    #allocation9 [shape = 'u8[4096]{0}', space=vmem, size = 0x1000, scoped, tag = 'output window, operand 0, single buffered']
    %17 = vsyncpa [#allocation4], 0
    %18 = vsyncpa [#allocation7], 0
    %19 = vsyncpa [#allocation5], 0
    // Predicated region
    $region2: #{tpu_custom_call.1} parent=1 // pred_check
      _
    $region3: #{tpu_custom_call.1} parent=1 // pred_check_branch
      %21 = sbr.rel (0) target = $region5
    $region4: #{tpu_custom_call.1} parent=1 // pred_region
      _
    $region5: #{tpu_custom_call.1} parent=1 // pred_fallthru
      _
    // Predicated region
    $region6: #{tpu_custom_call.1} parent=1 // pred_check
      _
    $region7: #{tpu_custom_call.1} parent=1 // pred_check_branch
      %23 = sbr.rel (0) target = $region9
    $region8: #{tpu_custom_call.1} parent=1 // pred_region
      _
    $region9: #{tpu_custom_call.1} parent=1 // pred_fallthru
      _
    // Predicated region
    $region10: #{tpu_custom_call.1} parent=1 // pred_check
      _
    $region11: #{tpu_custom_call.1} parent=1 // pred_check_branch
      %25 = sbr.rel (0) target = $region13
    $region12: #{tpu_custom_call.1} parent=1 // pred_region
      %27 = vsyncadd [#allocation4], 0
      %s28 = sshll.u32 %s2, 4
      %s29 = int_to_ptr.hbm [resolvable:$true] %s28
      %s30 = sshll.u32 [#allocation3], 4
      %s31 = int_to_ptr.vmem [resolvable:$true] %s30
      %36 = dma.hbm_to_vmem [thread:$0]  %s29, 2816, %s31, [#allocation4], 256, 256, 16
    $region13: #{tpu_custom_call.1} parent=1 // pred_fallthru
      _
    // Predicated region
    $region14: #{tpu_custom_call.1} parent=1 // pred_check
      _
    $region15: #{tpu_custom_call.1} parent=1 // pred_check_branch
      %38 = sbr.rel (0) target = $region17
    $region16: #{tpu_custom_call.1} parent=1 // pred_region
      %40 = vsyncadd [#allocation7], 0
      %s41 = sshll.u32 %s3, 4
      %s42 = int_to_ptr.hbm [resolvable:$true] %s41
      %s43 = sshll.u32 [#allocation6], 4
      %s44 = int_to_ptr.vmem [resolvable:$true] %s43
      %49 = dma.hbm_to_vmem [thread:$0]  %s42, 43008, %s44, [#allocation7], 128, 128, 8
    $region17: #{tpu_custom_call.1} parent=1 // pred_fallthru
      _
    // Predicated region
    $region18: #{tpu_custom_call.1} parent=1 // pred_check
      _
    $region19: #{tpu_custom_call.1} parent=1 // pred_check_branch
      %51 = sbr.rel (0) target = $region21
    $region20: #{tpu_custom_call.1} parent=1 // pred_region
      _
    $region21: #{tpu_custom_call.1} parent=1 // pred_fallthru
      _
    // Predicated region
    $region22: #{tpu_custom_call.1} parent=1 // pred_check
      _
    $region23: #{tpu_custom_call.1} parent=1 // pred_check_branch
      %53 = sbr.rel (0) target = $region25
    $region24: #{tpu_custom_call.1} parent=1 // pred_region
      _
    $region25: #{tpu_custom_call.1} parent=1 // pred_fallthru
      _
    // Predicated region
    $region26: #{tpu_custom_call.1} parent=1 // pred_check
      _
    $region27: #{tpu_custom_call.1} parent=1 // pred_check_branch
      %55 = sbr.rel (0) target = $region29
    $region28: #{tpu_custom_call.1} parent=1 // pred_region
      _
    $region29: #{tpu_custom_call.1} parent=1 // pred_fallthru
      _
    // Predicated region
    $region30: #{tpu_custom_call.1} parent=1 // pred_check
      _
    $region31: #{tpu_custom_call.1} parent=1 // pred_check_branch
      %57 = sbr.rel (0) target = $region33
    $region32: #{tpu_custom_call.1} parent=1 // pred_region
      _
    $region33: #{tpu_custom_call.1} parent=1 // pred_fallthru
      _
    // Predicated region
    $region34: #{tpu_custom_call.1} parent=1 // pred_check
      _
    $region35: #{tpu_custom_call.1} parent=1 // pred_check_branch
      %59 = sbr.rel (0) target = $region37
    $region36: #{tpu_custom_call.1} parent=1 // pred_region
      %61 = vsyncadd [#allocation7], 0
      %s63 = sshll.u32 %s8, 4
      %s64 = int_to_ptr.hbm [resolvable:$true] %s63
      %s65 = sshll.u32 [#allocation8], 4
      %s66 = int_to_ptr.vmem [resolvable:$true] %s65
      %68 = dma.hbm_to_vmem [thread:$0]  %s64, 128, %s66, [#allocation7]
    $region37: #{tpu_custom_call.1} parent=1 // pred_fallthru
      _
    // Predicated region
    $region38: #{tpu_custom_call.1} parent=1 // pred_check
      _
    $region39: #{tpu_custom_call.1} parent=1 // pred_check_branch
      %70 = sbr.rel (0) target = $region41
    $region40: #{tpu_custom_call.1} parent=1 // pred_region
      _
    $region41: #{tpu_custom_call.1} parent=1 // pred_fallthru
      _
    // Predicated region
    $region42: #{tpu_custom_call.1} parent=1 // pred_check
      _
    $region43: #{tpu_custom_call.1} parent=1 // pred_check_branch
      %72 = sbr.rel (0) target = $region45
    $region44: #{tpu_custom_call.1} parent=1 // pred_region
      %74 = dma.done [#allocation4], 2816
    $region45: #{tpu_custom_call.1} parent=1 // pred_fallthru
      _
    // Predicated region
    $region46: #{tpu_custom_call.1} parent=1 // pred_check
      _
    $region47: #{tpu_custom_call.1} parent=1 // pred_check_branch
      %76 = sbr.rel (0) target = $region49
    $region48: #{tpu_custom_call.1} parent=1 // pred_region
      %78 = dma.done [#allocation7], 43008
    $region49: #{tpu_custom_call.1} parent=1 // pred_fallthru
      _
    // Predicated region
    $region50: #{tpu_custom_call.1} parent=1 // pred_check
      _
    $region51: #{tpu_custom_call.1} parent=1 // pred_check_branch
      %80 = sbr.rel (0) target = $region53
    $region52: #{tpu_custom_call.1} parent=1 // pred_region
      %82 = dma.done [#allocation7], 128
    $region53: #{tpu_custom_call.1} parent=1 // pred_fallthru
      _
    %v83 = vld [vmem:[%s0] sm:$0xff]
    %v84 = vld [vmem:[%s0 + $0x8] sm:$0xff]
    %v85 = vld [vmem:[%s0 + $0x10] sm:$0xff]
    %v86 = vld [vmem:[%s0 + $0x18] sm:$0xff]
    %v87 = vld [vmem:[%s0 + $0x20] sm:$0xff]
    %v88 = vld [vmem:[%s0 + $0x28] sm:$0xff]
    %v89 = vld [vmem:[%s0 + $0x30] sm:$0xff]
    %v90 = vld [vmem:[%s0 + $0x38] sm:$0xff]
    %v91 = vld [vmem:[%s0 + $0x40] sm:$0xff]
    %v92 = vld [vmem:[%s0 + $0x48] sm:$0xff]
    %v93 = vld [vmem:[%s0 + $0x50] sm:$0xff]
    %v94 = vld [vmem:[%s1] sm:$0xff]
    %v95 = vld [vmem:[%s1 + $0x8] sm:$0xff]
    %v96 = vld [vmem:[%s1 + $0x10] sm:$0xff]
    %v97 = vld [vmem:[%s1 + $0x18] sm:$0xff]
    %v98 = vld [vmem:[%s1 + $0x20] sm:$0xff]
    %v99 = vld [vmem:[%s1 + $0x28] sm:$0xff]
    %v100 = vld [vmem:[%s1 + $0x30] sm:$0xff]
    %v101 = vld [vmem:[%s1 + $0x38] sm:$0xff]
    %v102 = vld [vmem:[%s1 + $0x40] sm:$0xff]
    %v103 = vld [vmem:[%s1 + $0x48] sm:$0xff]
    %v104 = vld [vmem:[%s1 + $0x50] sm:$0xff]
    %v105 = vld [vmem:[%s1 + $0x58] sm:$0xff]
    %v106 = vld [vmem:[%s1 + $0x60] sm:$0xff]
    %v107 = vld [vmem:[%s1 + $0x68] sm:$0xff]
    %v108 = vld [vmem:[%s1 + $0x70] sm:$0xff]
    %v109 = vld [vmem:[%s1 + $0x78] sm:$0xff]
    %v110 = vld [vmem:[%s1 + $0x80] sm:$0xff]
    %v111 = vld [vmem:[%s1 + $0x88] sm:$0xff]
    %v112 = vld [vmem:[%s1 + $0x90] sm:$0xff]
    %v113 = vld [vmem:[%s1 + $0x98] sm:$0xff]
    %v114 = vld [vmem:[%s1 + $0xa0] sm:$0xff]
    %v115 = vld [vmem:[%s1 + $0xa8] sm:$0xff]
    %v116 = vld [vmem:[%s1 + $0xb0] sm:$0xff]
    %v117 = vld [vmem:[%s1 + $0xb8] sm:$0xff]
    %v118 = vld [vmem:[%s1 + $0xc0] sm:$0xff]
    %v119 = vld [vmem:[%s1 + $0xc8] sm:$0xff]
    %v120 = vld [vmem:[%s1 + $0xd0] sm:$0xff]
    %v121 = vld [vmem:[%s1 + $0xd8] sm:$0xff]
    %vm122 = vcmask 719872
    %v124 = vsel %vm122, %v94, 0
    %v127 = vsel %vm122, %v95, 0
    %v130 = vsel %vm122, %v96, 0
    %v133 = vsel %vm122, %v97, 0
    %v136 = vsel %vm122, %v98, 0
    %v139 = vsel %vm122, %v99, 0
    %v142 = vsel %vm122, %v100, 0
    %v145 = vsel %vm122, %v101, 0
    %v148 = vsel %vm122, %v102, 0
    %v151 = vsel %vm122, %v103, 0
    %v154 = vsel %vm122, %v104, 0
    %v157 = vsel %vm122, %v105, 0
    %v160 = vsel %vm122, %v106, 0
    %v163 = vsel %vm122, %v107, 0
    %v166 = vsel %vm122, %v108, 0
    %v169 = vsel %vm122, %v109, 0
    %v172 = vsel %vm122, %v110, 0
    %v175 = vsel %vm122, %v111, 0
    %v178 = vsel %vm122, %v112, 0
    %v181 = vsel %vm122, %v113, 0
    %v184 = vsel %vm122, %v114, 0
    %v187 = vsel %vm122, %v115, 0
    %v190 = vsel %vm122, %v116, 0
    %v193 = vsel %vm122, %v117, 0
    %v196 = vsel %vm122, %v118, 0
    %v199 = vsel %vm122, %v119, 0
    %v202 = vsel %vm122, %v120, 0
    %v205 = vsel %vm122, %v121, 0
    %207 = vmatpush.msra.mxu0 0.0
    %208 = vmatpush.msra.mxu0 0.0
    %209 = vmatpush.msra.mxu0 0.0
    %210 = vmatpush.msra.mxu0 0.0
    %211 = vmatpush.msra.mxu0 0.0
    %212 = vmatpush.msra.mxu0 %v93
    %213 = vmatpush.msra.mxu0 %v92
    %214 = vmatpush.msra.mxu0 %v91
    %215 = vmatpush.msra.mxu0 %v90
    %216 = vmatpush.msra.mxu0 %v89
    %217 = vmatpush.msra.mxu0 %v88
    %218 = vmatpush.msra.mxu0 %v87
    %219 = vmatpush.msra.mxu0 %v86
    %220 = vmatpush.msra.mxu0 %v85
    %221 = vmatpush.msra.mxu0 %v84
    %222 = vmatpush.msra.mxu0 %v83
    %223 = vmatmul.f32.gmra.mxu0 %v124
    %v224 = vpop.f32.mrf.mxu0
    %v225 = vadd.f32 0.0, %v224
    %226 = vmatmul.f32.gmra.mxu0 %v127
    %v227 = vpop.f32.mrf.mxu0
    %v228 = vadd.f32 0.0, %v227
    %229 = vmatmul.f32.gmra.mxu0 %v130
    %v230 = vpop.f32.mrf.mxu0
    %v231 = vadd.f32 0.0, %v230
    %232 = vmatmul.f32.gmra.mxu0 %v133
    %v233 = vpop.f32.mrf.mxu0
    %v234 = vadd.f32 0.0, %v233
    %235 = vmatmul.f32.gmra.mxu0 %v136
    %v236 = vpop.f32.mrf.mxu0
    %v237 = vadd.f32 0.0, %v236
    %238 = vmatmul.f32.gmra.mxu0 %v139
    %v239 = vpop.f32.mrf.mxu0
    %v240 = vadd.f32 0.0, %v239
    %241 = vmatmul.f32.gmra.mxu0 %v142
    %v242 = vpop.f32.mrf.mxu0
    %v243 = vadd.f32 0.0, %v242
    %244 = vmatmul.f32.gmra.mxu0 %v145
    %v245 = vpop.f32.mrf.mxu0
    %v246 = vadd.f32 0.0, %v245
    %247 = vmatmul.f32.gmra.mxu0 %v148
    %v248 = vpop.f32.mrf.mxu0
    %v249 = vadd.f32 0.0, %v248
    %250 = vmatmul.f32.gmra.mxu0 %v151
    %v251 = vpop.f32.mrf.mxu0
    %v252 = vadd.f32 0.0, %v251
    %253 = vmatmul.f32.gmra.mxu0 %v154
    %v254 = vpop.f32.mrf.mxu0
    %v255 = vadd.f32 0.0, %v254
    %256 = vmatmul.f32.gmra.mxu0 %v157
    %v257 = vpop.f32.mrf.mxu0
    %v258 = vadd.f32 0.0, %v257
    %259 = vmatmul.f32.gmra.mxu0 %v160
    %v260 = vpop.f32.mrf.mxu0
    %v261 = vadd.f32 0.0, %v260
    %262 = vmatmul.f32.gmra.mxu0 %v163
    %v263 = vpop.f32.mrf.mxu0
    %v264 = vadd.f32 0.0, %v263
    %265 = vmatmul.f32.gmra.mxu0 %v166
    %v266 = vpop.f32.mrf.mxu0
    %v267 = vadd.f32 0.0, %v266
    %268 = vmatmul.f32.gmra.mxu0 %v169
    %v269 = vpop.f32.mrf.mxu0
    %v270 = vadd.f32 0.0, %v269
    %271 = vmatmul.f32.gmra.mxu0 %v172
    %v272 = vpop.f32.mrf.mxu0
    %v273 = vadd.f32 0.0, %v272
    %274 = vmatmul.f32.gmra.mxu0 %v175
    %v275 = vpop.f32.mrf.mxu0
    %v276 = vadd.f32 0.0, %v275
    %277 = vmatmul.f32.gmra.mxu0 %v178
    %v278 = vpop.f32.mrf.mxu0
    %v279 = vadd.f32 0.0, %v278
    %280 = vmatmul.f32.gmra.mxu0 %v181
    %v281 = vpop.f32.mrf.mxu0
    %v282 = vadd.f32 0.0, %v281
    %283 = vmatmul.f32.gmra.mxu0 %v184
    %v284 = vpop.f32.mrf.mxu0
    %v285 = vadd.f32 0.0, %v284
    %286 = vmatmul.f32.gmra.mxu0 %v187
    %v287 = vpop.f32.mrf.mxu0
    %v288 = vadd.f32 0.0, %v287
    %289 = vmatmul.f32.gmra.mxu0 %v190
    %v290 = vpop.f32.mrf.mxu0
    %v291 = vadd.f32 0.0, %v290
    %292 = vmatmul.f32.gmra.mxu0 %v193
    %v293 = vpop.f32.mrf.mxu0
    %v294 = vadd.f32 0.0, %v293
    %295 = vmatmul.f32.gmra.mxu0 %v196
    %v296 = vpop.f32.mrf.mxu0
    %v297 = vadd.f32 0.0, %v296
    %298 = vmatmul.f32.gmra.mxu0 %v199
    %v299 = vpop.f32.mrf.mxu0
    %v300 = vadd.f32 0.0, %v299
    %301 = vmatmul.f32.gmra.mxu0 %v202
    %v302 = vpop.f32.mrf.mxu0
    %v303 = vadd.f32 0.0, %v302
    %304 = vmatmul.f32.gmra.mxu0 %v205
    %v305 = vpop.f32.mrf.mxu0
    %v306 = vadd.f32 0.0, %v305
    %307 = vdwg.mxu0
    %v308 = vld [vmem:[#allocation6] sm:$0xff]
    %v309 = vld [vmem:[#allocation6 + $0x8] sm:$0xff]
    %v310 = vld [vmem:[#allocation6 + $0x10] sm:$0xff]
    %v311 = vld [vmem:[#allocation6 + $0x18] sm:$0xff]
    %v312 = vld [vmem:[#allocation6 + $0x20] sm:$0xff]
    %v313 = vld [vmem:[#allocation6 + $0x28] sm:$0xff]
    %v314 = vld [vmem:[#allocation6 + $0x30] sm:$0xff]
    %v315 = vld [vmem:[#allocation6 + $0x38] sm:$0xff]
    %v316 = vld [vmem:[#allocation6 + $0x40] sm:$0xff]
    %v317 = vld [vmem:[#allocation6 + $0x48] sm:$0xff]
    %v318 = vld [vmem:[#allocation6 + $0x50] sm:$0xff]
    %v319 = vld [vmem:[#allocation6 + $0x58] sm:$0xff]
    %v320 = vld [vmem:[#allocation6 + $0x60] sm:$0xff]
    %v321 = vld [vmem:[#allocation6 + $0x68] sm:$0xff]
    %v322 = vld [vmem:[#allocation6 + $0x70] sm:$0xff]
    %v323 = vld [vmem:[#allocation6 + $0x78] sm:$0xff]
    %v324 = vld [vmem:[#allocation6 + $0x80] sm:$0xff]
    %v325 = vld [vmem:[#allocation6 + $0x88] sm:$0xff]
    %v326 = vld [vmem:[#allocation6 + $0x90] sm:$0xff]
    %v327 = vld [vmem:[#allocation6 + $0x98] sm:$0xff]
    %v328 = vld [vmem:[#allocation6 + $0xa0] sm:$0xff]
    %v329 = vld [vmem:[#allocation6 + $0xa8] sm:$0xff]
    %v330 = vld [vmem:[#allocation6 + $0xb0] sm:$0xff]
    %v331 = vld [vmem:[#allocation6 + $0xb8] sm:$0xff]
    %v332 = vld [vmem:[#allocation6 + $0xc0] sm:$0xff]
    %v333 = vld [vmem:[#allocation6 + $0xc8] sm:$0xff]
    %v334 = vld [vmem:[#allocation6 + $0xd0] sm:$0xff]
    %v335 = vld [vmem:[#allocation6 + $0xd8] sm:$0xff]
    %v336 = vld [vmem:[#allocation6 + $0xe0] sm:$0xff]
    %v337 = vld [vmem:[#allocation6 + $0xe8] sm:$0xff]
    %v338 = vld [vmem:[#allocation6 + $0xf0] sm:$0xff]
    %v339 = vld [vmem:[#allocation6 + $0xf8] sm:$0xff]
    %v340 = vld [vmem:[#allocation6 + $0x100] sm:$0xff]
    %v341 = vld [vmem:[#allocation6 + $0x108] sm:$0xff]
    %v342 = vld [vmem:[#allocation6 + $0x110] sm:$0xff]
    %v343 = vld [vmem:[#allocation6 + $0x118] sm:$0xff]
    %v344 = vld [vmem:[#allocation6 + $0x120] sm:$0xff]
    %v345 = vld [vmem:[#allocation6 + $0x128] sm:$0xff]
    %v346 = vld [vmem:[#allocation6 + $0x130] sm:$0xff]
    %v347 = vld [vmem:[#allocation6 + $0x138] sm:$0xff]
    %v348 = vld [vmem:[#allocation6 + $0x140] sm:$0xff]
    %v349 = vld [vmem:[#allocation6 + $0x148] sm:$0xff]
    %v350 = vld [vmem:[#allocation6 + $0x150] sm:$0xff]
    %v351 = vld [vmem:[#allocation6 + $0x158] sm:$0xff]
    %v352 = vld [vmem:[#allocation6 + $0x160] sm:$0xff]
    %v353 = vld [vmem:[#allocation6 + $0x168] sm:$0xff]
    %v354 = vld [vmem:[#allocation6 + $0x170] sm:$0xff]
    %v355 = vld [vmem:[#allocation6 + $0x178] sm:$0xff]
    %v356 = vld [vmem:[#allocation6 + $0x180] sm:$0xff]
    %v357 = vld [vmem:[#allocation6 + $0x188] sm:$0xff]
    %v358 = vld [vmem:[#allocation6 + $0x190] sm:$0xff]
    %v359 = vld [vmem:[#allocation6 + $0x198] sm:$0xff]
    %v360 = vld [vmem:[#allocation6 + $0x1a0] sm:$0xff]
    %v361 = vld [vmem:[#allocation6 + $0x1a8] sm:$0xff]
    %v362 = vld [vmem:[#allocation6 + $0x1b0] sm:$0xff]
    %v363 = vld [vmem:[#allocation6 + $0x1b8] sm:$0xff]
    %v364 = vld [vmem:[#allocation6 + $0x1c0] sm:$0xff]
    %v365 = vld [vmem:[#allocation6 + $0x1c8] sm:$0xff]
    %v366 = vld [vmem:[#allocation6 + $0x1d0] sm:$0xff]
    %v367 = vld [vmem:[#allocation6 + $0x1d8] sm:$0xff]
    %v368 = vld [vmem:[#allocation6 + $0x1e0] sm:$0xff]
    %v369 = vld [vmem:[#allocation6 + $0x1e8] sm:$0xff]
    %v370 = vld [vmem:[#allocation6 + $0x1f0] sm:$0xff]
    %v371 = vld [vmem:[#allocation6 + $0x1f8] sm:$0xff]
    %v372 = vld [vmem:[#allocation6 + $0x200] sm:$0xff]
    %v373 = vld [vmem:[#allocation6 + $0x208] sm:$0xff]
    %v374 = vld [vmem:[#allocation6 + $0x210] sm:$0xff]
    %v375 = vld [vmem:[#allocation6 + $0x218] sm:$0xff]
    %v376 = vld [vmem:[#allocation6 + $0x220] sm:$0xff]
    %v377 = vld [vmem:[#allocation6 + $0x228] sm:$0xff]
    %v378 = vld [vmem:[#allocation6 + $0x230] sm:$0xff]
    %v379 = vld [vmem:[#allocation6 + $0x238] sm:$0xff]
    %v380 = vld [vmem:[#allocation6 + $0x240] sm:$0xff]
    %v381 = vld [vmem:[#allocation6 + $0x248] sm:$0xff]
    %v382 = vld [vmem:[#allocation6 + $0x250] sm:$0xff]
    %v383 = vld [vmem:[#allocation6 + $0x258] sm:$0xff]
    %v384 = vld [vmem:[#allocation6 + $0x260] sm:$0xff]
    %v385 = vld [vmem:[#allocation6 + $0x268] sm:$0xff]
    %v386 = vld [vmem:[#allocation6 + $0x270] sm:$0xff]
    %v387 = vld [vmem:[#allocation6 + $0x278] sm:$0xff]
    %v388 = vld [vmem:[#allocation6 + $0x280] sm:$0xff]
    %v389 = vld [vmem:[#allocation6 + $0x288] sm:$0xff]
    %v390 = vld [vmem:[#allocation6 + $0x290] sm:$0xff]
    %v391 = vld [vmem:[#allocation6 + $0x298] sm:$0xff]
    %v392 = vld [vmem:[#allocation6 + $0x2a0] sm:$0xff]
    %v393 = vld [vmem:[#allocation6 + $0x2a8] sm:$0xff]
    %v394 = vld [vmem:[#allocation6 + $0x2b0] sm:$0xff]
    %v395 = vld [vmem:[#allocation6 + $0x2b8] sm:$0xff]
    %v396 = vld [vmem:[#allocation6 + $0x2c0] sm:$0xff]
    %v397 = vld [vmem:[#allocation6 + $0x2c8] sm:$0xff]
    %v398 = vld [vmem:[#allocation6 + $0x2d0] sm:$0xff]
    %v399 = vld [vmem:[#allocation6 + $0x2d8] sm:$0xff]
    %v400 = vld [vmem:[#allocation6 + $0x2e0] sm:$0xff]
    %v401 = vld [vmem:[#allocation6 + $0x2e8] sm:$0xff]
    %v402 = vld [vmem:[#allocation6 + $0x2f0] sm:$0xff]
    %v403 = vld [vmem:[#allocation6 + $0x2f8] sm:$0xff]
    %v404 = vld [vmem:[#allocation6 + $0x300] sm:$0xff]
    %v405 = vld [vmem:[#allocation6 + $0x308] sm:$0xff]
    %v406 = vld [vmem:[#allocation6 + $0x310] sm:$0xff]
    %v407 = vld [vmem:[#allocation6 + $0x318] sm:$0xff]
    %v408 = vld [vmem:[#allocation6 + $0x320] sm:$0xff]
    %v409 = vld [vmem:[#allocation6 + $0x328] sm:$0xff]
    %v410 = vld [vmem:[#allocation6 + $0x330] sm:$0xff]
    %v411 = vld [vmem:[#allocation6 + $0x338] sm:$0xff]
    %v412 = vld [vmem:[#allocation6 + $0x340] sm:$0xff]
    %v413 = vld [vmem:[#allocation6 + $0x348] sm:$0xff]
    %v414 = vld [vmem:[#allocation6 + $0x350] sm:$0xff]
    %v415 = vld [vmem:[#allocation6 + $0x358] sm:$0xff]
    %v416 = vld [vmem:[#allocation6 + $0x360] sm:$0xff]
    %v417 = vld [vmem:[#allocation6 + $0x368] sm:$0xff]
    %v418 = vld [vmem:[#allocation6 + $0x370] sm:$0xff]
    %v419 = vld [vmem:[#allocation6 + $0x378] sm:$0xff]
    %vm420 = vcmask 261120
    %v422 = vsel %vm420, %v225, 0
    %424 = vmatpush.msra.mxu0 0.0
    %425 = vmatpush.msra.mxu0 0.0
    %426 = vmatpush.msra.mxu0 0.0
    %427 = vmatpush.msra.mxu0 0.0
    %428 = vmatpush.msra.mxu0 0.0
    %429 = vmatpush.msra.mxu0 0.0
    %430 = vmatpush.msra.mxu0 0.0
    %431 = vmatpush.msra.mxu0 0.0
    %432 = vmatpush.msra.mxu0 0.0
    %433 = vmatpush.msra.mxu0 0.0
    %434 = vmatpush.msra.mxu0 0.0
    %435 = vmatpush.msra.mxu0 0.0
    %436 = vmatpush.msra.mxu0 %v311
    %437 = vmatpush.msra.mxu0 %v310
    %438 = vmatpush.msra.mxu0 %v309
    %439 = vmatpush.msra.mxu0 %v308
    %440 = vmatmul.f32.gmra.mxu0 %v422
    %v441 = vpop.f32.mrf.mxu0
    %v442 = vadd.f32 0.0, %v441
    %443 = vdwg.mxu0
    %v445 = vsel %vm420, %v228, 0
    %447 = vmatpush.msra.mxu0 0.0
    %448 = vmatpush.msra.mxu0 0.0
    %449 = vmatpush.msra.mxu0 0.0
    %450 = vmatpush.msra.mxu0 0.0
    %451 = vmatpush.msra.mxu0 0.0
    %452 = vmatpush.msra.mxu0 0.0
    %453 = vmatpush.msra.mxu0 0.0
    %454 = vmatpush.msra.mxu0 0.0
    %455 = vmatpush.msra.mxu0 0.0
    %456 = vmatpush.msra.mxu0 0.0
    %457 = vmatpush.msra.mxu0 0.0
    %458 = vmatpush.msra.mxu0 0.0
    %459 = vmatpush.msra.mxu0 %v315
    %460 = vmatpush.msra.mxu0 %v314
    %461 = vmatpush.msra.mxu0 %v313
    %462 = vmatpush.msra.mxu0 %v312
    %463 = vmatmul.f32.gmra.mxu0 %v445
    %v464 = vpop.f32.mrf.mxu0
    %v465 = vadd.f32 0.0, %v464
    %466 = vdwg.mxu0
    %v468 = vsel %vm420, %v231, 0
    %470 = vmatpush.msra.mxu0 0.0
    %471 = vmatpush.msra.mxu0 0.0
    %472 = vmatpush.msra.mxu0 0.0
    %473 = vmatpush.msra.mxu0 0.0
    %474 = vmatpush.msra.mxu0 0.0
    %475 = vmatpush.msra.mxu0 0.0
    %476 = vmatpush.msra.mxu0 0.0
    %477 = vmatpush.msra.mxu0 0.0
    %478 = vmatpush.msra.mxu0 0.0
    %479 = vmatpush.msra.mxu0 0.0
    %480 = vmatpush.msra.mxu0 0.0
    %481 = vmatpush.msra.mxu0 0.0
    %482 = vmatpush.msra.mxu0 %v319
    %483 = vmatpush.msra.mxu0 %v318
    %484 = vmatpush.msra.mxu0 %v317
    %485 = vmatpush.msra.mxu0 %v316
    %486 = vmatmul.f32.gmra.mxu0 %v468
    %v487 = vpop.f32.mrf.mxu0
    %v488 = vadd.f32 0.0, %v487
    %489 = vdwg.mxu0
    %v491 = vsel %vm420, %v234, 0
    %493 = vmatpush.msra.mxu0 0.0
    %494 = vmatpush.msra.mxu0 0.0
    %495 = vmatpush.msra.mxu0 0.0
    %496 = vmatpush.msra.mxu0 0.0
    %497 = vmatpush.msra.mxu0 0.0
    %498 = vmatpush.msra.mxu0 0.0
    %499 = vmatpush.msra.mxu0 0.0
    %500 = vmatpush.msra.mxu0 0.0
    %501 = vmatpush.msra.mxu0 0.0
    %502 = vmatpush.msra.mxu0 0.0
    %503 = vmatpush.msra.mxu0 0.0
    %504 = vmatpush.msra.mxu0 0.0
    %505 = vmatpush.msra.mxu0 %v323
    %506 = vmatpush.msra.mxu0 %v322
    %507 = vmatpush.msra.mxu0 %v321
    %508 = vmatpush.msra.mxu0 %v320
    %509 = vmatmul.f32.gmra.mxu0 %v491
    %v510 = vpop.f32.mrf.mxu0
    %v511 = vadd.f32 0.0, %v510
    %512 = vdwg.mxu0
    %v514 = vsel %vm420, %v237, 0
    %516 = vmatpush.msra.mxu0 0.0
    %517 = vmatpush.msra.mxu0 0.0
    %518 = vmatpush.msra.mxu0 0.0
    %519 = vmatpush.msra.mxu0 0.0
    %520 = vmatpush.msra.mxu0 0.0
    %521 = vmatpush.msra.mxu0 0.0
    %522 = vmatpush.msra.mxu0 0.0
    %523 = vmatpush.msra.mxu0 0.0
    %524 = vmatpush.msra.mxu0 0.0
    %525 = vmatpush.msra.mxu0 0.0
    %526 = vmatpush.msra.mxu0 0.0
    %527 = vmatpush.msra.mxu0 0.0
    %528 = vmatpush.msra.mxu0 %v327
    %529 = vmatpush.msra.mxu0 %v326
    %530 = vmatpush.msra.mxu0 %v325
    %531 = vmatpush.msra.mxu0 %v324
    %532 = vmatmul.f32.gmra.mxu0 %v514
    %v533 = vpop.f32.mrf.mxu0
    %v534 = vadd.f32 0.0, %v533
    %535 = vdwg.mxu0
    %v537 = vsel %vm420, %v240, 0
    %539 = vmatpush.msra.mxu0 0.0
    %540 = vmatpush.msra.mxu0 0.0
    %541 = vmatpush.msra.mxu0 0.0
    %542 = vmatpush.msra.mxu0 0.0
    %543 = vmatpush.msra.mxu0 0.0
    %544 = vmatpush.msra.mxu0 0.0
    %545 = vmatpush.msra.mxu0 0.0
    %546 = vmatpush.msra.mxu0 0.0
    %547 = vmatpush.msra.mxu0 0.0
    %548 = vmatpush.msra.mxu0 0.0
    %549 = vmatpush.msra.mxu0 0.0
    %550 = vmatpush.msra.mxu0 0.0
    %551 = vmatpush.msra.mxu0 %v331
    %552 = vmatpush.msra.mxu0 %v330
    %553 = vmatpush.msra.mxu0 %v329
    %554 = vmatpush.msra.mxu0 %v328
    %555 = vmatmul.f32.gmra.mxu0 %v537
    %v556 = vpop.f32.mrf.mxu0
    %v557 = vadd.f32 0.0, %v556
    %558 = vdwg.mxu0
    %v560 = vsel %vm420, %v243, 0
    %562 = vmatpush.msra.mxu0 0.0
    %563 = vmatpush.msra.mxu0 0.0
    %564 = vmatpush.msra.mxu0 0.0
    %565 = vmatpush.msra.mxu0 0.0
    %566 = vmatpush.msra.mxu0 0.0
    %567 = vmatpush.msra.mxu0 0.0
    %568 = vmatpush.msra.mxu0 0.0
    %569 = vmatpush.msra.mxu0 0.0
    %570 = vmatpush.msra.mxu0 0.0
    %571 = vmatpush.msra.mxu0 0.0
    %572 = vmatpush.msra.mxu0 0.0
    %573 = vmatpush.msra.mxu0 0.0
    %574 = vmatpush.msra.mxu0 %v335
    %575 = vmatpush.msra.mxu0 %v334
    %576 = vmatpush.msra.mxu0 %v333
    %577 = vmatpush.msra.mxu0 %v332
    %578 = vmatmul.f32.gmra.mxu0 %v560
    %v579 = vpop.f32.mrf.mxu0
    %v580 = vadd.f32 0.0, %v579
    %581 = vdwg.mxu0
    %v583 = vsel %vm420, %v246, 0
    %585 = vmatpush.msra.mxu0 0.0
    %586 = vmatpush.msra.mxu0 0.0
    %587 = vmatpush.msra.mxu0 0.0
    %588 = vmatpush.msra.mxu0 0.0
    %589 = vmatpush.msra.mxu0 0.0
    %590 = vmatpush.msra.mxu0 0.0
    %591 = vmatpush.msra.mxu0 0.0
    %592 = vmatpush.msra.mxu0 0.0
    %593 = vmatpush.msra.mxu0 0.0
    %594 = vmatpush.msra.mxu0 0.0
    %595 = vmatpush.msra.mxu0 0.0
    %596 = vmatpush.msra.mxu0 0.0
    %597 = vmatpush.msra.mxu0 %v339
    %598 = vmatpush.msra.mxu0 %v338
    %599 = vmatpush.msra.mxu0 %v337
    %600 = vmatpush.msra.mxu0 %v336
    %601 = vmatmul.f32.gmra.mxu0 %v583
    %v602 = vpop.f32.mrf.mxu0
    %v603 = vadd.f32 0.0, %v602
    %604 = vdwg.mxu0
    %v606 = vsel %vm420, %v249, 0
    %608 = vmatpush.msra.mxu0 0.0
    %609 = vmatpush.msra.mxu0 0.0
    %610 = vmatpush.msra.mxu0 0.0
    %611 = vmatpush.msra.mxu0 0.0
    %612 = vmatpush.msra.mxu0 0.0
    %613 = vmatpush.msra.mxu0 0.0
    %614 = vmatpush.msra.mxu0 0.0
    %615 = vmatpush.msra.mxu0 0.0
    %616 = vmatpush.msra.mxu0 0.0
    %617 = vmatpush.msra.mxu0 0.0
    %618 = vmatpush.msra.mxu0 0.0
    %619 = vmatpush.msra.mxu0 0.0
    %620 = vmatpush.msra.mxu0 %v343
    %621 = vmatpush.msra.mxu0 %v342
    %622 = vmatpush.msra.mxu0 %v341
    %623 = vmatpush.msra.mxu0 %v340
    %624 = vmatmul.f32.gmra.mxu0 %v606
    %v625 = vpop.f32.mrf.mxu0
    %v626 = vadd.f32 0.0, %v625
    %627 = vdwg.mxu0
    %v629 = vsel %vm420, %v252, 0
    %631 = vmatpush.msra.mxu0 0.0
    %632 = vmatpush.msra.mxu0 0.0
    %633 = vmatpush.msra.mxu0 0.0
    %634 = vmatpush.msra.mxu0 0.0
    %635 = vmatpush.msra.mxu0 0.0
    %636 = vmatpush.msra.mxu0 0.0
    %637 = vmatpush.msra.mxu0 0.0
    %638 = vmatpush.msra.mxu0 0.0
    %639 = vmatpush.msra.mxu0 0.0
    %640 = vmatpush.msra.mxu0 0.0
    %641 = vmatpush.msra.mxu0 0.0
    %642 = vmatpush.msra.mxu0 0.0
    %643 = vmatpush.msra.mxu0 %v347
    %644 = vmatpush.msra.mxu0 %v346
    %645 = vmatpush.msra.mxu0 %v345
    %646 = vmatpush.msra.mxu0 %v344
    %647 = vmatmul.f32.gmra.mxu0 %v629
    %v648 = vpop.f32.mrf.mxu0
    %v649 = vadd.f32 0.0, %v648
    %650 = vdwg.mxu0
    %v652 = vsel %vm420, %v255, 0
    %654 = vmatpush.msra.mxu0 0.0
    %655 = vmatpush.msra.mxu0 0.0
    %656 = vmatpush.msra.mxu0 0.0
    %657 = vmatpush.msra.mxu0 0.0
    %658 = vmatpush.msra.mxu0 0.0
    %659 = vmatpush.msra.mxu0 0.0
    %660 = vmatpush.msra.mxu0 0.0
    %661 = vmatpush.msra.mxu0 0.0
    %662 = vmatpush.msra.mxu0 0.0
    %663 = vmatpush.msra.mxu0 0.0
    %664 = vmatpush.msra.mxu0 0.0
    %665 = vmatpush.msra.mxu0 0.0
    %666 = vmatpush.msra.mxu0 %v351
    %667 = vmatpush.msra.mxu0 %v350
    %668 = vmatpush.msra.mxu0 %v349
    %669 = vmatpush.msra.mxu0 %v348
    %670 = vmatmul.f32.gmra.mxu0 %v652
    %v671 = vpop.f32.mrf.mxu0
    %v672 = vadd.f32 0.0, %v671
    %673 = vdwg.mxu0
    %v675 = vsel %vm420, %v258, 0
    %677 = vmatpush.msra.mxu0 0.0
    %678 = vmatpush.msra.mxu0 0.0
    %679 = vmatpush.msra.mxu0 0.0
    %680 = vmatpush.msra.mxu0 0.0
    %681 = vmatpush.msra.mxu0 0.0
    %682 = vmatpush.msra.mxu0 0.0
    %683 = vmatpush.msra.mxu0 0.0
    %684 = vmatpush.msra.mxu0 0.0
    %685 = vmatpush.msra.mxu0 0.0
    %686 = vmatpush.msra.mxu0 0.0
    %687 = vmatpush.msra.mxu0 0.0
    %688 = vmatpush.msra.mxu0 0.0
    %689 = vmatpush.msra.mxu0 %v355
    %690 = vmatpush.msra.mxu0 %v354
    %691 = vmatpush.msra.mxu0 %v353
    %692 = vmatpush.msra.mxu0 %v352
    %693 = vmatmul.f32.gmra.mxu0 %v675
    %v694 = vpop.f32.mrf.mxu0
    %v695 = vadd.f32 0.0, %v694
    %696 = vdwg.mxu0
    %v698 = vsel %vm420, %v261, 0
    %700 = vmatpush.msra.mxu0 0.0
    %701 = vmatpush.msra.mxu0 0.0
    %702 = vmatpush.msra.mxu0 0.0
    %703 = vmatpush.msra.mxu0 0.0
    %704 = vmatpush.msra.mxu0 0.0
    %705 = vmatpush.msra.mxu0 0.0
    %706 = vmatpush.msra.mxu0 0.0
    %707 = vmatpush.msra.mxu0 0.0
    %708 = vmatpush.msra.mxu0 0.0
    %709 = vmatpush.msra.mxu0 0.0
    %710 = vmatpush.msra.mxu0 0.0
    %711 = vmatpush.msra.mxu0 0.0
    %712 = vmatpush.msra.mxu0 %v359
    %713 = vmatpush.msra.mxu0 %v358
    %714 = vmatpush.msra.mxu0 %v357
    %715 = vmatpush.msra.mxu0 %v356
    %716 = vmatmul.f32.gmra.mxu0 %v698
    %v717 = vpop.f32.mrf.mxu0
    %v718 = vadd.f32 0.0, %v717
    %719 = vdwg.mxu0
    %v721 = vsel %vm420, %v264, 0
    %723 = vmatpush.msra.mxu0 0.0
    %724 = vmatpush.msra.mxu0 0.0
    %725 = vmatpush.msra.mxu0 0.0
    %726 = vmatpush.msra.mxu0 0.0
    %727 = vmatpush.msra.mxu0 0.0
    %728 = vmatpush.msra.mxu0 0.0
    %729 = vmatpush.msra.mxu0 0.0
    %730 = vmatpush.msra.mxu0 0.0
    %731 = vmatpush.msra.mxu0 0.0
    %732 = vmatpush.msra.mxu0 0.0
    %733 = vmatpush.msra.mxu0 0.0
    %734 = vmatpush.msra.mxu0 0.0
    %735 = vmatpush.msra.mxu0 %v363
    %736 = vmatpush.msra.mxu0 %v362
    %737 = vmatpush.msra.mxu0 %v361
    %738 = vmatpush.msra.mxu0 %v360
    %739 = vmatmul.f32.gmra.mxu0 %v721
    %v740 = vpop.f32.mrf.mxu0
    %v741 = vadd.f32 0.0, %v740
    %742 = vdwg.mxu0
    %v744 = vsel %vm420, %v267, 0
    %746 = vmatpush.msra.mxu0 0.0
    %747 = vmatpush.msra.mxu0 0.0
    %748 = vmatpush.msra.mxu0 0.0
    %749 = vmatpush.msra.mxu0 0.0
    %750 = vmatpush.msra.mxu0 0.0
    %751 = vmatpush.msra.mxu0 0.0
    %752 = vmatpush.msra.mxu0 0.0
    %753 = vmatpush.msra.mxu0 0.0
    %754 = vmatpush.msra.mxu0 0.0
    %755 = vmatpush.msra.mxu0 0.0
    %756 = vmatpush.msra.mxu0 0.0
    %757 = vmatpush.msra.mxu0 0.0
    %758 = vmatpush.msra.mxu0 %v367
    %759 = vmatpush.msra.mxu0 %v366
    %760 = vmatpush.msra.mxu0 %v365
    %761 = vmatpush.msra.mxu0 %v364
    %762 = vmatmul.f32.gmra.mxu0 %v744
    %v763 = vpop.f32.mrf.mxu0
    %v764 = vadd.f32 0.0, %v763
    %765 = vdwg.mxu0
    %v767 = vsel %vm420, %v270, 0
    %769 = vmatpush.msra.mxu0 0.0
    %770 = vmatpush.msra.mxu0 0.0
    %771 = vmatpush.msra.mxu0 0.0
    %772 = vmatpush.msra.mxu0 0.0
    %773 = vmatpush.msra.mxu0 0.0
    %774 = vmatpush.msra.mxu0 0.0
    %775 = vmatpush.msra.mxu0 0.0
    %776 = vmatpush.msra.mxu0 0.0
    %777 = vmatpush.msra.mxu0 0.0
    %778 = vmatpush.msra.mxu0 0.0
    %779 = vmatpush.msra.mxu0 0.0
    %780 = vmatpush.msra.mxu0 0.0
    %781 = vmatpush.msra.mxu0 %v371
    %782 = vmatpush.msra.mxu0 %v370
    %783 = vmatpush.msra.mxu0 %v369
    %784 = vmatpush.msra.mxu0 %v368
    %785 = vmatmul.f32.gmra.mxu0 %v767
    %v786 = vpop.f32.mrf.mxu0
    %v787 = vadd.f32 0.0, %v786
    %788 = vdwg.mxu0
    %v790 = vsel %vm420, %v273, 0
    %792 = vmatpush.msra.mxu0 0.0
    %793 = vmatpush.msra.mxu0 0.0
    %794 = vmatpush.msra.mxu0 0.0
    %795 = vmatpush.msra.mxu0 0.0
    %796 = vmatpush.msra.mxu0 0.0
    %797 = vmatpush.msra.mxu0 0.0
    %798 = vmatpush.msra.mxu0 0.0
    %799 = vmatpush.msra.mxu0 0.0
    %800 = vmatpush.msra.mxu0 0.0
    %801 = vmatpush.msra.mxu0 0.0
    %802 = vmatpush.msra.mxu0 0.0
    %803 = vmatpush.msra.mxu0 0.0
    %804 = vmatpush.msra.mxu0 %v375
    %805 = vmatpush.msra.mxu0 %v374
    %806 = vmatpush.msra.mxu0 %v373
    %807 = vmatpush.msra.mxu0 %v372
    %808 = vmatmul.f32.gmra.mxu0 %v790
    %v809 = vpop.f32.mrf.mxu0
    %v810 = vadd.f32 0.0, %v809
    %811 = vdwg.mxu0
    %v813 = vsel %vm420, %v276, 0
    %815 = vmatpush.msra.mxu0 0.0
    %816 = vmatpush.msra.mxu0 0.0
    %817 = vmatpush.msra.mxu0 0.0
    %818 = vmatpush.msra.mxu0 0.0
    %819 = vmatpush.msra.mxu0 0.0
    %820 = vmatpush.msra.mxu0 0.0
    %821 = vmatpush.msra.mxu0 0.0
    %822 = vmatpush.msra.mxu0 0.0
    %823 = vmatpush.msra.mxu0 0.0
    %824 = vmatpush.msra.mxu0 0.0
    %825 = vmatpush.msra.mxu0 0.0
    %826 = vmatpush.msra.mxu0 0.0
    %827 = vmatpush.msra.mxu0 %v379
    %828 = vmatpush.msra.mxu0 %v378
    %829 = vmatpush.msra.mxu0 %v377
    %830 = vmatpush.msra.mxu0 %v376
    %831 = vmatmul.f32.gmra.mxu0 %v813
    %v832 = vpop.f32.mrf.mxu0
    %v833 = vadd.f32 0.0, %v832
    %834 = vdwg.mxu0
    %v836 = vsel %vm420, %v279, 0
    %838 = vmatpush.msra.mxu0 0.0
    %839 = vmatpush.msra.mxu0 0.0
    %840 = vmatpush.msra.mxu0 0.0
    %841 = vmatpush.msra.mxu0 0.0
    %842 = vmatpush.msra.mxu0 0.0
    %843 = vmatpush.msra.mxu0 0.0
    %844 = vmatpush.msra.mxu0 0.0
    %845 = vmatpush.msra.mxu0 0.0
    %846 = vmatpush.msra.mxu0 0.0
    %847 = vmatpush.msra.mxu0 0.0
    %848 = vmatpush.msra.mxu0 0.0
    %849 = vmatpush.msra.mxu0 0.0
    %850 = vmatpush.msra.mxu0 %v383
    %851 = vmatpush.msra.mxu0 %v382
    %852 = vmatpush.msra.mxu0 %v381
    %853 = vmatpush.msra.mxu0 %v380
    %854 = vmatmul.f32.gmra.mxu0 %v836
    %v855 = vpop.f32.mrf.mxu0
    %v856 = vadd.f32 0.0, %v855
    %857 = vdwg.mxu0
    %v859 = vsel %vm420, %v282, 0
    %861 = vmatpush.msra.mxu0 0.0
    %862 = vmatpush.msra.mxu0 0.0
    %863 = vmatpush.msra.mxu0 0.0
    %864 = vmatpush.msra.mxu0 0.0
    %865 = vmatpush.msra.mxu0 0.0
    %866 = vmatpush.msra.mxu0 0.0
    %867 = vmatpush.msra.mxu0 0.0
    %868 = vmatpush.msra.mxu0 0.0
    %869 = vmatpush.msra.mxu0 0.0
    %870 = vmatpush.msra.mxu0 0.0
    %871 = vmatpush.msra.mxu0 0.0
    %872 = vmatpush.msra.mxu0 0.0
    %873 = vmatpush.msra.mxu0 %v387
    %874 = vmatpush.msra.mxu0 %v386
    %875 = vmatpush.msra.mxu0 %v385
    %876 = vmatpush.msra.mxu0 %v384
    %877 = vmatmul.f32.gmra.mxu0 %v859
    %v878 = vpop.f32.mrf.mxu0
    %v879 = vadd.f32 0.0, %v878
    %880 = vdwg.mxu0
    %v882 = vsel %vm420, %v285, 0
    %884 = vmatpush.msra.mxu0 0.0
    %885 = vmatpush.msra.mxu0 0.0
    %886 = vmatpush.msra.mxu0 0.0
    %887 = vmatpush.msra.mxu0 0.0
    %888 = vmatpush.msra.mxu0 0.0
    %889 = vmatpush.msra.mxu0 0.0
    %890 = vmatpush.msra.mxu0 0.0
    %891 = vmatpush.msra.mxu0 0.0
    %892 = vmatpush.msra.mxu0 0.0
    %893 = vmatpush.msra.mxu0 0.0
    %894 = vmatpush.msra.mxu0 0.0
    %895 = vmatpush.msra.mxu0 0.0
    %896 = vmatpush.msra.mxu0 %v391
    %897 = vmatpush.msra.mxu0 %v390
    %898 = vmatpush.msra.mxu0 %v389
    %899 = vmatpush.msra.mxu0 %v388
    %900 = vmatmul.f32.gmra.mxu0 %v882
    %v901 = vpop.f32.mrf.mxu0
    %v902 = vadd.f32 0.0, %v901
    %903 = vdwg.mxu0
    %v905 = vsel %vm420, %v288, 0
    %907 = vmatpush.msra.mxu0 0.0
    %908 = vmatpush.msra.mxu0 0.0
    %909 = vmatpush.msra.mxu0 0.0
    %910 = vmatpush.msra.mxu0 0.0
    %911 = vmatpush.msra.mxu0 0.0
    %912 = vmatpush.msra.mxu0 0.0
    %913 = vmatpush.msra.mxu0 0.0
    %914 = vmatpush.msra.mxu0 0.0
    %915 = vmatpush.msra.mxu0 0.0
    %916 = vmatpush.msra.mxu0 0.0
    %917 = vmatpush.msra.mxu0 0.0
    %918 = vmatpush.msra.mxu0 0.0
    %919 = vmatpush.msra.mxu0 %v395
    %920 = vmatpush.msra.mxu0 %v394
    %921 = vmatpush.msra.mxu0 %v393
    %922 = vmatpush.msra.mxu0 %v392
    %923 = vmatmul.f32.gmra.mxu0 %v905
    %v924 = vpop.f32.mrf.mxu0
    %v925 = vadd.f32 0.0, %v924
    %926 = vdwg.mxu0
    %v928 = vsel %vm420, %v291, 0
    %930 = vmatpush.msra.mxu0 0.0
    %931 = vmatpush.msra.mxu0 0.0
    %932 = vmatpush.msra.mxu0 0.0
    %933 = vmatpush.msra.mxu0 0.0
    %934 = vmatpush.msra.mxu0 0.0
    %935 = vmatpush.msra.mxu0 0.0
    %936 = vmatpush.msra.mxu0 0.0
    %937 = vmatpush.msra.mxu0 0.0
    %938 = vmatpush.msra.mxu0 0.0
    %939 = vmatpush.msra.mxu0 0.0
    %940 = vmatpush.msra.mxu0 0.0
    %941 = vmatpush.msra.mxu0 0.0
    %942 = vmatpush.msra.mxu0 %v399
    %943 = vmatpush.msra.mxu0 %v398
    %944 = vmatpush.msra.mxu0 %v397
    %945 = vmatpush.msra.mxu0 %v396
    %946 = vmatmul.f32.gmra.mxu0 %v928
    %v947 = vpop.f32.mrf.mxu0
    %v948 = vadd.f32 0.0, %v947
    %949 = vdwg.mxu0
    %v951 = vsel %vm420, %v294, 0
    %953 = vmatpush.msra.mxu0 0.0
    %954 = vmatpush.msra.mxu0 0.0
    %955 = vmatpush.msra.mxu0 0.0
    %956 = vmatpush.msra.mxu0 0.0
    %957 = vmatpush.msra.mxu0 0.0
    %958 = vmatpush.msra.mxu0 0.0
    %959 = vmatpush.msra.mxu0 0.0
    %960 = vmatpush.msra.mxu0 0.0
    %961 = vmatpush.msra.mxu0 0.0
    %962 = vmatpush.msra.mxu0 0.0
    %963 = vmatpush.msra.mxu0 0.0
    %964 = vmatpush.msra.mxu0 0.0
    %965 = vmatpush.msra.mxu0 %v403
    %966 = vmatpush.msra.mxu0 %v402
    %967 = vmatpush.msra.mxu0 %v401
    %968 = vmatpush.msra.mxu0 %v400
    %969 = vmatmul.f32.gmra.mxu0 %v951
    %v970 = vpop.f32.mrf.mxu0
    %v971 = vadd.f32 0.0, %v970
    %972 = vdwg.mxu0
    %v974 = vsel %vm420, %v297, 0
    %976 = vmatpush.msra.mxu0 0.0
    %977 = vmatpush.msra.mxu0 0.0
    %978 = vmatpush.msra.mxu0 0.0
    %979 = vmatpush.msra.mxu0 0.0
    %980 = vmatpush.msra.mxu0 0.0
    %981 = vmatpush.msra.mxu0 0.0
    %982 = vmatpush.msra.mxu0 0.0
    %983 = vmatpush.msra.mxu0 0.0
    %984 = vmatpush.msra.mxu0 0.0
    %985 = vmatpush.msra.mxu0 0.0
    %986 = vmatpush.msra.mxu0 0.0
    %987 = vmatpush.msra.mxu0 0.0
    %988 = vmatpush.msra.mxu0 %v407
    %989 = vmatpush.msra.mxu0 %v406
    %990 = vmatpush.msra.mxu0 %v405
    %991 = vmatpush.msra.mxu0 %v404
    %992 = vmatmul.f32.gmra.mxu0 %v974
    %v993 = vpop.f32.mrf.mxu0
    %v994 = vadd.f32 0.0, %v993
    %995 = vdwg.mxu0
    %v997 = vsel %vm420, %v300, 0
    %999 = vmatpush.msra.mxu0 0.0
    %1000 = vmatpush.msra.mxu0 0.0
    %1001 = vmatpush.msra.mxu0 0.0
    %1002 = vmatpush.msra.mxu0 0.0
    %1003 = vmatpush.msra.mxu0 0.0
    %1004 = vmatpush.msra.mxu0 0.0
    %1005 = vmatpush.msra.mxu0 0.0
    %1006 = vmatpush.msra.mxu0 0.0
    %1007 = vmatpush.msra.mxu0 0.0
    %1008 = vmatpush.msra.mxu0 0.0
    %1009 = vmatpush.msra.mxu0 0.0
    %1010 = vmatpush.msra.mxu0 0.0
    %1011 = vmatpush.msra.mxu0 %v411
    %1012 = vmatpush.msra.mxu0 %v410
    %1013 = vmatpush.msra.mxu0 %v409
    %1014 = vmatpush.msra.mxu0 %v408
    %1015 = vmatmul.f32.gmra.mxu0 %v997
    %v1016 = vpop.f32.mrf.mxu0
    %v1017 = vadd.f32 0.0, %v1016
    %1018 = vdwg.mxu0
    %v1020 = vsel %vm420, %v303, 0
    %1022 = vmatpush.msra.mxu0 0.0
    %1023 = vmatpush.msra.mxu0 0.0
    %1024 = vmatpush.msra.mxu0 0.0
    %1025 = vmatpush.msra.mxu0 0.0
    %1026 = vmatpush.msra.mxu0 0.0
    %1027 = vmatpush.msra.mxu0 0.0
    %1028 = vmatpush.msra.mxu0 0.0
    %1029 = vmatpush.msra.mxu0 0.0
    %1030 = vmatpush.msra.mxu0 0.0
    %1031 = vmatpush.msra.mxu0 0.0
    %1032 = vmatpush.msra.mxu0 0.0
    %1033 = vmatpush.msra.mxu0 0.0
    %1034 = vmatpush.msra.mxu0 %v415
    %1035 = vmatpush.msra.mxu0 %v414
    %1036 = vmatpush.msra.mxu0 %v413
    %1037 = vmatpush.msra.mxu0 %v412
    %1038 = vmatmul.f32.gmra.mxu0 %v1020
    %v1039 = vpop.f32.mrf.mxu0
    %v1040 = vadd.f32 0.0, %v1039
    %1041 = vdwg.mxu0
    %v1043 = vsel %vm420, %v306, 0
    %1045 = vmatpush.msra.mxu0 0.0
    %1046 = vmatpush.msra.mxu0 0.0
    %1047 = vmatpush.msra.mxu0 0.0
    %1048 = vmatpush.msra.mxu0 0.0
    %1049 = vmatpush.msra.mxu0 0.0
    %1050 = vmatpush.msra.mxu0 0.0
    %1051 = vmatpush.msra.mxu0 0.0
    %1052 = vmatpush.msra.mxu0 0.0
    %1053 = vmatpush.msra.mxu0 0.0
    %1054 = vmatpush.msra.mxu0 0.0
    %1055 = vmatpush.msra.mxu0 0.0
    %1056 = vmatpush.msra.mxu0 0.0
    %1057 = vmatpush.msra.mxu0 %v419
    %1058 = vmatpush.msra.mxu0 %v418
    %1059 = vmatpush.msra.mxu0 %v417
    %1060 = vmatpush.msra.mxu0 %v416
    %1061 = vmatmul.f32.gmra.mxu0 %v1043
    %v1062 = vpop.f32.mrf.mxu0
    %v1063 = vadd.f32 0.0, %v1062
    %1064 = vdwg.mxu0
    %v1065 = vld [vmem:[#allocation3] sm:$0xff]
    %v1066 = vld [vmem:[#allocation3 + $0x8] sm:$0xff]
    %v1067 = vld [vmem:[#allocation3 + $0x10] sm:$0xff]
    %v1068 = vld [vmem:[#allocation3 + $0x18] sm:$0xff]
    %v1069 = vld [vmem:[#allocation3 + $0x20] sm:$0xff]
    %v1070 = vld [vmem:[#allocation3 + $0x28] sm:$0xff]
    %v1071 = vld [vmem:[#allocation3 + $0x30] sm:$0xff]
    %v1072 = vld [vmem:[#allocation3 + $0x38] sm:$0xff]
    %v1073 = vld [vmem:[#allocation3 + $0x40] sm:$0xff]
    %v1074 = vld [vmem:[#allocation3 + $0x48] sm:$0xff]
    %v1075 = vld [vmem:[#allocation3 + $0x50] sm:$0xff]
    %v1076 = vld [vmem:[#allocation3 + $0x58] sm:$0xff]
    %v1077 = vld [vmem:[#allocation3 + $0x60] sm:$0xff]
    %v1078 = vld [vmem:[#allocation3 + $0x68] sm:$0xff]
    %v1079 = vld [vmem:[#allocation3 + $0x70] sm:$0xff]
    %v1080 = vld [vmem:[#allocation3 + $0x78] sm:$0xff]
    %v1081 = vld [vmem:[#allocation3 + $0x80] sm:$0xff]
    %v1082 = vld [vmem:[#allocation3 + $0x88] sm:$0xff]
    %v1083 = vld [vmem:[#allocation3 + $0x90] sm:$0xff]
    %v1084 = vld [vmem:[#allocation3 + $0x98] sm:$0xff]
    %v1085 = vld [vmem:[#allocation3 + $0xa0] sm:$0xff]
    %v1086 = vld [vmem:[#allocation3 + $0xa8] sm:$0xff]
    %v1087 = vld [vmem:[%s4] sm:$0xff]
    %v1088 = vld [vmem:[%s4 + $0x8] sm:$0xff]
    %v1089 = vld [vmem:[%s4 + $0x10] sm:$0xff]
    %v1090 = vld [vmem:[%s4 + $0x18] sm:$0xff]
    %v1091 = vld [vmem:[%s4 + $0x20] sm:$0xff]
    %v1092 = vld [vmem:[%s4 + $0x28] sm:$0xff]
    %v1093 = vld [vmem:[%s4 + $0x30] sm:$0xff]
    %v1094 = vld [vmem:[%s4 + $0x38] sm:$0xff]
    %v1095 = vld [vmem:[%s4 + $0x40] sm:$0xff]
    %v1096 = vld [vmem:[%s4 + $0x48] sm:$0xff]
    %v1097 = vld [vmem:[%s4 + $0x50] sm:$0xff]
    %vm1098 = vcmask 785408
    %v1100 = vsel %vm1098, %v1066, 0
    %v1103 = vsel %vm1098, %v1068, 0
    %v1106 = vsel %vm1098, %v1070, 0
    %v1109 = vsel %vm1098, %v1072, 0
    %v1112 = vsel %vm1098, %v1074, 0
    %v1115 = vsel %vm1098, %v1076, 0
    %v1118 = vsel %vm1098, %v1078, 0
    %v1121 = vsel %vm1098, %v1080, 0
    %v1124 = vsel %vm1098, %v1082, 0
    %v1127 = vsel %vm1098, %v1084, 0
    %v1130 = vsel %vm1098, %v1086, 0
    %1132 = vmatpush.msra.mxu0 %v787
    %1133 = vmatpush.msra.mxu0 %v764
    %1134 = vmatpush.msra.mxu0 %v741
    %1135 = vmatpush.msra.mxu0 %v718
    %1136 = vmatpush.msra.mxu0 %v695
    %1137 = vmatpush.msra.mxu0 %v672
    %1138 = vmatpush.msra.mxu0 %v649
    %1139 = vmatpush.msra.mxu0 %v626
    %1140 = vmatpush.msra.mxu0 %v603
    %1141 = vmatpush.msra.mxu0 %v580
    %1142 = vmatpush.msra.mxu0 %v557
    %1143 = vmatpush.msra.mxu0 %v534
    %1144 = vmatpush.msra.mxu0 %v511
    %1145 = vmatpush.msra.mxu0 %v488
    %1146 = vmatpush.msra.mxu0 %v465
    %1147 = vmatpush.msra.mxu0 %v442
    %1148 = vmatmul.f32.gmra.mxu0 %v1065
    %v1149 = vpop.f32.mrf.mxu0
    %v1150 = vadd.f32 %v1087, %v1149
    %1151 = vmatmul.f32.gmra.mxu0 %v1067
    %v1152 = vpop.f32.mrf.mxu0
    %v1153 = vadd.f32 %v1088, %v1152
    %1154 = vmatmul.f32.gmra.mxu0 %v1069
    %v1155 = vpop.f32.mrf.mxu0
    %v1156 = vadd.f32 %v1089, %v1155
    %1157 = vmatmul.f32.gmra.mxu0 %v1071
    %v1158 = vpop.f32.mrf.mxu0
    %v1159 = vadd.f32 %v1090, %v1158
    %1160 = vmatmul.f32.gmra.mxu0 %v1073
    %v1161 = vpop.f32.mrf.mxu0
    %v1162 = vadd.f32 %v1091, %v1161
    %1163 = vmatmul.f32.gmra.mxu0 %v1075
    %v1164 = vpop.f32.mrf.mxu0
    %v1165 = vadd.f32 %v1092, %v1164
    %1166 = vmatmul.f32.gmra.mxu0 %v1077
    %v1167 = vpop.f32.mrf.mxu0
    %v1168 = vadd.f32 %v1093, %v1167
    %1169 = vmatmul.f32.gmra.mxu0 %v1079
    %v1170 = vpop.f32.mrf.mxu0
    %v1171 = vadd.f32 %v1094, %v1170
    %1172 = vmatmul.f32.gmra.mxu0 %v1081
    %v1173 = vpop.f32.mrf.mxu0
    %v1174 = vadd.f32 %v1095, %v1173
    %1175 = vmatmul.f32.gmra.mxu0 %v1083
    %v1176 = vpop.f32.mrf.mxu0
    %v1177 = vadd.f32 %v1096, %v1176
    %1178 = vmatmul.f32.gmra.mxu0 %v1085
    %v1179 = vpop.f32.mrf.mxu0
    %v1180 = vadd.f32 %v1097, %v1179
    %1181 = vdwg.mxu0
    %1182 = vmatpush.msra.mxu0 0.0
    %1183 = vmatpush.msra.mxu0 0.0
    %1184 = vmatpush.msra.mxu0 0.0
    %1185 = vmatpush.msra.mxu0 0.0
    %1186 = vmatpush.msra.mxu0 %v1063
    %1187 = vmatpush.msra.mxu0 %v1040
    %1188 = vmatpush.msra.mxu0 %v1017
    %1189 = vmatpush.msra.mxu0 %v994
    %1190 = vmatpush.msra.mxu0 %v971
    %1191 = vmatpush.msra.mxu0 %v948
    %1192 = vmatpush.msra.mxu0 %v925
    %1193 = vmatpush.msra.mxu0 %v902
    %1194 = vmatpush.msra.mxu0 %v879
    %1195 = vmatpush.msra.mxu0 %v856
    %1196 = vmatpush.msra.mxu0 %v833
    %1197 = vmatpush.msra.mxu0 %v810
    %1198 = vmatmul.f32.gmra.mxu0 %v1100
    %v1199 = vpop.f32.mrf.mxu0
    %v1200 = vadd.f32 %v1150, %v1199
    %1201 = vmatmul.f32.gmra.mxu0 %v1103
    %v1202 = vpop.f32.mrf.mxu0
    %v1203 = vadd.f32 %v1153, %v1202
    %1204 = vmatmul.f32.gmra.mxu0 %v1106
    %v1205 = vpop.f32.mrf.mxu0
    %v1206 = vadd.f32 %v1156, %v1205
    %1207 = vmatmul.f32.gmra.mxu0 %v1109
    %v1208 = vpop.f32.mrf.mxu0
    %v1209 = vadd.f32 %v1159, %v1208
    %1210 = vmatmul.f32.gmra.mxu0 %v1112
    %v1211 = vpop.f32.mrf.mxu0
    %v1212 = vadd.f32 %v1162, %v1211
    %1213 = vmatmul.f32.gmra.mxu0 %v1115
    %v1214 = vpop.f32.mrf.mxu0
    %v1215 = vadd.f32 %v1165, %v1214
    %1216 = vmatmul.f32.gmra.mxu0 %v1118
    %v1217 = vpop.f32.mrf.mxu0
    %v1218 = vadd.f32 %v1168, %v1217
    %1219 = vmatmul.f32.gmra.mxu0 %v1121
    %v1220 = vpop.f32.mrf.mxu0
    %v1221 = vadd.f32 %v1171, %v1220
    %1222 = vmatmul.f32.gmra.mxu0 %v1124
    %v1223 = vpop.f32.mrf.mxu0
    %v1224 = vadd.f32 %v1174, %v1223
    %1225 = vmatmul.f32.gmra.mxu0 %v1127
    %v1226 = vpop.f32.mrf.mxu0
    %v1227 = vadd.f32 %v1177, %v1226
    %1228 = vmatmul.f32.gmra.mxu0 %v1130
    %v1229 = vpop.f32.mrf.mxu0
    %v1230 = vadd.f32 %v1180, %v1229
    %1231 = vdwg.mxu0
    %vm1232 = vcmp.ge.f32.partialorder %v1200, 0.0
    %vm1233 = vcmp.ge.f32.partialorder %v1203, 0.0
    %vm1234 = vcmp.ge.f32.partialorder %v1206, 0.0
    %vm1235 = vcmp.ge.f32.partialorder %v1209, 0.0
    %vm1236 = vcmp.ge.f32.partialorder %v1212, 0.0
    %vm1237 = vcmp.ge.f32.partialorder %v1215, 0.0
    %vm1238 = vcmp.ge.f32.partialorder %v1218, 0.0
    %vm1239 = vcmp.ge.f32.partialorder %v1221, 0.0
    %vm1240 = vcmp.ge.f32.partialorder %v1224, 0.0
    %vm1241 = vcmp.ge.f32.partialorder %v1227, 0.0
    %vm1242 = vcmp.ge.f32.partialorder %v1230, 0.0
    %v1243 = vmul.f32 %v1200, 0.01
    %v1244 = vmul.f32 %v1203, 0.01
    %v1245 = vmul.f32 %v1206, 0.01
    %v1246 = vmul.f32 %v1209, 0.01
    %v1247 = vmul.f32 %v1212, 0.01
    %v1248 = vmul.f32 %v1215, 0.01
    %v1249 = vmul.f32 %v1218, 0.01
    %v1250 = vmul.f32 %v1221, 0.01
    %v1251 = vmul.f32 %v1224, 0.01
    %v1252 = vmul.f32 %v1227, 0.01
    %v1253 = vmul.f32 %v1230, 0.01
    %v1254 = vsel %vm1232, %v1200, %v1243
    %v1255 = vsel %vm1233, %v1203, %v1244
    %v1256 = vsel %vm1234, %v1206, %v1245
    %v1257 = vsel %vm1235, %v1209, %v1246
    %v1258 = vsel %vm1236, %v1212, %v1247
    %v1259 = vsel %vm1237, %v1215, %v1248
    %v1260 = vsel %vm1238, %v1218, %v1249
    %v1261 = vsel %vm1239, %v1221, %v1250
    %v1262 = vsel %vm1240, %v1224, %v1251
    %v1263 = vsel %vm1241, %v1227, %v1252
    %v1264 = vsel %vm1242, %v1230, %v1253
    %v1265 = vsel %vm420, %v1254, 0.0
    %1266 = vadd.xlane.f32.xlu0 %v1265
    %v1267 = vpop.xlane.xlu0 %1266
    %v1268 = vsel %vm420, %v1255, 0.0
    %1269 = vadd.xlane.f32.xlu0 %v1268
    %v1270 = vpop.xlane.xlu0 %1269
    %v1271 = vsel %vm420, %v1256, 0.0
    %1272 = vadd.xlane.f32.xlu0 %v1271
    %v1273 = vpop.xlane.xlu0 %1272
    %v1274 = vsel %vm420, %v1257, 0.0
    %1275 = vadd.xlane.f32.xlu0 %v1274
    %v1276 = vpop.xlane.xlu0 %1275
    %v1277 = vsel %vm420, %v1258, 0.0
    %1278 = vadd.xlane.f32.xlu0 %v1277
    %v1279 = vpop.xlane.xlu0 %1278
    %v1280 = vsel %vm420, %v1259, 0.0
    %1281 = vadd.xlane.f32.xlu0 %v1280
    %v1282 = vpop.xlane.xlu0 %1281
    %v1283 = vsel %vm420, %v1260, 0.0
    %1284 = vadd.xlane.f32.xlu0 %v1283
    %v1285 = vpop.xlane.xlu0 %1284
    %v1286 = vsel %vm420, %v1261, 0.0
    %1287 = vadd.xlane.f32.xlu0 %v1286
    %v1288 = vpop.xlane.xlu0 %1287
    %v1289 = vsel %vm420, %v1262, 0.0
    %1290 = vadd.xlane.f32.xlu0 %v1289
    %v1291 = vpop.xlane.xlu0 %1290
    %v1292 = vsel %vm420, %v1263, 0.0
    %1293 = vadd.xlane.f32.xlu0 %v1292
    %v1294 = vpop.xlane.xlu0 %1293
    %v1295 = vsel %vm420, %v1264, 0.0
    %1296 = vadd.xlane.f32.xlu0 %v1295
    %v1297 = vpop.xlane.xlu0 %1296
    %v1298 = vrcp.pop 32.0
    %v1299 = vmul.f32 32.0, %v1298
    %v1300 = vsub.f32 1.0, %v1299
    %v1301 = vmul.f32 %v1298, %v1300
    %v1302 = vadd.f32 %v1298, %v1301
    %vm1303 = vweird.f32 %v1298
    %v1304 = vsel %vm1303, %v1298, %v1302
    %v1305 = vmul.f32 %v1267, %v1304
    %v1306 = vmul.f32 %v1270, %v1304
    %v1307 = vmul.f32 %v1273, %v1304
    %v1308 = vmul.f32 %v1276, %v1304
    %v1309 = vmul.f32 %v1279, %v1304
    %v1310 = vmul.f32 %v1282, %v1304
    %v1311 = vmul.f32 %v1285, %v1304
    %v1312 = vmul.f32 %v1288, %v1304
    %v1313 = vmul.f32 %v1291, %v1304
    %v1314 = vmul.f32 %v1294, %v1304
    %v1315 = vmul.f32 %v1297, %v1304
    %v1316 = vsub.f32 %v1254, %v1305
    %v1317 = vsub.f32 %v1255, %v1306
    %v1318 = vsub.f32 %v1256, %v1307
    %v1319 = vsub.f32 %v1257, %v1308
    %v1320 = vsub.f32 %v1258, %v1309
    %v1321 = vsub.f32 %v1259, %v1310
    %v1322 = vsub.f32 %v1260, %v1311
    %v1323 = vsub.f32 %v1261, %v1312
    %v1324 = vsub.f32 %v1262, %v1313
    %v1325 = vsub.f32 %v1263, %v1314
    %v1326 = vsub.f32 %v1264, %v1315
    %v1327 = vmul.f32 %v1316, %v1316
    %v1328 = vmul.f32 %v1317, %v1317
    %v1329 = vmul.f32 %v1318, %v1318
    %v1330 = vmul.f32 %v1319, %v1319
    %v1331 = vmul.f32 %v1320, %v1320
    %v1332 = vmul.f32 %v1321, %v1321
    %v1333 = vmul.f32 %v1322, %v1322
    %v1334 = vmul.f32 %v1323, %v1323
    %v1335 = vmul.f32 %v1324, %v1324
    %v1336 = vmul.f32 %v1325, %v1325
    %v1337 = vmul.f32 %v1326, %v1326
    %v1338 = vsel %vm420, %v1327, 0.0
    %1339 = vadd.xlane.f32.xlu0 %v1338
    %v1340 = vpop.xlane.xlu0 %1339
    %v1341 = vsel %vm420, %v1328, 0.0
    %1342 = vadd.xlane.f32.xlu0 %v1341
    %v1343 = vpop.xlane.xlu0 %1342
    %v1344 = vsel %vm420, %v1329, 0.0
    %1345 = vadd.xlane.f32.xlu0 %v1344
    %v1346 = vpop.xlane.xlu0 %1345
    %v1347 = vsel %vm420, %v1330, 0.0
    %1348 = vadd.xlane.f32.xlu0 %v1347
    %v1349 = vpop.xlane.xlu0 %1348
    %v1350 = vsel %vm420, %v1331, 0.0
    %1351 = vadd.xlane.f32.xlu0 %v1350
    %v1352 = vpop.xlane.xlu0 %1351
    %v1353 = vsel %vm420, %v1332, 0.0
    %1354 = vadd.xlane.f32.xlu0 %v1353
    %v1355 = vpop.xlane.xlu0 %1354
    %v1356 = vsel %vm420, %v1333, 0.0
    %1357 = vadd.xlane.f32.xlu0 %v1356
    %v1358 = vpop.xlane.xlu0 %1357
    %v1359 = vsel %vm420, %v1334, 0.0
    %1360 = vadd.xlane.f32.xlu0 %v1359
    %v1361 = vpop.xlane.xlu0 %1360
    %v1362 = vsel %vm420, %v1335, 0.0
    %1363 = vadd.xlane.f32.xlu0 %v1362
    %v1364 = vpop.xlane.xlu0 %1363
    %v1365 = vsel %vm420, %v1336, 0.0
    %1366 = vadd.xlane.f32.xlu0 %v1365
    %v1367 = vpop.xlane.xlu0 %1366
    %v1368 = vsel %vm420, %v1337, 0.0
    %1369 = vadd.xlane.f32.xlu0 %v1368
    %v1370 = vpop.xlane.xlu0 %1369
    %v1371 = vmul.f32 %v1340, %v1304
    %v1372 = vmul.f32 %v1343, %v1304
    %v1373 = vmul.f32 %v1346, %v1304
    %v1374 = vmul.f32 %v1349, %v1304
    %v1375 = vmul.f32 %v1352, %v1304
    %v1376 = vmul.f32 %v1355, %v1304
    %v1377 = vmul.f32 %v1358, %v1304
    %v1378 = vmul.f32 %v1361, %v1304
    %v1379 = vmul.f32 %v1364, %v1304
    %v1380 = vmul.f32 %v1367, %v1304
    %v1381 = vmul.f32 %v1370, %v1304
    %v1382 = vadd.f32 %v1371, 1e-05
    %v1383 = vadd.f32 %v1372, 1e-05
    %v1384 = vadd.f32 %v1373, 1e-05
    %v1385 = vadd.f32 %v1374, 1e-05
    %v1386 = vadd.f32 %v1375, 1e-05
    %v1387 = vadd.f32 %v1376, 1e-05
    %v1388 = vadd.f32 %v1377, 1e-05
    %v1389 = vadd.f32 %v1378, 1e-05
    %v1390 = vadd.f32 %v1379, 1e-05
    %v1391 = vadd.f32 %v1380, 1e-05
    %v1392 = vadd.f32 %v1381, 1e-05
    %v1393 = vrsqrt.pop %v1382
    %v1394 = vmul.f32 %v1393, %v1382
    %v1395 = vmul.f32 %v1394, %v1393
    %v1396 = vmul.f32 0.5, %v1395
    %v1397 = vsub.f32 1.5, %v1396
    %v1398 = vmul.f32 %v1393, %v1397
    %vm1399 = vweird.f32 %v1382
    %vm1400 = vweird.f32 %v1393
    %vm1401 = vmor %vm1399, %vm1400
    %v1402 = vsel %vm1401, %v1393, %v1398
    %v1403 = vrsqrt.pop %v1383
    %v1404 = vmul.f32 %v1403, %v1383
    %v1405 = vmul.f32 %v1404, %v1403
    %v1406 = vmul.f32 0.5, %v1405
    %v1407 = vsub.f32 1.5, %v1406
    %v1408 = vmul.f32 %v1403, %v1407
    %vm1409 = vweird.f32 %v1383
    %vm1410 = vweird.f32 %v1403
    %vm1411 = vmor %vm1409, %vm1410
    %v1412 = vsel %vm1411, %v1403, %v1408
    %v1413 = vrsqrt.pop %v1384
    %v1414 = vmul.f32 %v1413, %v1384
    %v1415 = vmul.f32 %v1414, %v1413
    %v1416 = vmul.f32 0.5, %v1415
    %v1417 = vsub.f32 1.5, %v1416
    %v1418 = vmul.f32 %v1413, %v1417
    %vm1419 = vweird.f32 %v1384
    %vm1420 = vweird.f32 %v1413
    %vm1421 = vmor %vm1419, %vm1420
    %v1422 = vsel %vm1421, %v1413, %v1418
    %v1423 = vrsqrt.pop %v1385
    %v1424 = vmul.f32 %v1423, %v1385
    %v1425 = vmul.f32 %v1424, %v1423
    %v1426 = vmul.f32 0.5, %v1425
    %v1427 = vsub.f32 1.5, %v1426
    %v1428 = vmul.f32 %v1423, %v1427
    %vm1429 = vweird.f32 %v1385
    %vm1430 = vweird.f32 %v1423
    %vm1431 = vmor %vm1429, %vm1430
    %v1432 = vsel %vm1431, %v1423, %v1428
    %v1433 = vrsqrt.pop %v1386
    %v1434 = vmul.f32 %v1433, %v1386
    %v1435 = vmul.f32 %v1434, %v1433
    %v1436 = vmul.f32 0.5, %v1435
    %v1437 = vsub.f32 1.5, %v1436
    %v1438 = vmul.f32 %v1433, %v1437
    %vm1439 = vweird.f32 %v1386
    %vm1440 = vweird.f32 %v1433
    %vm1441 = vmor %vm1439, %vm1440
    %v1442 = vsel %vm1441, %v1433, %v1438
    %v1443 = vrsqrt.pop %v1387
    %v1444 = vmul.f32 %v1443, %v1387
    %v1445 = vmul.f32 %v1444, %v1443
    %v1446 = vmul.f32 0.5, %v1445
    %v1447 = vsub.f32 1.5, %v1446
    %v1448 = vmul.f32 %v1443, %v1447
    %vm1449 = vweird.f32 %v1387
    %vm1450 = vweird.f32 %v1443
    %vm1451 = vmor %vm1449, %vm1450
    %v1452 = vsel %vm1451, %v1443, %v1448
    %v1453 = vrsqrt.pop %v1388
    %v1454 = vmul.f32 %v1453, %v1388
    %v1455 = vmul.f32 %v1454, %v1453
    %v1456 = vmul.f32 0.5, %v1455
    %v1457 = vsub.f32 1.5, %v1456
    %v1458 = vmul.f32 %v1453, %v1457
    %vm1459 = vweird.f32 %v1388
    %vm1460 = vweird.f32 %v1453
    %vm1461 = vmor %vm1459, %vm1460
    %v1462 = vsel %vm1461, %v1453, %v1458
    %v1463 = vrsqrt.pop %v1389
    %v1464 = vmul.f32 %v1463, %v1389
    %v1465 = vmul.f32 %v1464, %v1463
    %v1466 = vmul.f32 0.5, %v1465
    %v1467 = vsub.f32 1.5, %v1466
    %v1468 = vmul.f32 %v1463, %v1467
    %vm1469 = vweird.f32 %v1389
    %vm1470 = vweird.f32 %v1463
    %vm1471 = vmor %vm1469, %vm1470
    %v1472 = vsel %vm1471, %v1463, %v1468
    %v1473 = vrsqrt.pop %v1390
    %v1474 = vmul.f32 %v1473, %v1390
    %v1475 = vmul.f32 %v1474, %v1473
    %v1476 = vmul.f32 0.5, %v1475
    %v1477 = vsub.f32 1.5, %v1476
    %v1478 = vmul.f32 %v1473, %v1477
    %vm1479 = vweird.f32 %v1390
    %vm1480 = vweird.f32 %v1473
    %vm1481 = vmor %vm1479, %vm1480
    %v1482 = vsel %vm1481, %v1473, %v1478
    %v1483 = vrsqrt.pop %v1391
    %v1484 = vmul.f32 %v1483, %v1391
    %v1485 = vmul.f32 %v1484, %v1483
    %v1486 = vmul.f32 0.5, %v1485
    %v1487 = vsub.f32 1.5, %v1486
    %v1488 = vmul.f32 %v1483, %v1487
    %vm1489 = vweird.f32 %v1391
    %vm1490 = vweird.f32 %v1483
    %vm1491 = vmor %vm1489, %vm1490
    %v1492 = vsel %vm1491, %v1483, %v1488
    %v1493 = vrsqrt.pop %v1392
    %v1494 = vmul.f32 %v1493, %v1392
    %v1495 = vmul.f32 %v1494, %v1493
    %v1496 = vmul.f32 0.5, %v1495
    %v1497 = vsub.f32 1.5, %v1496
    %v1498 = vmul.f32 %v1493, %v1497
    %vm1499 = vweird.f32 %v1392
    %vm1500 = vweird.f32 %v1493
    %vm1501 = vmor %vm1499, %vm1500
    %v1502 = vsel %vm1501, %v1493, %v1498
    %v1503 = vmul.f32 %v1316, %v1402
    %v1504 = vmul.f32 %v1317, %v1412
    %v1505 = vmul.f32 %v1318, %v1422
    %v1506 = vmul.f32 %v1319, %v1432
    %v1507 = vmul.f32 %v1320, %v1442
    %v1508 = vmul.f32 %v1321, %v1452
    %v1509 = vmul.f32 %v1322, %v1462
    %v1510 = vmul.f32 %v1323, %v1472
    %v1511 = vmul.f32 %v1324, %v1482
    %v1512 = vmul.f32 %v1325, %v1492
    %v1513 = vmul.f32 %v1326, %v1502
    %v1514 = vld [vmem:[%s5] sm:$0xff]
    %v1515 = vld [vmem:[%s5 + $0x8] sm:$0xff]
    %v1516 = vld [vmem:[%s5 + $0x10] sm:$0xff]
    %v1517 = vld [vmem:[%s5 + $0x18] sm:$0xff]
    %v1518 = vld [vmem:[%s5 + $0x20] sm:$0xff]
    %v1519 = vld [vmem:[%s5 + $0x28] sm:$0xff]
    %v1520 = vld [vmem:[%s5 + $0x30] sm:$0xff]
    %v1521 = vld [vmem:[%s5 + $0x38] sm:$0xff]
    %v1522 = vld [vmem:[%s5 + $0x40] sm:$0xff]
    %v1523 = vld [vmem:[%s5 + $0x48] sm:$0xff]
    %v1524 = vld [vmem:[%s5 + $0x50] sm:$0xff]
    %v1525 = vmul.f32 %v1503, %v1514
    %v1526 = vmul.f32 %v1504, %v1515
    %v1527 = vmul.f32 %v1505, %v1516
    %v1528 = vmul.f32 %v1506, %v1517
    %v1529 = vmul.f32 %v1507, %v1518
    %v1530 = vmul.f32 %v1508, %v1519
    %v1531 = vmul.f32 %v1509, %v1520
    %v1532 = vmul.f32 %v1510, %v1521
    %v1533 = vmul.f32 %v1511, %v1522
    %v1534 = vmul.f32 %v1512, %v1523
    %v1535 = vmul.f32 %v1513, %v1524
    %v1536 = vld [vmem:[%s6] sm:$0xff]
    %v1537 = vld [vmem:[%s6 + $0x8] sm:$0xff]
    %v1538 = vld [vmem:[%s6 + $0x10] sm:$0xff]
    %v1539 = vld [vmem:[%s6 + $0x18] sm:$0xff]
    %v1540 = vld [vmem:[%s6 + $0x20] sm:$0xff]
    %v1541 = vld [vmem:[%s6 + $0x28] sm:$0xff]
    %v1542 = vld [vmem:[%s6 + $0x30] sm:$0xff]
    %v1543 = vld [vmem:[%s6 + $0x38] sm:$0xff]
    %v1544 = vld [vmem:[%s6 + $0x40] sm:$0xff]
    %v1545 = vld [vmem:[%s6 + $0x48] sm:$0xff]
    %v1546 = vld [vmem:[%s6 + $0x50] sm:$0xff]
    %v1547 = vadd.f32 %v1525, %v1536
    %v1548 = vadd.f32 %v1526, %v1537
    %v1549 = vadd.f32 %v1527, %v1538
    %v1550 = vadd.f32 %v1528, %v1539
    %v1551 = vadd.f32 %v1529, %v1540
    %v1552 = vadd.f32 %v1530, %v1541
    %v1553 = vadd.f32 %v1531, %v1542
    %v1554 = vadd.f32 %v1532, %v1543
    %v1555 = vadd.f32 %v1533, %v1544
    %v1556 = vadd.f32 %v1534, %v1545
    %v1557 = vadd.f32 %v1535, %v1546
    %v1558 = vld [vmem:[%s1] sm:$0xff]
    %v1559 = vld [vmem:[%s1 + $0x8] sm:$0xff]
    %v1560 = vld [vmem:[%s1 + $0x10] sm:$0xff]
    %v1561 = vld [vmem:[%s1 + $0x18] sm:$0xff]
    %v1562 = vld [vmem:[%s1 + $0x20] sm:$0xff]
    %v1563 = vld [vmem:[%s1 + $0x28] sm:$0xff]
    %v1564 = vld [vmem:[%s1 + $0x30] sm:$0xff]
    %v1565 = vld [vmem:[%s1 + $0x38] sm:$0xff]
    %v1566 = vld [vmem:[%s1 + $0x40] sm:$0xff]
    %v1567 = vld [vmem:[%s1 + $0x48] sm:$0xff]
    %v1568 = vld [vmem:[%s1 + $0x50] sm:$0xff]
    %v1569 = vld [vmem:[%s1 + $0x58] sm:$0xff]
    %v1570 = vld [vmem:[%s1 + $0x60] sm:$0xff]
    %v1571 = vld [vmem:[%s1 + $0x68] sm:$0xff]
    %v1572 = vld [vmem:[%s1 + $0x70] sm:$0xff]
    %v1573 = vld [vmem:[%s1 + $0x78] sm:$0xff]
    %v1574 = vld [vmem:[%s1 + $0x80] sm:$0xff]
    %v1575 = vld [vmem:[%s1 + $0x88] sm:$0xff]
    %v1576 = vld [vmem:[%s1 + $0x90] sm:$0xff]
    %v1577 = vld [vmem:[%s1 + $0x98] sm:$0xff]
    %v1578 = vld [vmem:[%s1 + $0xa0] sm:$0xff]
    %v1579 = vld [vmem:[%s1 + $0xa8] sm:$0xff]
    %v1580 = vld [vmem:[%s1 + $0xb0] sm:$0xff]
    %v1581 = vld [vmem:[%s1 + $0xb8] sm:$0xff]
    %v1582 = vld [vmem:[%s1 + $0xc0] sm:$0xff]
    %v1583 = vld [vmem:[%s1 + $0xc8] sm:$0xff]
    %v1584 = vld [vmem:[%s1 + $0xd0] sm:$0xff]
    %v1585 = vld [vmem:[%s1 + $0xd8] sm:$0xff]
    %v1587 = vsel %vm122, %v1558, 0
    %v1590 = vsel %vm122, %v1559, 0
    %v1593 = vsel %vm122, %v1560, 0
    %v1596 = vsel %vm122, %v1561, 0
    %v1599 = vsel %vm122, %v1562, 0
    %v1602 = vsel %vm122, %v1563, 0
    %v1605 = vsel %vm122, %v1564, 0
    %v1608 = vsel %vm122, %v1565, 0
    %v1611 = vsel %vm122, %v1566, 0
    %v1614 = vsel %vm122, %v1567, 0
    %v1617 = vsel %vm122, %v1568, 0
    %v1620 = vsel %vm122, %v1569, 0
    %v1623 = vsel %vm122, %v1570, 0
    %v1626 = vsel %vm122, %v1571, 0
    %v1629 = vsel %vm122, %v1572, 0
    %v1632 = vsel %vm122, %v1573, 0
    %v1635 = vsel %vm122, %v1574, 0
    %v1638 = vsel %vm122, %v1575, 0
    %v1641 = vsel %vm122, %v1576, 0
    %v1644 = vsel %vm122, %v1577, 0
    %v1647 = vsel %vm122, %v1578, 0
    %v1650 = vsel %vm122, %v1579, 0
    %v1653 = vsel %vm122, %v1580, 0
    %v1656 = vsel %vm122, %v1581, 0
    %v1659 = vsel %vm122, %v1582, 0
    %v1662 = vsel %vm122, %v1583, 0
    %v1665 = vsel %vm122, %v1584, 0
    %v1668 = vsel %vm122, %v1585, 0
    %1670 = vmatpush.msra.mxu0 0.0
    %1671 = vmatpush.msra.mxu0 0.0
    %1672 = vmatpush.msra.mxu0 0.0
    %1673 = vmatpush.msra.mxu0 0.0
    %1674 = vmatpush.msra.mxu0 0.0
    %1675 = vmatpush.msra.mxu0 %v1557
    %1676 = vmatpush.msra.mxu0 %v1556
    %1677 = vmatpush.msra.mxu0 %v1555
    %1678 = vmatpush.msra.mxu0 %v1554
    %1679 = vmatpush.msra.mxu0 %v1553
    %1680 = vmatpush.msra.mxu0 %v1552
    %1681 = vmatpush.msra.mxu0 %v1551
    %1682 = vmatpush.msra.mxu0 %v1550
    %1683 = vmatpush.msra.mxu0 %v1549
    %1684 = vmatpush.msra.mxu0 %v1548
    %1685 = vmatpush.msra.mxu0 %v1547
    %1686 = vmatmul.f32.gmra.mxu0 %v1587
    %v1687 = vpop.f32.mrf.mxu0
    %v1688 = vadd.f32 0.0, %v1687
    %1689 = vmatmul.f32.gmra.mxu0 %v1590
    %v1690 = vpop.f32.mrf.mxu0
    %v1691 = vadd.f32 0.0, %v1690
    %1692 = vmatmul.f32.gmra.mxu0 %v1593
    %v1693 = vpop.f32.mrf.mxu0
    %v1694 = vadd.f32 0.0, %v1693
    %1695 = vmatmul.f32.gmra.mxu0 %v1596
    %v1696 = vpop.f32.mrf.mxu0
    %v1697 = vadd.f32 0.0, %v1696
    %1698 = vmatmul.f32.gmra.mxu0 %v1599
    %v1699 = vpop.f32.mrf.mxu0
    %v1700 = vadd.f32 0.0, %v1699
    %1701 = vmatmul.f32.gmra.mxu0 %v1602
    %v1702 = vpop.f32.mrf.mxu0
    %v1703 = vadd.f32 0.0, %v1702
    %1704 = vmatmul.f32.gmra.mxu0 %v1605
    %v1705 = vpop.f32.mrf.mxu0
    %v1706 = vadd.f32 0.0, %v1705
    %1707 = vmatmul.f32.gmra.mxu0 %v1608
    %v1708 = vpop.f32.mrf.mxu0
    %v1709 = vadd.f32 0.0, %v1708
    %1710 = vmatmul.f32.gmra.mxu0 %v1611
    %v1711 = vpop.f32.mrf.mxu0
    %v1712 = vadd.f32 0.0, %v1711
    %1713 = vmatmul.f32.gmra.mxu0 %v1614
    %v1714 = vpop.f32.mrf.mxu0
    %v1715 = vadd.f32 0.0, %v1714
    %1716 = vmatmul.f32.gmra.mxu0 %v1617
    %v1717 = vpop.f32.mrf.mxu0
    %v1718 = vadd.f32 0.0, %v1717
    %1719 = vmatmul.f32.gmra.mxu0 %v1620
    %v1720 = vpop.f32.mrf.mxu0
    %v1721 = vadd.f32 0.0, %v1720
    %1722 = vmatmul.f32.gmra.mxu0 %v1623
    %v1723 = vpop.f32.mrf.mxu0
    %v1724 = vadd.f32 0.0, %v1723
    %1725 = vmatmul.f32.gmra.mxu0 %v1626
    %v1726 = vpop.f32.mrf.mxu0
    %v1727 = vadd.f32 0.0, %v1726
    %1728 = vmatmul.f32.gmra.mxu0 %v1629
    %v1729 = vpop.f32.mrf.mxu0
    %v1730 = vadd.f32 0.0, %v1729
    %1731 = vmatmul.f32.gmra.mxu0 %v1632
    %v1732 = vpop.f32.mrf.mxu0
    %v1733 = vadd.f32 0.0, %v1732
    %1734 = vmatmul.f32.gmra.mxu0 %v1635
    %v1735 = vpop.f32.mrf.mxu0
    %v1736 = vadd.f32 0.0, %v1735
    %1737 = vmatmul.f32.gmra.mxu0 %v1638
    %v1738 = vpop.f32.mrf.mxu0
    %v1739 = vadd.f32 0.0, %v1738
    %1740 = vmatmul.f32.gmra.mxu0 %v1641
    %v1741 = vpop.f32.mrf.mxu0
    %v1742 = vadd.f32 0.0, %v1741
    %1743 = vmatmul.f32.gmra.mxu0 %v1644
    %v1744 = vpop.f32.mrf.mxu0
    %v1745 = vadd.f32 0.0, %v1744
    %1746 = vmatmul.f32.gmra.mxu0 %v1647
    %v1747 = vpop.f32.mrf.mxu0
    %v1748 = vadd.f32 0.0, %v1747
    %1749 = vmatmul.f32.gmra.mxu0 %v1650
    %v1750 = vpop.f32.mrf.mxu0
    %v1751 = vadd.f32 0.0, %v1750
    %1752 = vmatmul.f32.gmra.mxu0 %v1653
    %v1753 = vpop.f32.mrf.mxu0
    %v1754 = vadd.f32 0.0, %v1753
    %1755 = vmatmul.f32.gmra.mxu0 %v1656
    %v1756 = vpop.f32.mrf.mxu0
    %v1757 = vadd.f32 0.0, %v1756
    %1758 = vmatmul.f32.gmra.mxu0 %v1659
    %v1759 = vpop.f32.mrf.mxu0
    %v1760 = vadd.f32 0.0, %v1759
    %1761 = vmatmul.f32.gmra.mxu0 %v1662
    %v1762 = vpop.f32.mrf.mxu0
    %v1763 = vadd.f32 0.0, %v1762
    %1764 = vmatmul.f32.gmra.mxu0 %v1665
    %v1765 = vpop.f32.mrf.mxu0
    %v1766 = vadd.f32 0.0, %v1765
    %1767 = vmatmul.f32.gmra.mxu0 %v1668
    %v1768 = vpop.f32.mrf.mxu0
    %v1769 = vadd.f32 0.0, %v1768
    %1770 = vdwg.mxu0
    %s1771 = scalar_lea.vmem [#allocation6], 896
    %v1772 = vld [vmem:[%s1771] sm:$0xff]
    %v1773 = vld [vmem:[%s1771 + $0x8] sm:$0xff]
    %v1774 = vld [vmem:[%s1771 + $0x10] sm:$0xff]
    %v1775 = vld [vmem:[%s1771 + $0x18] sm:$0xff]
    %v1776 = vld [vmem:[%s1771 + $0x20] sm:$0xff]
    %v1777 = vld [vmem:[%s1771 + $0x28] sm:$0xff]
    %v1778 = vld [vmem:[%s1771 + $0x30] sm:$0xff]
    %v1779 = vld [vmem:[%s1771 + $0x38] sm:$0xff]
    %v1780 = vld [vmem:[%s1771 + $0x40] sm:$0xff]
    %v1781 = vld [vmem:[%s1771 + $0x48] sm:$0xff]
    %v1782 = vld [vmem:[%s1771 + $0x50] sm:$0xff]
    %v1783 = vld [vmem:[%s1771 + $0x58] sm:$0xff]
    %v1784 = vld [vmem:[%s1771 + $0x60] sm:$0xff]
    %v1785 = vld [vmem:[%s1771 + $0x68] sm:$0xff]
    %v1786 = vld [vmem:[%s1771 + $0x70] sm:$0xff]
    %v1787 = vld [vmem:[%s1771 + $0x78] sm:$0xff]
    %v1788 = vld [vmem:[%s1771 + $0x80] sm:$0xff]
    %v1789 = vld [vmem:[%s1771 + $0x88] sm:$0xff]
    %v1790 = vld [vmem:[%s1771 + $0x90] sm:$0xff]
    %v1791 = vld [vmem:[%s1771 + $0x98] sm:$0xff]
    %v1792 = vld [vmem:[%s1771 + $0xa0] sm:$0xff]
    %v1793 = vld [vmem:[%s1771 + $0xa8] sm:$0xff]
    %v1794 = vld [vmem:[%s1771 + $0xb0] sm:$0xff]
    %v1795 = vld [vmem:[%s1771 + $0xb8] sm:$0xff]
    %v1796 = vld [vmem:[%s1771 + $0xc0] sm:$0xff]
    %v1797 = vld [vmem:[%s1771 + $0xc8] sm:$0xff]
    %v1798 = vld [vmem:[%s1771 + $0xd0] sm:$0xff]
    %v1799 = vld [vmem:[%s1771 + $0xd8] sm:$0xff]
    %v1800 = vld [vmem:[%s1771 + $0xe0] sm:$0xff]
    %v1801 = vld [vmem:[%s1771 + $0xe8] sm:$0xff]
    %v1802 = vld [vmem:[%s1771 + $0xf0] sm:$0xff]
    %v1803 = vld [vmem:[%s1771 + $0xf8] sm:$0xff]
    %v1804 = vld [vmem:[%s1771 + $0x100] sm:$0xff]
    %v1805 = vld [vmem:[%s1771 + $0x108] sm:$0xff]
    %v1806 = vld [vmem:[%s1771 + $0x110] sm:$0xff]
    %v1807 = vld [vmem:[%s1771 + $0x118] sm:$0xff]
    %v1808 = vld [vmem:[%s1771 + $0x120] sm:$0xff]
    %v1809 = vld [vmem:[%s1771 + $0x128] sm:$0xff]
    %v1810 = vld [vmem:[%s1771 + $0x130] sm:$0xff]
    %v1811 = vld [vmem:[%s1771 + $0x138] sm:$0xff]
    %v1812 = vld [vmem:[%s1771 + $0x140] sm:$0xff]
    %v1813 = vld [vmem:[%s1771 + $0x148] sm:$0xff]
    %v1814 = vld [vmem:[%s1771 + $0x150] sm:$0xff]
    %v1815 = vld [vmem:[%s1771 + $0x158] sm:$0xff]
    %v1816 = vld [vmem:[%s1771 + $0x160] sm:$0xff]
    %v1817 = vld [vmem:[%s1771 + $0x168] sm:$0xff]
    %v1818 = vld [vmem:[%s1771 + $0x170] sm:$0xff]
    %v1819 = vld [vmem:[%s1771 + $0x178] sm:$0xff]
    %v1820 = vld [vmem:[%s1771 + $0x180] sm:$0xff]
    %v1821 = vld [vmem:[%s1771 + $0x188] sm:$0xff]
    %v1822 = vld [vmem:[%s1771 + $0x190] sm:$0xff]
    %v1823 = vld [vmem:[%s1771 + $0x198] sm:$0xff]
    %v1824 = vld [vmem:[%s1771 + $0x1a0] sm:$0xff]
    %v1825 = vld [vmem:[%s1771 + $0x1a8] sm:$0xff]
    %v1826 = vld [vmem:[%s1771 + $0x1b0] sm:$0xff]
    %v1827 = vld [vmem:[%s1771 + $0x1b8] sm:$0xff]
    %v1828 = vld [vmem:[%s1771 + $0x1c0] sm:$0xff]
    %v1829 = vld [vmem:[%s1771 + $0x1c8] sm:$0xff]
    %v1830 = vld [vmem:[%s1771 + $0x1d0] sm:$0xff]
    %v1831 = vld [vmem:[%s1771 + $0x1d8] sm:$0xff]
    %v1832 = vld [vmem:[%s1771 + $0x1e0] sm:$0xff]
    %v1833 = vld [vmem:[%s1771 + $0x1e8] sm:$0xff]
    %v1834 = vld [vmem:[%s1771 + $0x1f0] sm:$0xff]
    %v1835 = vld [vmem:[%s1771 + $0x1f8] sm:$0xff]
    %v1836 = vld [vmem:[%s1771 + $0x200] sm:$0xff]
    %v1837 = vld [vmem:[%s1771 + $0x208] sm:$0xff]
    %v1838 = vld [vmem:[%s1771 + $0x210] sm:$0xff]
    %v1839 = vld [vmem:[%s1771 + $0x218] sm:$0xff]
    %v1840 = vld [vmem:[%s1771 + $0x220] sm:$0xff]
    %v1841 = vld [vmem:[%s1771 + $0x228] sm:$0xff]
    %v1842 = vld [vmem:[%s1771 + $0x230] sm:$0xff]
    %v1843 = vld [vmem:[%s1771 + $0x238] sm:$0xff]
    %v1844 = vld [vmem:[%s1771 + $0x240] sm:$0xff]
    %v1845 = vld [vmem:[%s1771 + $0x248] sm:$0xff]
    %v1846 = vld [vmem:[%s1771 + $0x250] sm:$0xff]
    %v1847 = vld [vmem:[%s1771 + $0x258] sm:$0xff]
    %v1848 = vld [vmem:[%s1771 + $0x260] sm:$0xff]
    %v1849 = vld [vmem:[%s1771 + $0x268] sm:$0xff]
    %v1850 = vld [vmem:[%s1771 + $0x270] sm:$0xff]
    %v1851 = vld [vmem:[%s1771 + $0x278] sm:$0xff]
    %v1852 = vld [vmem:[%s1771 + $0x280] sm:$0xff]
    %v1853 = vld [vmem:[%s1771 + $0x288] sm:$0xff]
    %v1854 = vld [vmem:[%s1771 + $0x290] sm:$0xff]
    %v1855 = vld [vmem:[%s1771 + $0x298] sm:$0xff]
    %v1856 = vld [vmem:[%s1771 + $0x2a0] sm:$0xff]
    %v1857 = vld [vmem:[%s1771 + $0x2a8] sm:$0xff]
    %v1858 = vld [vmem:[%s1771 + $0x2b0] sm:$0xff]
    %v1859 = vld [vmem:[%s1771 + $0x2b8] sm:$0xff]
    %v1860 = vld [vmem:[%s1771 + $0x2c0] sm:$0xff]
    %v1861 = vld [vmem:[%s1771 + $0x2c8] sm:$0xff]
    %v1862 = vld [vmem:[%s1771 + $0x2d0] sm:$0xff]
    %v1863 = vld [vmem:[%s1771 + $0x2d8] sm:$0xff]
    %v1864 = vld [vmem:[%s1771 + $0x2e0] sm:$0xff]
    %v1865 = vld [vmem:[%s1771 + $0x2e8] sm:$0xff]
    %v1866 = vld [vmem:[%s1771 + $0x2f0] sm:$0xff]
    %v1867 = vld [vmem:[%s1771 + $0x2f8] sm:$0xff]
    %v1868 = vld [vmem:[%s1771 + $0x300] sm:$0xff]
    %v1869 = vld [vmem:[%s1771 + $0x308] sm:$0xff]
    %v1870 = vld [vmem:[%s1771 + $0x310] sm:$0xff]
    %v1871 = vld [vmem:[%s1771 + $0x318] sm:$0xff]
    %v1872 = vld [vmem:[%s1771 + $0x320] sm:$0xff]
    %v1873 = vld [vmem:[%s1771 + $0x328] sm:$0xff]
    %v1874 = vld [vmem:[%s1771 + $0x330] sm:$0xff]
    %v1875 = vld [vmem:[%s1771 + $0x338] sm:$0xff]
    %v1876 = vld [vmem:[%s1771 + $0x340] sm:$0xff]
    %v1877 = vld [vmem:[%s1771 + $0x348] sm:$0xff]
    %v1878 = vld [vmem:[%s1771 + $0x350] sm:$0xff]
    %v1879 = vld [vmem:[%s1771 + $0x358] sm:$0xff]
    %v1880 = vld [vmem:[%s1771 + $0x360] sm:$0xff]
    %v1881 = vld [vmem:[%s1771 + $0x368] sm:$0xff]
    %v1882 = vld [vmem:[%s1771 + $0x370] sm:$0xff]
    %v1883 = vld [vmem:[%s1771 + $0x378] sm:$0xff]
    %v1885 = vsel %vm420, %v1688, 0
    %1887 = vmatpush.msra.mxu0 0.0
    %1888 = vmatpush.msra.mxu0 0.0
    %1889 = vmatpush.msra.mxu0 0.0
    %1890 = vmatpush.msra.mxu0 0.0
    %1891 = vmatpush.msra.mxu0 0.0
    %1892 = vmatpush.msra.mxu0 0.0
    %1893 = vmatpush.msra.mxu0 0.0
    %1894 = vmatpush.msra.mxu0 0.0
    %1895 = vmatpush.msra.mxu0 0.0
    %1896 = vmatpush.msra.mxu0 0.0
    %1897 = vmatpush.msra.mxu0 0.0
    %1898 = vmatpush.msra.mxu0 0.0
    %1899 = vmatpush.msra.mxu0 %v1775
    %1900 = vmatpush.msra.mxu0 %v1774
    %1901 = vmatpush.msra.mxu0 %v1773
    %1902 = vmatpush.msra.mxu0 %v1772
    %1903 = vmatmul.f32.gmra.mxu0 %v1885
    %v1904 = vpop.f32.mrf.mxu0
    %v1905 = vadd.f32 0.0, %v1904
    %1906 = vdwg.mxu0
    %v1908 = vsel %vm420, %v1691, 0
    %1910 = vmatpush.msra.mxu0 0.0
    %1911 = vmatpush.msra.mxu0 0.0
    %1912 = vmatpush.msra.mxu0 0.0
    %1913 = vmatpush.msra.mxu0 0.0
    %1914 = vmatpush.msra.mxu0 0.0
    %1915 = vmatpush.msra.mxu0 0.0
    %1916 = vmatpush.msra.mxu0 0.0
    %1917 = vmatpush.msra.mxu0 0.0
    %1918 = vmatpush.msra.mxu0 0.0
    %1919 = vmatpush.msra.mxu0 0.0
    %1920 = vmatpush.msra.mxu0 0.0
    %1921 = vmatpush.msra.mxu0 0.0
    %1922 = vmatpush.msra.mxu0 %v1779
    %1923 = vmatpush.msra.mxu0 %v1778
    %1924 = vmatpush.msra.mxu0 %v1777
    %1925 = vmatpush.msra.mxu0 %v1776
    %1926 = vmatmul.f32.gmra.mxu0 %v1908
    %v1927 = vpop.f32.mrf.mxu0
    %v1928 = vadd.f32 0.0, %v1927
    %1929 = vdwg.mxu0
    %v1931 = vsel %vm420, %v1694, 0
    %1933 = vmatpush.msra.mxu0 0.0
    %1934 = vmatpush.msra.mxu0 0.0
    %1935 = vmatpush.msra.mxu0 0.0
    %1936 = vmatpush.msra.mxu0 0.0
    %1937 = vmatpush.msra.mxu0 0.0
    %1938 = vmatpush.msra.mxu0 0.0
    %1939 = vmatpush.msra.mxu0 0.0
    %1940 = vmatpush.msra.mxu0 0.0
    %1941 = vmatpush.msra.mxu0 0.0
    %1942 = vmatpush.msra.mxu0 0.0
    %1943 = vmatpush.msra.mxu0 0.0
    %1944 = vmatpush.msra.mxu0 0.0
    %1945 = vmatpush.msra.mxu0 %v1783
    %1946 = vmatpush.msra.mxu0 %v1782
    %1947 = vmatpush.msra.mxu0 %v1781
    %1948 = vmatpush.msra.mxu0 %v1780
    %1949 = vmatmul.f32.gmra.mxu0 %v1931
    %v1950 = vpop.f32.mrf.mxu0
    %v1951 = vadd.f32 0.0, %v1950
    %1952 = vdwg.mxu0
    %v1954 = vsel %vm420, %v1697, 0
    %1956 = vmatpush.msra.mxu0 0.0
    %1957 = vmatpush.msra.mxu0 0.0
    %1958 = vmatpush.msra.mxu0 0.0
    %1959 = vmatpush.msra.mxu0 0.0
    %1960 = vmatpush.msra.mxu0 0.0
    %1961 = vmatpush.msra.mxu0 0.0
    %1962 = vmatpush.msra.mxu0 0.0
    %1963 = vmatpush.msra.mxu0 0.0
    %1964 = vmatpush.msra.mxu0 0.0
    %1965 = vmatpush.msra.mxu0 0.0
    %1966 = vmatpush.msra.mxu0 0.0
    %1967 = vmatpush.msra.mxu0 0.0
    %1968 = vmatpush.msra.mxu0 %v1787
    %1969 = vmatpush.msra.mxu0 %v1786
    %1970 = vmatpush.msra.mxu0 %v1785
    %1971 = vmatpush.msra.mxu0 %v1784
    %1972 = vmatmul.f32.gmra.mxu0 %v1954
    %v1973 = vpop.f32.mrf.mxu0
    %v1974 = vadd.f32 0.0, %v1973
    %1975 = vdwg.mxu0
    %v1977 = vsel %vm420, %v1700, 0
    %1979 = vmatpush.msra.mxu0 0.0
    %1980 = vmatpush.msra.mxu0 0.0
    %1981 = vmatpush.msra.mxu0 0.0
    %1982 = vmatpush.msra.mxu0 0.0
    %1983 = vmatpush.msra.mxu0 0.0
    %1984 = vmatpush.msra.mxu0 0.0
    %1985 = vmatpush.msra.mxu0 0.0
    %1986 = vmatpush.msra.mxu0 0.0
    %1987 = vmatpush.msra.mxu0 0.0
    %1988 = vmatpush.msra.mxu0 0.0
    %1989 = vmatpush.msra.mxu0 0.0
    %1990 = vmatpush.msra.mxu0 0.0
    %1991 = vmatpush.msra.mxu0 %v1791
    %1992 = vmatpush.msra.mxu0 %v1790
    %1993 = vmatpush.msra.mxu0 %v1789
    %1994 = vmatpush.msra.mxu0 %v1788
    %1995 = vmatmul.f32.gmra.mxu0 %v1977
    %v1996 = vpop.f32.mrf.mxu0
    %v1997 = vadd.f32 0.0, %v1996
    %1998 = vdwg.mxu0
    %v2000 = vsel %vm420, %v1703, 0
    %2002 = vmatpush.msra.mxu0 0.0
    %2003 = vmatpush.msra.mxu0 0.0
    %2004 = vmatpush.msra.mxu0 0.0
    %2005 = vmatpush.msra.mxu0 0.0
    %2006 = vmatpush.msra.mxu0 0.0
    %2007 = vmatpush.msra.mxu0 0.0
    %2008 = vmatpush.msra.mxu0 0.0
    %2009 = vmatpush.msra.mxu0 0.0
    %2010 = vmatpush.msra.mxu0 0.0
    %2011 = vmatpush.msra.mxu0 0.0
    %2012 = vmatpush.msra.mxu0 0.0
    %2013 = vmatpush.msra.mxu0 0.0
    %2014 = vmatpush.msra.mxu0 %v1795
    %2015 = vmatpush.msra.mxu0 %v1794
    %2016 = vmatpush.msra.mxu0 %v1793
    %2017 = vmatpush.msra.mxu0 %v1792
    %2018 = vmatmul.f32.gmra.mxu0 %v2000
    %v2019 = vpop.f32.mrf.mxu0
    %v2020 = vadd.f32 0.0, %v2019
    %2021 = vdwg.mxu0
    %v2023 = vsel %vm420, %v1706, 0
    %2025 = vmatpush.msra.mxu0 0.0
    %2026 = vmatpush.msra.mxu0 0.0
    %2027 = vmatpush.msra.mxu0 0.0
    %2028 = vmatpush.msra.mxu0 0.0
    %2029 = vmatpush.msra.mxu0 0.0
    %2030 = vmatpush.msra.mxu0 0.0
    %2031 = vmatpush.msra.mxu0 0.0
    %2032 = vmatpush.msra.mxu0 0.0
    %2033 = vmatpush.msra.mxu0 0.0
    %2034 = vmatpush.msra.mxu0 0.0
    %2035 = vmatpush.msra.mxu0 0.0
    %2036 = vmatpush.msra.mxu0 0.0
    %2037 = vmatpush.msra.mxu0 %v1799
    %2038 = vmatpush.msra.mxu0 %v1798
    %2039 = vmatpush.msra.mxu0 %v1797
    %2040 = vmatpush.msra.mxu0 %v1796
    %2041 = vmatmul.f32.gmra.mxu0 %v2023
    %v2042 = vpop.f32.mrf.mxu0
    %v2043 = vadd.f32 0.0, %v2042
    %2044 = vdwg.mxu0
    %v2046 = vsel %vm420, %v1709, 0
    %2048 = vmatpush.msra.mxu0 0.0
    %2049 = vmatpush.msra.mxu0 0.0
    %2050 = vmatpush.msra.mxu0 0.0
    %2051 = vmatpush.msra.mxu0 0.0
    %2052 = vmatpush.msra.mxu0 0.0
    %2053 = vmatpush.msra.mxu0 0.0
    %2054 = vmatpush.msra.mxu0 0.0
    %2055 = vmatpush.msra.mxu0 0.0
    %2056 = vmatpush.msra.mxu0 0.0
    %2057 = vmatpush.msra.mxu0 0.0
    %2058 = vmatpush.msra.mxu0 0.0
    %2059 = vmatpush.msra.mxu0 0.0
    %2060 = vmatpush.msra.mxu0 %v1803
    %2061 = vmatpush.msra.mxu0 %v1802
    %2062 = vmatpush.msra.mxu0 %v1801
    %2063 = vmatpush.msra.mxu0 %v1800
    %2064 = vmatmul.f32.gmra.mxu0 %v2046
    %v2065 = vpop.f32.mrf.mxu0
    %v2066 = vadd.f32 0.0, %v2065
    %2067 = vdwg.mxu0
    %v2069 = vsel %vm420, %v1712, 0
    %2071 = vmatpush.msra.mxu0 0.0
    %2072 = vmatpush.msra.mxu0 0.0
    %2073 = vmatpush.msra.mxu0 0.0
    %2074 = vmatpush.msra.mxu0 0.0
    %2075 = vmatpush.msra.mxu0 0.0
    %2076 = vmatpush.msra.mxu0 0.0
    %2077 = vmatpush.msra.mxu0 0.0
    %2078 = vmatpush.msra.mxu0 0.0
    %2079 = vmatpush.msra.mxu0 0.0
    %2080 = vmatpush.msra.mxu0 0.0
    %2081 = vmatpush.msra.mxu0 0.0
    %2082 = vmatpush.msra.mxu0 0.0
    %2083 = vmatpush.msra.mxu0 %v1807
    %2084 = vmatpush.msra.mxu0 %v1806
    %2085 = vmatpush.msra.mxu0 %v1805
    %2086 = vmatpush.msra.mxu0 %v1804
    %2087 = vmatmul.f32.gmra.mxu0 %v2069
    %v2088 = vpop.f32.mrf.mxu0
    %v2089 = vadd.f32 0.0, %v2088
    %2090 = vdwg.mxu0
    %v2092 = vsel %vm420, %v1715, 0
    %2094 = vmatpush.msra.mxu0 0.0
    %2095 = vmatpush.msra.mxu0 0.0
    %2096 = vmatpush.msra.mxu0 0.0
    %2097 = vmatpush.msra.mxu0 0.0
    %2098 = vmatpush.msra.mxu0 0.0
    %2099 = vmatpush.msra.mxu0 0.0
    %2100 = vmatpush.msra.mxu0 0.0
    %2101 = vmatpush.msra.mxu0 0.0
    %2102 = vmatpush.msra.mxu0 0.0
    %2103 = vmatpush.msra.mxu0 0.0
    %2104 = vmatpush.msra.mxu0 0.0
    %2105 = vmatpush.msra.mxu0 0.0
    %2106 = vmatpush.msra.mxu0 %v1811
    %2107 = vmatpush.msra.mxu0 %v1810
    %2108 = vmatpush.msra.mxu0 %v1809
    %2109 = vmatpush.msra.mxu0 %v1808
    %2110 = vmatmul.f32.gmra.mxu0 %v2092
    %v2111 = vpop.f32.mrf.mxu0
    %v2112 = vadd.f32 0.0, %v2111
    %2113 = vdwg.mxu0
    %v2115 = vsel %vm420, %v1718, 0
    %2117 = vmatpush.msra.mxu0 0.0
    %2118 = vmatpush.msra.mxu0 0.0
    %2119 = vmatpush.msra.mxu0 0.0
    %2120 = vmatpush.msra.mxu0 0.0
    %2121 = vmatpush.msra.mxu0 0.0
    %2122 = vmatpush.msra.mxu0 0.0
    %2123 = vmatpush.msra.mxu0 0.0
    %2124 = vmatpush.msra.mxu0 0.0
    %2125 = vmatpush.msra.mxu0 0.0
    %2126 = vmatpush.msra.mxu0 0.0
    %2127 = vmatpush.msra.mxu0 0.0
    %2128 = vmatpush.msra.mxu0 0.0
    %2129 = vmatpush.msra.mxu0 %v1815
    %2130 = vmatpush.msra.mxu0 %v1814
    %2131 = vmatpush.msra.mxu0 %v1813
    %2132 = vmatpush.msra.mxu0 %v1812
    %2133 = vmatmul.f32.gmra.mxu0 %v2115
    %v2134 = vpop.f32.mrf.mxu0
    %v2135 = vadd.f32 0.0, %v2134
    %2136 = vdwg.mxu0
    %v2138 = vsel %vm420, %v1721, 0
    %2140 = vmatpush.msra.mxu0 0.0
    %2141 = vmatpush.msra.mxu0 0.0
    %2142 = vmatpush.msra.mxu0 0.0
    %2143 = vmatpush.msra.mxu0 0.0
    %2144 = vmatpush.msra.mxu0 0.0
    %2145 = vmatpush.msra.mxu0 0.0
    %2146 = vmatpush.msra.mxu0 0.0
    %2147 = vmatpush.msra.mxu0 0.0
    %2148 = vmatpush.msra.mxu0 0.0
    %2149 = vmatpush.msra.mxu0 0.0
    %2150 = vmatpush.msra.mxu0 0.0
    %2151 = vmatpush.msra.mxu0 0.0
    %2152 = vmatpush.msra.mxu0 %v1819
    %2153 = vmatpush.msra.mxu0 %v1818
    %2154 = vmatpush.msra.mxu0 %v1817
    %2155 = vmatpush.msra.mxu0 %v1816
    %2156 = vmatmul.f32.gmra.mxu0 %v2138
    %v2157 = vpop.f32.mrf.mxu0
    %v2158 = vadd.f32 0.0, %v2157
    %2159 = vdwg.mxu0
    %v2161 = vsel %vm420, %v1724, 0
    %2163 = vmatpush.msra.mxu0 0.0
    %2164 = vmatpush.msra.mxu0 0.0
    %2165 = vmatpush.msra.mxu0 0.0
    %2166 = vmatpush.msra.mxu0 0.0
    %2167 = vmatpush.msra.mxu0 0.0
    %2168 = vmatpush.msra.mxu0 0.0
    %2169 = vmatpush.msra.mxu0 0.0
    %2170 = vmatpush.msra.mxu0 0.0
    %2171 = vmatpush.msra.mxu0 0.0
    %2172 = vmatpush.msra.mxu0 0.0
    %2173 = vmatpush.msra.mxu0 0.0
    %2174 = vmatpush.msra.mxu0 0.0
    %2175 = vmatpush.msra.mxu0 %v1823
    %2176 = vmatpush.msra.mxu0 %v1822
    %2177 = vmatpush.msra.mxu0 %v1821
    %2178 = vmatpush.msra.mxu0 %v1820
    %2179 = vmatmul.f32.gmra.mxu0 %v2161
    %v2180 = vpop.f32.mrf.mxu0
    %v2181 = vadd.f32 0.0, %v2180
    %2182 = vdwg.mxu0
    %v2184 = vsel %vm420, %v1727, 0
    %2186 = vmatpush.msra.mxu0 0.0
    %2187 = vmatpush.msra.mxu0 0.0
    %2188 = vmatpush.msra.mxu0 0.0
    %2189 = vmatpush.msra.mxu0 0.0
    %2190 = vmatpush.msra.mxu0 0.0
    %2191 = vmatpush.msra.mxu0 0.0
    %2192 = vmatpush.msra.mxu0 0.0
    %2193 = vmatpush.msra.mxu0 0.0
    %2194 = vmatpush.msra.mxu0 0.0
    %2195 = vmatpush.msra.mxu0 0.0
    %2196 = vmatpush.msra.mxu0 0.0
    %2197 = vmatpush.msra.mxu0 0.0
    %2198 = vmatpush.msra.mxu0 %v1827
    %2199 = vmatpush.msra.mxu0 %v1826
    %2200 = vmatpush.msra.mxu0 %v1825
    %2201 = vmatpush.msra.mxu0 %v1824
    %2202 = vmatmul.f32.gmra.mxu0 %v2184
    %v2203 = vpop.f32.mrf.mxu0
    %v2204 = vadd.f32 0.0, %v2203
    %2205 = vdwg.mxu0
    %v2207 = vsel %vm420, %v1730, 0
    %2209 = vmatpush.msra.mxu0 0.0
    %2210 = vmatpush.msra.mxu0 0.0
    %2211 = vmatpush.msra.mxu0 0.0
    %2212 = vmatpush.msra.mxu0 0.0
    %2213 = vmatpush.msra.mxu0 0.0
    %2214 = vmatpush.msra.mxu0 0.0
    %2215 = vmatpush.msra.mxu0 0.0
    %2216 = vmatpush.msra.mxu0 0.0
    %2217 = vmatpush.msra.mxu0 0.0
    %2218 = vmatpush.msra.mxu0 0.0
    %2219 = vmatpush.msra.mxu0 0.0
    %2220 = vmatpush.msra.mxu0 0.0
    %2221 = vmatpush.msra.mxu0 %v1831
    %2222 = vmatpush.msra.mxu0 %v1830
    %2223 = vmatpush.msra.mxu0 %v1829
    %2224 = vmatpush.msra.mxu0 %v1828
    %2225 = vmatmul.f32.gmra.mxu0 %v2207
    %v2226 = vpop.f32.mrf.mxu0
    %v2227 = vadd.f32 0.0, %v2226
    %2228 = vdwg.mxu0
    %v2230 = vsel %vm420, %v1733, 0
    %2232 = vmatpush.msra.mxu0 0.0
    %2233 = vmatpush.msra.mxu0 0.0
    %2234 = vmatpush.msra.mxu0 0.0
    %2235 = vmatpush.msra.mxu0 0.0
    %2236 = vmatpush.msra.mxu0 0.0
    %2237 = vmatpush.msra.mxu0 0.0
    %2238 = vmatpush.msra.mxu0 0.0
    %2239 = vmatpush.msra.mxu0 0.0
    %2240 = vmatpush.msra.mxu0 0.0
    %2241 = vmatpush.msra.mxu0 0.0
    %2242 = vmatpush.msra.mxu0 0.0
    %2243 = vmatpush.msra.mxu0 0.0
    %2244 = vmatpush.msra.mxu0 %v1835
    %2245 = vmatpush.msra.mxu0 %v1834
    %2246 = vmatpush.msra.mxu0 %v1833
    %2247 = vmatpush.msra.mxu0 %v1832
    %2248 = vmatmul.f32.gmra.mxu0 %v2230
    %v2249 = vpop.f32.mrf.mxu0
    %v2250 = vadd.f32 0.0, %v2249
    %2251 = vdwg.mxu0
    %v2253 = vsel %vm420, %v1736, 0
    %2255 = vmatpush.msra.mxu0 0.0
    %2256 = vmatpush.msra.mxu0 0.0
    %2257 = vmatpush.msra.mxu0 0.0
    %2258 = vmatpush.msra.mxu0 0.0
    %2259 = vmatpush.msra.mxu0 0.0
    %2260 = vmatpush.msra.mxu0 0.0
    %2261 = vmatpush.msra.mxu0 0.0
    %2262 = vmatpush.msra.mxu0 0.0
    %2263 = vmatpush.msra.mxu0 0.0
    %2264 = vmatpush.msra.mxu0 0.0
    %2265 = vmatpush.msra.mxu0 0.0
    %2266 = vmatpush.msra.mxu0 0.0
    %2267 = vmatpush.msra.mxu0 %v1839
    %2268 = vmatpush.msra.mxu0 %v1838
    %2269 = vmatpush.msra.mxu0 %v1837
    %2270 = vmatpush.msra.mxu0 %v1836
    %2271 = vmatmul.f32.gmra.mxu0 %v2253
    %v2272 = vpop.f32.mrf.mxu0
    %v2273 = vadd.f32 0.0, %v2272
    %2274 = vdwg.mxu0
    %v2276 = vsel %vm420, %v1739, 0
    %2278 = vmatpush.msra.mxu0 0.0
    %2279 = vmatpush.msra.mxu0 0.0
    %2280 = vmatpush.msra.mxu0 0.0
    %2281 = vmatpush.msra.mxu0 0.0
    %2282 = vmatpush.msra.mxu0 0.0
    %2283 = vmatpush.msra.mxu0 0.0
    %2284 = vmatpush.msra.mxu0 0.0
    %2285 = vmatpush.msra.mxu0 0.0
    %2286 = vmatpush.msra.mxu0 0.0
    %2287 = vmatpush.msra.mxu0 0.0
    %2288 = vmatpush.msra.mxu0 0.0
    %2289 = vmatpush.msra.mxu0 0.0
    %2290 = vmatpush.msra.mxu0 %v1843
    %2291 = vmatpush.msra.mxu0 %v1842
    %2292 = vmatpush.msra.mxu0 %v1841
    %2293 = vmatpush.msra.mxu0 %v1840
    %2294 = vmatmul.f32.gmra.mxu0 %v2276
    %v2295 = vpop.f32.mrf.mxu0
    %v2296 = vadd.f32 0.0, %v2295
    %2297 = vdwg.mxu0
    %v2299 = vsel %vm420, %v1742, 0
    %2301 = vmatpush.msra.mxu0 0.0
    %2302 = vmatpush.msra.mxu0 0.0
    %2303 = vmatpush.msra.mxu0 0.0
    %2304 = vmatpush.msra.mxu0 0.0
    %2305 = vmatpush.msra.mxu0 0.0
    %2306 = vmatpush.msra.mxu0 0.0
    %2307 = vmatpush.msra.mxu0 0.0
    %2308 = vmatpush.msra.mxu0 0.0
    %2309 = vmatpush.msra.mxu0 0.0
    %2310 = vmatpush.msra.mxu0 0.0
    %2311 = vmatpush.msra.mxu0 0.0
    %2312 = vmatpush.msra.mxu0 0.0
    %2313 = vmatpush.msra.mxu0 %v1847
    %2314 = vmatpush.msra.mxu0 %v1846
    %2315 = vmatpush.msra.mxu0 %v1845
    %2316 = vmatpush.msra.mxu0 %v1844
    %2317 = vmatmul.f32.gmra.mxu0 %v2299
    %v2318 = vpop.f32.mrf.mxu0
    %v2319 = vadd.f32 0.0, %v2318
    %2320 = vdwg.mxu0
    %v2322 = vsel %vm420, %v1745, 0
    %2324 = vmatpush.msra.mxu0 0.0
    %2325 = vmatpush.msra.mxu0 0.0
    %2326 = vmatpush.msra.mxu0 0.0
    %2327 = vmatpush.msra.mxu0 0.0
    %2328 = vmatpush.msra.mxu0 0.0
    %2329 = vmatpush.msra.mxu0 0.0
    %2330 = vmatpush.msra.mxu0 0.0
    %2331 = vmatpush.msra.mxu0 0.0
    %2332 = vmatpush.msra.mxu0 0.0
    %2333 = vmatpush.msra.mxu0 0.0
    %2334 = vmatpush.msra.mxu0 0.0
    %2335 = vmatpush.msra.mxu0 0.0
    %2336 = vmatpush.msra.mxu0 %v1851
    %2337 = vmatpush.msra.mxu0 %v1850
    %2338 = vmatpush.msra.mxu0 %v1849
    %2339 = vmatpush.msra.mxu0 %v1848
    %2340 = vmatmul.f32.gmra.mxu0 %v2322
    %v2341 = vpop.f32.mrf.mxu0
    %v2342 = vadd.f32 0.0, %v2341
    %2343 = vdwg.mxu0
    %v2345 = vsel %vm420, %v1748, 0
    %2347 = vmatpush.msra.mxu0 0.0
    %2348 = vmatpush.msra.mxu0 0.0
    %2349 = vmatpush.msra.mxu0 0.0
    %2350 = vmatpush.msra.mxu0 0.0
    %2351 = vmatpush.msra.mxu0 0.0
    %2352 = vmatpush.msra.mxu0 0.0
    %2353 = vmatpush.msra.mxu0 0.0
    %2354 = vmatpush.msra.mxu0 0.0
    %2355 = vmatpush.msra.mxu0 0.0
    %2356 = vmatpush.msra.mxu0 0.0
    %2357 = vmatpush.msra.mxu0 0.0
    %2358 = vmatpush.msra.mxu0 0.0
    %2359 = vmatpush.msra.mxu0 %v1855
    %2360 = vmatpush.msra.mxu0 %v1854
    %2361 = vmatpush.msra.mxu0 %v1853
    %2362 = vmatpush.msra.mxu0 %v1852
    %2363 = vmatmul.f32.gmra.mxu0 %v2345
    %v2364 = vpop.f32.mrf.mxu0
    %v2365 = vadd.f32 0.0, %v2364
    %2366 = vdwg.mxu0
    %v2368 = vsel %vm420, %v1751, 0
    %2370 = vmatpush.msra.mxu0 0.0
    %2371 = vmatpush.msra.mxu0 0.0
    %2372 = vmatpush.msra.mxu0 0.0
    %2373 = vmatpush.msra.mxu0 0.0
    %2374 = vmatpush.msra.mxu0 0.0
    %2375 = vmatpush.msra.mxu0 0.0
    %2376 = vmatpush.msra.mxu0 0.0
    %2377 = vmatpush.msra.mxu0 0.0
    %2378 = vmatpush.msra.mxu0 0.0
    %2379 = vmatpush.msra.mxu0 0.0
    %2380 = vmatpush.msra.mxu0 0.0
    %2381 = vmatpush.msra.mxu0 0.0
    %2382 = vmatpush.msra.mxu0 %v1859
    %2383 = vmatpush.msra.mxu0 %v1858
    %2384 = vmatpush.msra.mxu0 %v1857
    %2385 = vmatpush.msra.mxu0 %v1856
    %2386 = vmatmul.f32.gmra.mxu0 %v2368
    %v2387 = vpop.f32.mrf.mxu0
    %v2388 = vadd.f32 0.0, %v2387
    %2389 = vdwg.mxu0
    %v2391 = vsel %vm420, %v1754, 0
    %2393 = vmatpush.msra.mxu0 0.0
    %2394 = vmatpush.msra.mxu0 0.0
    %2395 = vmatpush.msra.mxu0 0.0
    %2396 = vmatpush.msra.mxu0 0.0
    %2397 = vmatpush.msra.mxu0 0.0
    %2398 = vmatpush.msra.mxu0 0.0
    %2399 = vmatpush.msra.mxu0 0.0
    %2400 = vmatpush.msra.mxu0 0.0
    %2401 = vmatpush.msra.mxu0 0.0
    %2402 = vmatpush.msra.mxu0 0.0
    %2403 = vmatpush.msra.mxu0 0.0
    %2404 = vmatpush.msra.mxu0 0.0
    %2405 = vmatpush.msra.mxu0 %v1863
    %2406 = vmatpush.msra.mxu0 %v1862
    %2407 = vmatpush.msra.mxu0 %v1861
    %2408 = vmatpush.msra.mxu0 %v1860
    %2409 = vmatmul.f32.gmra.mxu0 %v2391
    %v2410 = vpop.f32.mrf.mxu0
    %v2411 = vadd.f32 0.0, %v2410
    %2412 = vdwg.mxu0
    %v2414 = vsel %vm420, %v1757, 0
    %2416 = vmatpush.msra.mxu0 0.0
    %2417 = vmatpush.msra.mxu0 0.0
    %2418 = vmatpush.msra.mxu0 0.0
    %2419 = vmatpush.msra.mxu0 0.0
    %2420 = vmatpush.msra.mxu0 0.0
    %2421 = vmatpush.msra.mxu0 0.0
    %2422 = vmatpush.msra.mxu0 0.0
    %2423 = vmatpush.msra.mxu0 0.0
    %2424 = vmatpush.msra.mxu0 0.0
    %2425 = vmatpush.msra.mxu0 0.0
    %2426 = vmatpush.msra.mxu0 0.0
    %2427 = vmatpush.msra.mxu0 0.0
    %2428 = vmatpush.msra.mxu0 %v1867
    %2429 = vmatpush.msra.mxu0 %v1866
    %2430 = vmatpush.msra.mxu0 %v1865
    %2431 = vmatpush.msra.mxu0 %v1864
    %2432 = vmatmul.f32.gmra.mxu0 %v2414
    %v2433 = vpop.f32.mrf.mxu0
    %v2434 = vadd.f32 0.0, %v2433
    %2435 = vdwg.mxu0
    %v2437 = vsel %vm420, %v1760, 0
    %2439 = vmatpush.msra.mxu0 0.0
    %2440 = vmatpush.msra.mxu0 0.0
    %2441 = vmatpush.msra.mxu0 0.0
    %2442 = vmatpush.msra.mxu0 0.0
    %2443 = vmatpush.msra.mxu0 0.0
    %2444 = vmatpush.msra.mxu0 0.0
    %2445 = vmatpush.msra.mxu0 0.0
    %2446 = vmatpush.msra.mxu0 0.0
    %2447 = vmatpush.msra.mxu0 0.0
    %2448 = vmatpush.msra.mxu0 0.0
    %2449 = vmatpush.msra.mxu0 0.0
    %2450 = vmatpush.msra.mxu0 0.0
    %2451 = vmatpush.msra.mxu0 %v1871
    %2452 = vmatpush.msra.mxu0 %v1870
    %2453 = vmatpush.msra.mxu0 %v1869
    %2454 = vmatpush.msra.mxu0 %v1868
    %2455 = vmatmul.f32.gmra.mxu0 %v2437
    %v2456 = vpop.f32.mrf.mxu0
    %v2457 = vadd.f32 0.0, %v2456
    %2458 = vdwg.mxu0
    %v2460 = vsel %vm420, %v1763, 0
    %2462 = vmatpush.msra.mxu0 0.0
    %2463 = vmatpush.msra.mxu0 0.0
    %2464 = vmatpush.msra.mxu0 0.0
    %2465 = vmatpush.msra.mxu0 0.0
    %2466 = vmatpush.msra.mxu0 0.0
    %2467 = vmatpush.msra.mxu0 0.0
    %2468 = vmatpush.msra.mxu0 0.0
    %2469 = vmatpush.msra.mxu0 0.0
    %2470 = vmatpush.msra.mxu0 0.0
    %2471 = vmatpush.msra.mxu0 0.0
    %2472 = vmatpush.msra.mxu0 0.0
    %2473 = vmatpush.msra.mxu0 0.0
    %2474 = vmatpush.msra.mxu0 %v1875
    %2475 = vmatpush.msra.mxu0 %v1874
    %2476 = vmatpush.msra.mxu0 %v1873
    %2477 = vmatpush.msra.mxu0 %v1872
    %2478 = vmatmul.f32.gmra.mxu0 %v2460
    %v2479 = vpop.f32.mrf.mxu0
    %v2480 = vadd.f32 0.0, %v2479
    %2481 = vdwg.mxu0
    %v2483 = vsel %vm420, %v1766, 0
    %2485 = vmatpush.msra.mxu0 0.0
    %2486 = vmatpush.msra.mxu0 0.0
    %2487 = vmatpush.msra.mxu0 0.0
    %2488 = vmatpush.msra.mxu0 0.0
    %2489 = vmatpush.msra.mxu0 0.0
    %2490 = vmatpush.msra.mxu0 0.0
    %2491 = vmatpush.msra.mxu0 0.0
    %2492 = vmatpush.msra.mxu0 0.0
    %2493 = vmatpush.msra.mxu0 0.0
    %2494 = vmatpush.msra.mxu0 0.0
    %2495 = vmatpush.msra.mxu0 0.0
    %2496 = vmatpush.msra.mxu0 0.0
    %2497 = vmatpush.msra.mxu0 %v1879
    %2498 = vmatpush.msra.mxu0 %v1878
    %2499 = vmatpush.msra.mxu0 %v1877
    %2500 = vmatpush.msra.mxu0 %v1876
    %2501 = vmatmul.f32.gmra.mxu0 %v2483
    %v2502 = vpop.f32.mrf.mxu0
    %v2503 = vadd.f32 0.0, %v2502
    %2504 = vdwg.mxu0
    %v2506 = vsel %vm420, %v1769, 0
    %2508 = vmatpush.msra.mxu0 0.0
    %2509 = vmatpush.msra.mxu0 0.0
    %2510 = vmatpush.msra.mxu0 0.0
    %2511 = vmatpush.msra.mxu0 0.0
    %2512 = vmatpush.msra.mxu0 0.0
    %2513 = vmatpush.msra.mxu0 0.0
    %2514 = vmatpush.msra.mxu0 0.0
    %2515 = vmatpush.msra.mxu0 0.0
    %2516 = vmatpush.msra.mxu0 0.0
    %2517 = vmatpush.msra.mxu0 0.0
    %2518 = vmatpush.msra.mxu0 0.0
    %2519 = vmatpush.msra.mxu0 0.0
    %2520 = vmatpush.msra.mxu0 %v1883
    %2521 = vmatpush.msra.mxu0 %v1882
    %2522 = vmatpush.msra.mxu0 %v1881
    %2523 = vmatpush.msra.mxu0 %v1880
    %2524 = vmatmul.f32.gmra.mxu0 %v2506
    %v2525 = vpop.f32.mrf.mxu0
    %v2526 = vadd.f32 0.0, %v2525
    %2527 = vdwg.mxu0
    %v2528 = vld [vmem:[#allocation3] sm:$0xff]
    %v2529 = vld [vmem:[#allocation3 + $0x8] sm:$0xff]
    %v2530 = vld [vmem:[#allocation3 + $0x10] sm:$0xff]
    %v2531 = vld [vmem:[#allocation3 + $0x18] sm:$0xff]
    %v2532 = vld [vmem:[#allocation3 + $0x20] sm:$0xff]
    %v2533 = vld [vmem:[#allocation3 + $0x28] sm:$0xff]
    %v2534 = vld [vmem:[#allocation3 + $0x30] sm:$0xff]
    %v2535 = vld [vmem:[#allocation3 + $0x38] sm:$0xff]
    %v2536 = vld [vmem:[#allocation3 + $0x40] sm:$0xff]
    %v2537 = vld [vmem:[#allocation3 + $0x48] sm:$0xff]
    %v2538 = vld [vmem:[#allocation3 + $0x50] sm:$0xff]
    %v2539 = vld [vmem:[#allocation3 + $0x58] sm:$0xff]
    %v2540 = vld [vmem:[#allocation3 + $0x60] sm:$0xff]
    %v2541 = vld [vmem:[#allocation3 + $0x68] sm:$0xff]
    %v2542 = vld [vmem:[#allocation3 + $0x70] sm:$0xff]
    %v2543 = vld [vmem:[#allocation3 + $0x78] sm:$0xff]
    %v2544 = vld [vmem:[#allocation3 + $0x80] sm:$0xff]
    %v2545 = vld [vmem:[#allocation3 + $0x88] sm:$0xff]
    %v2546 = vld [vmem:[#allocation3 + $0x90] sm:$0xff]
    %v2547 = vld [vmem:[#allocation3 + $0x98] sm:$0xff]
    %v2548 = vld [vmem:[#allocation3 + $0xa0] sm:$0xff]
    %v2549 = vld [vmem:[#allocation3 + $0xa8] sm:$0xff]
    %s2550 = scalar_lea.vmem %s4, 88
    %v2551 = vld [vmem:[%s2550] sm:$0xff]
    %v2552 = vld [vmem:[%s2550 + $0x8] sm:$0xff]
    %v2553 = vld [vmem:[%s2550 + $0x10] sm:$0xff]
    %v2554 = vld [vmem:[%s2550 + $0x18] sm:$0xff]
    %v2555 = vld [vmem:[%s2550 + $0x20] sm:$0xff]
    %v2556 = vld [vmem:[%s2550 + $0x28] sm:$0xff]
    %v2557 = vld [vmem:[%s2550 + $0x30] sm:$0xff]
    %v2558 = vld [vmem:[%s2550 + $0x38] sm:$0xff]
    %v2559 = vld [vmem:[%s2550 + $0x40] sm:$0xff]
    %v2560 = vld [vmem:[%s2550 + $0x48] sm:$0xff]
    %v2561 = vld [vmem:[%s2550 + $0x50] sm:$0xff]
    %v2563 = vsel %vm1098, %v2529, 0
    %v2566 = vsel %vm1098, %v2531, 0
    %v2569 = vsel %vm1098, %v2533, 0
    %v2572 = vsel %vm1098, %v2535, 0
    %v2575 = vsel %vm1098, %v2537, 0
    %v2578 = vsel %vm1098, %v2539, 0
    %v2581 = vsel %vm1098, %v2541, 0
    %v2584 = vsel %vm1098, %v2543, 0
    %v2587 = vsel %vm1098, %v2545, 0
    %v2590 = vsel %vm1098, %v2547, 0
    %v2593 = vsel %vm1098, %v2549, 0
    %2595 = vmatpush.msra.mxu0 %v2250
    %2596 = vmatpush.msra.mxu0 %v2227
    %2597 = vmatpush.msra.mxu0 %v2204
    %2598 = vmatpush.msra.mxu0 %v2181
    %2599 = vmatpush.msra.mxu0 %v2158
    %2600 = vmatpush.msra.mxu0 %v2135
    %2601 = vmatpush.msra.mxu0 %v2112
    %2602 = vmatpush.msra.mxu0 %v2089
    %2603 = vmatpush.msra.mxu0 %v2066
    %2604 = vmatpush.msra.mxu0 %v2043
    %2605 = vmatpush.msra.mxu0 %v2020
    %2606 = vmatpush.msra.mxu0 %v1997
    %2607 = vmatpush.msra.mxu0 %v1974
    %2608 = vmatpush.msra.mxu0 %v1951
    %2609 = vmatpush.msra.mxu0 %v1928
    %2610 = vmatpush.msra.mxu0 %v1905
    %2611 = vmatmul.f32.gmra.mxu0 %v2528
    %v2612 = vpop.f32.mrf.mxu0
    %v2613 = vadd.f32 %v2551, %v2612
    %2614 = vmatmul.f32.gmra.mxu0 %v2530
    %v2615 = vpop.f32.mrf.mxu0
    %v2616 = vadd.f32 %v2552, %v2615
    %2617 = vmatmul.f32.gmra.mxu0 %v2532
    %v2618 = vpop.f32.mrf.mxu0
    %v2619 = vadd.f32 %v2553, %v2618
    %2620 = vmatmul.f32.gmra.mxu0 %v2534
    %v2621 = vpop.f32.mrf.mxu0
    %v2622 = vadd.f32 %v2554, %v2621
    %2623 = vmatmul.f32.gmra.mxu0 %v2536
    %v2624 = vpop.f32.mrf.mxu0
    %v2625 = vadd.f32 %v2555, %v2624
    %2626 = vmatmul.f32.gmra.mxu0 %v2538
    %v2627 = vpop.f32.mrf.mxu0
    %v2628 = vadd.f32 %v2556, %v2627
    %2629 = vmatmul.f32.gmra.mxu0 %v2540
    %v2630 = vpop.f32.mrf.mxu0
    %v2631 = vadd.f32 %v2557, %v2630
    %2632 = vmatmul.f32.gmra.mxu0 %v2542
    %v2633 = vpop.f32.mrf.mxu0
    %v2634 = vadd.f32 %v2558, %v2633
    %2635 = vmatmul.f32.gmra.mxu0 %v2544
    %v2636 = vpop.f32.mrf.mxu0
    %v2637 = vadd.f32 %v2559, %v2636
    %2638 = vmatmul.f32.gmra.mxu0 %v2546
    %v2639 = vpop.f32.mrf.mxu0
    %v2640 = vadd.f32 %v2560, %v2639
    %2641 = vmatmul.f32.gmra.mxu0 %v2548
    %v2642 = vpop.f32.mrf.mxu0
    %v2643 = vadd.f32 %v2561, %v2642
    %2644 = vdwg.mxu0
    %2645 = vmatpush.msra.mxu0 0.0
    %2646 = vmatpush.msra.mxu0 0.0
    %2647 = vmatpush.msra.mxu0 0.0
    %2648 = vmatpush.msra.mxu0 0.0
    %2649 = vmatpush.msra.mxu0 %v2526
    %2650 = vmatpush.msra.mxu0 %v2503
    %2651 = vmatpush.msra.mxu0 %v2480
    %2652 = vmatpush.msra.mxu0 %v2457
    %2653 = vmatpush.msra.mxu0 %v2434
    %2654 = vmatpush.msra.mxu0 %v2411
    %2655 = vmatpush.msra.mxu0 %v2388
    %2656 = vmatpush.msra.mxu0 %v2365
    %2657 = vmatpush.msra.mxu0 %v2342
    %2658 = vmatpush.msra.mxu0 %v2319
    %2659 = vmatpush.msra.mxu0 %v2296
    %2660 = vmatpush.msra.mxu0 %v2273
    %2661 = vmatmul.f32.gmra.mxu0 %v2563
    %v2662 = vpop.f32.mrf.mxu0
    %v2663 = vadd.f32 %v2613, %v2662
    %2664 = vmatmul.f32.gmra.mxu0 %v2566
    %v2665 = vpop.f32.mrf.mxu0
    %v2666 = vadd.f32 %v2616, %v2665
    %2667 = vmatmul.f32.gmra.mxu0 %v2569
    %v2668 = vpop.f32.mrf.mxu0
    %v2669 = vadd.f32 %v2619, %v2668
    %2670 = vmatmul.f32.gmra.mxu0 %v2572
    %v2671 = vpop.f32.mrf.mxu0
    %v2672 = vadd.f32 %v2622, %v2671
    %2673 = vmatmul.f32.gmra.mxu0 %v2575
    %v2674 = vpop.f32.mrf.mxu0
    %v2675 = vadd.f32 %v2625, %v2674
    %2676 = vmatmul.f32.gmra.mxu0 %v2578
    %v2677 = vpop.f32.mrf.mxu0
    %v2678 = vadd.f32 %v2628, %v2677
    %2679 = vmatmul.f32.gmra.mxu0 %v2581
    %v2680 = vpop.f32.mrf.mxu0
    %v2681 = vadd.f32 %v2631, %v2680
    %2682 = vmatmul.f32.gmra.mxu0 %v2584
    %v2683 = vpop.f32.mrf.mxu0
    %v2684 = vadd.f32 %v2634, %v2683
    %2685 = vmatmul.f32.gmra.mxu0 %v2587
    %v2686 = vpop.f32.mrf.mxu0
    %v2687 = vadd.f32 %v2637, %v2686
    %2688 = vmatmul.f32.gmra.mxu0 %v2590
    %v2689 = vpop.f32.mrf.mxu0
    %v2690 = vadd.f32 %v2640, %v2689
    %2691 = vmatmul.f32.gmra.mxu0 %v2593
    %v2692 = vpop.f32.mrf.mxu0
    %v2693 = vadd.f32 %v2643, %v2692
    %2694 = vdwg.mxu0
    %vm2695 = vcmp.ge.f32.partialorder %v2663, 0.0
    %vm2696 = vcmp.ge.f32.partialorder %v2666, 0.0
    %vm2697 = vcmp.ge.f32.partialorder %v2669, 0.0
    %vm2698 = vcmp.ge.f32.partialorder %v2672, 0.0
    %vm2699 = vcmp.ge.f32.partialorder %v2675, 0.0
    %vm2700 = vcmp.ge.f32.partialorder %v2678, 0.0
    %vm2701 = vcmp.ge.f32.partialorder %v2681, 0.0
    %vm2702 = vcmp.ge.f32.partialorder %v2684, 0.0
    %vm2703 = vcmp.ge.f32.partialorder %v2687, 0.0
    %vm2704 = vcmp.ge.f32.partialorder %v2690, 0.0
    %vm2705 = vcmp.ge.f32.partialorder %v2693, 0.0
    %v2706 = vmul.f32 %v2663, 0.01
    %v2707 = vmul.f32 %v2666, 0.01
    %v2708 = vmul.f32 %v2669, 0.01
    %v2709 = vmul.f32 %v2672, 0.01
    %v2710 = vmul.f32 %v2675, 0.01
    %v2711 = vmul.f32 %v2678, 0.01
    %v2712 = vmul.f32 %v2681, 0.01
    %v2713 = vmul.f32 %v2684, 0.01
    %v2714 = vmul.f32 %v2687, 0.01
    %v2715 = vmul.f32 %v2690, 0.01
    %v2716 = vmul.f32 %v2693, 0.01
    %v2717 = vsel %vm2695, %v2663, %v2706
    %v2718 = vsel %vm2696, %v2666, %v2707
    %v2719 = vsel %vm2697, %v2669, %v2708
    %v2720 = vsel %vm2698, %v2672, %v2709
    %v2721 = vsel %vm2699, %v2675, %v2710
    %v2722 = vsel %vm2700, %v2678, %v2711
    %v2723 = vsel %vm2701, %v2681, %v2712
    %v2724 = vsel %vm2702, %v2684, %v2713
    %v2725 = vsel %vm2703, %v2687, %v2714
    %v2726 = vsel %vm2704, %v2690, %v2715
    %v2727 = vsel %vm2705, %v2693, %v2716
    %v2728 = vsel %vm420, %v2717, 0.0
    %2729 = vadd.xlane.f32.xlu0 %v2728
    %v2730 = vpop.xlane.xlu0 %2729
    %v2731 = vsel %vm420, %v2718, 0.0
    %2732 = vadd.xlane.f32.xlu0 %v2731
    %v2733 = vpop.xlane.xlu0 %2732
    %v2734 = vsel %vm420, %v2719, 0.0
    %2735 = vadd.xlane.f32.xlu0 %v2734
    %v2736 = vpop.xlane.xlu0 %2735
    %v2737 = vsel %vm420, %v2720, 0.0
    %2738 = vadd.xlane.f32.xlu0 %v2737
    %v2739 = vpop.xlane.xlu0 %2738
    %v2740 = vsel %vm420, %v2721, 0.0
    %2741 = vadd.xlane.f32.xlu0 %v2740
    %v2742 = vpop.xlane.xlu0 %2741
    %v2743 = vsel %vm420, %v2722, 0.0
    %2744 = vadd.xlane.f32.xlu0 %v2743
    %v2745 = vpop.xlane.xlu0 %2744
    %v2746 = vsel %vm420, %v2723, 0.0
    %2747 = vadd.xlane.f32.xlu0 %v2746
    %v2748 = vpop.xlane.xlu0 %2747
    %v2749 = vsel %vm420, %v2724, 0.0
    %2750 = vadd.xlane.f32.xlu0 %v2749
    %v2751 = vpop.xlane.xlu0 %2750
    %v2752 = vsel %vm420, %v2725, 0.0
    %2753 = vadd.xlane.f32.xlu0 %v2752
    %v2754 = vpop.xlane.xlu0 %2753
    %v2755 = vsel %vm420, %v2726, 0.0
    %2756 = vadd.xlane.f32.xlu0 %v2755
    %v2757 = vpop.xlane.xlu0 %2756
    %v2758 = vsel %vm420, %v2727, 0.0
    %2759 = vadd.xlane.f32.xlu0 %v2758
    %v2760 = vpop.xlane.xlu0 %2759
    %v2761 = vmul.f32 %v2730, %v1304
    %v2762 = vmul.f32 %v2733, %v1304
    %v2763 = vmul.f32 %v2736, %v1304
    %v2764 = vmul.f32 %v2739, %v1304
    %v2765 = vmul.f32 %v2742, %v1304
    %v2766 = vmul.f32 %v2745, %v1304
    %v2767 = vmul.f32 %v2748, %v1304
    %v2768 = vmul.f32 %v2751, %v1304
    %v2769 = vmul.f32 %v2754, %v1304
    %v2770 = vmul.f32 %v2757, %v1304
    %v2771 = vmul.f32 %v2760, %v1304
    %v2772 = vsub.f32 %v2717, %v2761
    %v2773 = vsub.f32 %v2718, %v2762
    %v2774 = vsub.f32 %v2719, %v2763
    %v2775 = vsub.f32 %v2720, %v2764
    %v2776 = vsub.f32 %v2721, %v2765
    %v2777 = vsub.f32 %v2722, %v2766
    %v2778 = vsub.f32 %v2723, %v2767
    %v2779 = vsub.f32 %v2724, %v2768
    %v2780 = vsub.f32 %v2725, %v2769
    %v2781 = vsub.f32 %v2726, %v2770
    %v2782 = vsub.f32 %v2727, %v2771
    %v2783 = vmul.f32 %v2772, %v2772
    %v2784 = vmul.f32 %v2773, %v2773
    %v2785 = vmul.f32 %v2774, %v2774
    %v2786 = vmul.f32 %v2775, %v2775
    %v2787 = vmul.f32 %v2776, %v2776
    %v2788 = vmul.f32 %v2777, %v2777
    %v2789 = vmul.f32 %v2778, %v2778
    %v2790 = vmul.f32 %v2779, %v2779
    %v2791 = vmul.f32 %v2780, %v2780
    %v2792 = vmul.f32 %v2781, %v2781
    %v2793 = vmul.f32 %v2782, %v2782
    %v2794 = vsel %vm420, %v2783, 0.0
    %2795 = vadd.xlane.f32.xlu0 %v2794
    %v2796 = vpop.xlane.xlu0 %2795
    %v2797 = vsel %vm420, %v2784, 0.0
    %2798 = vadd.xlane.f32.xlu0 %v2797
    %v2799 = vpop.xlane.xlu0 %2798
    %v2800 = vsel %vm420, %v2785, 0.0
    %2801 = vadd.xlane.f32.xlu0 %v2800
    %v2802 = vpop.xlane.xlu0 %2801
    %v2803 = vsel %vm420, %v2786, 0.0
    %2804 = vadd.xlane.f32.xlu0 %v2803
    %v2805 = vpop.xlane.xlu0 %2804
    %v2806 = vsel %vm420, %v2787, 0.0
    %2807 = vadd.xlane.f32.xlu0 %v2806
    %v2808 = vpop.xlane.xlu0 %2807
    %v2809 = vsel %vm420, %v2788, 0.0
    %2810 = vadd.xlane.f32.xlu0 %v2809
    %v2811 = vpop.xlane.xlu0 %2810
    %v2812 = vsel %vm420, %v2789, 0.0
    %2813 = vadd.xlane.f32.xlu0 %v2812
    %v2814 = vpop.xlane.xlu0 %2813
    %v2815 = vsel %vm420, %v2790, 0.0
    %2816 = vadd.xlane.f32.xlu0 %v2815
    %v2817 = vpop.xlane.xlu0 %2816
    %v2818 = vsel %vm420, %v2791, 0.0
    %2819 = vadd.xlane.f32.xlu0 %v2818
    %v2820 = vpop.xlane.xlu0 %2819
    %v2821 = vsel %vm420, %v2792, 0.0
    %2822 = vadd.xlane.f32.xlu0 %v2821
    %v2823 = vpop.xlane.xlu0 %2822
    %v2824 = vsel %vm420, %v2793, 0.0
    %2825 = vadd.xlane.f32.xlu0 %v2824
    %v2826 = vpop.xlane.xlu0 %2825
    %v2827 = vmul.f32 %v2796, %v1304
    %v2828 = vmul.f32 %v2799, %v1304
    %v2829 = vmul.f32 %v2802, %v1304
    %v2830 = vmul.f32 %v2805, %v1304
    %v2831 = vmul.f32 %v2808, %v1304
    %v2832 = vmul.f32 %v2811, %v1304
    %v2833 = vmul.f32 %v2814, %v1304
    %v2834 = vmul.f32 %v2817, %v1304
    %v2835 = vmul.f32 %v2820, %v1304
    %v2836 = vmul.f32 %v2823, %v1304
    %v2837 = vmul.f32 %v2826, %v1304
    %v2838 = vadd.f32 %v2827, 1e-05
    %v2839 = vadd.f32 %v2828, 1e-05
    %v2840 = vadd.f32 %v2829, 1e-05
    %v2841 = vadd.f32 %v2830, 1e-05
    %v2842 = vadd.f32 %v2831, 1e-05
    %v2843 = vadd.f32 %v2832, 1e-05
    %v2844 = vadd.f32 %v2833, 1e-05
    %v2845 = vadd.f32 %v2834, 1e-05
    %v2846 = vadd.f32 %v2835, 1e-05
    %v2847 = vadd.f32 %v2836, 1e-05
    %v2848 = vadd.f32 %v2837, 1e-05
    %v2849 = vrsqrt.pop %v2838
    %v2850 = vmul.f32 %v2849, %v2838
    %v2851 = vmul.f32 %v2850, %v2849
    %v2852 = vmul.f32 0.5, %v2851
    %v2853 = vsub.f32 1.5, %v2852
    %v2854 = vmul.f32 %v2849, %v2853
    %vm2855 = vweird.f32 %v2838
    %vm2856 = vweird.f32 %v2849
    %vm2857 = vmor %vm2855, %vm2856
    %v2858 = vsel %vm2857, %v2849, %v2854
    %v2859 = vrsqrt.pop %v2839
    %v2860 = vmul.f32 %v2859, %v2839
    %v2861 = vmul.f32 %v2860, %v2859
    %v2862 = vmul.f32 0.5, %v2861
    %v2863 = vsub.f32 1.5, %v2862
    %v2864 = vmul.f32 %v2859, %v2863
    %vm2865 = vweird.f32 %v2839
    %vm2866 = vweird.f32 %v2859
    %vm2867 = vmor %vm2865, %vm2866
    %v2868 = vsel %vm2867, %v2859, %v2864
    %v2869 = vrsqrt.pop %v2840
    %v2870 = vmul.f32 %v2869, %v2840
    %v2871 = vmul.f32 %v2870, %v2869
    %v2872 = vmul.f32 0.5, %v2871
    %v2873 = vsub.f32 1.5, %v2872
    %v2874 = vmul.f32 %v2869, %v2873
    %vm2875 = vweird.f32 %v2840
    %vm2876 = vweird.f32 %v2869
    %vm2877 = vmor %vm2875, %vm2876
    %v2878 = vsel %vm2877, %v2869, %v2874
    %v2879 = vrsqrt.pop %v2841
    %v2880 = vmul.f32 %v2879, %v2841
    %v2881 = vmul.f32 %v2880, %v2879
    %v2882 = vmul.f32 0.5, %v2881
    %v2883 = vsub.f32 1.5, %v2882
    %v2884 = vmul.f32 %v2879, %v2883
    %vm2885 = vweird.f32 %v2841
    %vm2886 = vweird.f32 %v2879
    %vm2887 = vmor %vm2885, %vm2886
    %v2888 = vsel %vm2887, %v2879, %v2884
    %v2889 = vrsqrt.pop %v2842
    %v2890 = vmul.f32 %v2889, %v2842
    %v2891 = vmul.f32 %v2890, %v2889
    %v2892 = vmul.f32 0.5, %v2891
    %v2893 = vsub.f32 1.5, %v2892
    %v2894 = vmul.f32 %v2889, %v2893
    %vm2895 = vweird.f32 %v2842
    %vm2896 = vweird.f32 %v2889
    %vm2897 = vmor %vm2895, %vm2896
    %v2898 = vsel %vm2897, %v2889, %v2894
    %v2899 = vrsqrt.pop %v2843
    %v2900 = vmul.f32 %v2899, %v2843
    %v2901 = vmul.f32 %v2900, %v2899
    %v2902 = vmul.f32 0.5, %v2901
    %v2903 = vsub.f32 1.5, %v2902
    %v2904 = vmul.f32 %v2899, %v2903
    %vm2905 = vweird.f32 %v2843
    %vm2906 = vweird.f32 %v2899
    %vm2907 = vmor %vm2905, %vm2906
    %v2908 = vsel %vm2907, %v2899, %v2904
    %v2909 = vrsqrt.pop %v2844
    %v2910 = vmul.f32 %v2909, %v2844
    %v2911 = vmul.f32 %v2910, %v2909
    %v2912 = vmul.f32 0.5, %v2911
    %v2913 = vsub.f32 1.5, %v2912
    %v2914 = vmul.f32 %v2909, %v2913
    %vm2915 = vweird.f32 %v2844
    %vm2916 = vweird.f32 %v2909
    %vm2917 = vmor %vm2915, %vm2916
    %v2918 = vsel %vm2917, %v2909, %v2914
    %v2919 = vrsqrt.pop %v2845
    %v2920 = vmul.f32 %v2919, %v2845
    %v2921 = vmul.f32 %v2920, %v2919
    %v2922 = vmul.f32 0.5, %v2921
    %v2923 = vsub.f32 1.5, %v2922
    %v2924 = vmul.f32 %v2919, %v2923
    %vm2925 = vweird.f32 %v2845
    %vm2926 = vweird.f32 %v2919
    %vm2927 = vmor %vm2925, %vm2926
    %v2928 = vsel %vm2927, %v2919, %v2924
    %v2929 = vrsqrt.pop %v2846
    %v2930 = vmul.f32 %v2929, %v2846
    %v2931 = vmul.f32 %v2930, %v2929
    %v2932 = vmul.f32 0.5, %v2931
    %v2933 = vsub.f32 1.5, %v2932
    %v2934 = vmul.f32 %v2929, %v2933
    %vm2935 = vweird.f32 %v2846
    %vm2936 = vweird.f32 %v2929
    %vm2937 = vmor %vm2935, %vm2936
    %v2938 = vsel %vm2937, %v2929, %v2934
    %v2939 = vrsqrt.pop %v2847
    %v2940 = vmul.f32 %v2939, %v2847
    %v2941 = vmul.f32 %v2940, %v2939
    %v2942 = vmul.f32 0.5, %v2941
    %v2943 = vsub.f32 1.5, %v2942
    %v2944 = vmul.f32 %v2939, %v2943
    %vm2945 = vweird.f32 %v2847
    %vm2946 = vweird.f32 %v2939
    %vm2947 = vmor %vm2945, %vm2946
    %v2948 = vsel %vm2947, %v2939, %v2944
    %v2949 = vrsqrt.pop %v2848
    %v2950 = vmul.f32 %v2949, %v2848
    %v2951 = vmul.f32 %v2950, %v2949
    %v2952 = vmul.f32 0.5, %v2951
    %v2953 = vsub.f32 1.5, %v2952
    %v2954 = vmul.f32 %v2949, %v2953
    %vm2955 = vweird.f32 %v2848
    %vm2956 = vweird.f32 %v2949
    %vm2957 = vmor %vm2955, %vm2956
    %v2958 = vsel %vm2957, %v2949, %v2954
    %v2959 = vmul.f32 %v2772, %v2858
    %v2960 = vmul.f32 %v2773, %v2868
    %v2961 = vmul.f32 %v2774, %v2878
    %v2962 = vmul.f32 %v2775, %v2888
    %v2963 = vmul.f32 %v2776, %v2898
    %v2964 = vmul.f32 %v2777, %v2908
    %v2965 = vmul.f32 %v2778, %v2918
    %v2966 = vmul.f32 %v2779, %v2928
    %v2967 = vmul.f32 %v2780, %v2938
    %v2968 = vmul.f32 %v2781, %v2948
    %v2969 = vmul.f32 %v2782, %v2958
    %s2970 = scalar_lea.vmem %s5, 88
    %v2971 = vld [vmem:[%s2970] sm:$0xff]
    %v2972 = vld [vmem:[%s2970 + $0x8] sm:$0xff]
    %v2973 = vld [vmem:[%s2970 + $0x10] sm:$0xff]
    %v2974 = vld [vmem:[%s2970 + $0x18] sm:$0xff]
    %v2975 = vld [vmem:[%s2970 + $0x20] sm:$0xff]
    %v2976 = vld [vmem:[%s2970 + $0x28] sm:$0xff]
    %v2977 = vld [vmem:[%s2970 + $0x30] sm:$0xff]
    %v2978 = vld [vmem:[%s2970 + $0x38] sm:$0xff]
    %v2979 = vld [vmem:[%s2970 + $0x40] sm:$0xff]
    %v2980 = vld [vmem:[%s2970 + $0x48] sm:$0xff]
    %v2981 = vld [vmem:[%s2970 + $0x50] sm:$0xff]
    %v2982 = vmul.f32 %v2959, %v2971
    %v2983 = vmul.f32 %v2960, %v2972
    %v2984 = vmul.f32 %v2961, %v2973
    %v2985 = vmul.f32 %v2962, %v2974
    %v2986 = vmul.f32 %v2963, %v2975
    %v2987 = vmul.f32 %v2964, %v2976
    %v2988 = vmul.f32 %v2965, %v2977
    %v2989 = vmul.f32 %v2966, %v2978
    %v2990 = vmul.f32 %v2967, %v2979
    %v2991 = vmul.f32 %v2968, %v2980
    %v2992 = vmul.f32 %v2969, %v2981
    %s2993 = scalar_lea.vmem %s6, 88
    %v2994 = vld [vmem:[%s2993] sm:$0xff]
    %v2995 = vld [vmem:[%s2993 + $0x8] sm:$0xff]
    %v2996 = vld [vmem:[%s2993 + $0x10] sm:$0xff]
    %v2997 = vld [vmem:[%s2993 + $0x18] sm:$0xff]
    %v2998 = vld [vmem:[%s2993 + $0x20] sm:$0xff]
    %v2999 = vld [vmem:[%s2993 + $0x28] sm:$0xff]
    %v3000 = vld [vmem:[%s2993 + $0x30] sm:$0xff]
    %v3001 = vld [vmem:[%s2993 + $0x38] sm:$0xff]
    %v3002 = vld [vmem:[%s2993 + $0x40] sm:$0xff]
    %v3003 = vld [vmem:[%s2993 + $0x48] sm:$0xff]
    %v3004 = vld [vmem:[%s2993 + $0x50] sm:$0xff]
    %v3005 = vadd.f32 %v2982, %v2994
    %v3006 = vadd.f32 %v2983, %v2995
    %v3007 = vadd.f32 %v2984, %v2996
    %v3008 = vadd.f32 %v2985, %v2997
    %v3009 = vadd.f32 %v2986, %v2998
    %v3010 = vadd.f32 %v2987, %v2999
    %v3011 = vadd.f32 %v2988, %v3000
    %v3012 = vadd.f32 %v2989, %v3001
    %v3013 = vadd.f32 %v2990, %v3002
    %v3014 = vadd.f32 %v2991, %v3003
    %v3015 = vadd.f32 %v2992, %v3004
    %v3016 = vld [vmem:[%s1] sm:$0xff]
    %v3017 = vld [vmem:[%s1 + $0x8] sm:$0xff]
    %v3018 = vld [vmem:[%s1 + $0x10] sm:$0xff]
    %v3019 = vld [vmem:[%s1 + $0x18] sm:$0xff]
    %v3020 = vld [vmem:[%s1 + $0x20] sm:$0xff]
    %v3021 = vld [vmem:[%s1 + $0x28] sm:$0xff]
    %v3022 = vld [vmem:[%s1 + $0x30] sm:$0xff]
    %v3023 = vld [vmem:[%s1 + $0x38] sm:$0xff]
    %v3024 = vld [vmem:[%s1 + $0x40] sm:$0xff]
    %v3025 = vld [vmem:[%s1 + $0x48] sm:$0xff]
    %v3026 = vld [vmem:[%s1 + $0x50] sm:$0xff]
    %v3027 = vld [vmem:[%s1 + $0x58] sm:$0xff]
    %v3028 = vld [vmem:[%s1 + $0x60] sm:$0xff]
    %v3029 = vld [vmem:[%s1 + $0x68] sm:$0xff]
    %v3030 = vld [vmem:[%s1 + $0x70] sm:$0xff]
    %v3031 = vld [vmem:[%s1 + $0x78] sm:$0xff]
    %v3032 = vld [vmem:[%s1 + $0x80] sm:$0xff]
    %v3033 = vld [vmem:[%s1 + $0x88] sm:$0xff]
    %v3034 = vld [vmem:[%s1 + $0x90] sm:$0xff]
    %v3035 = vld [vmem:[%s1 + $0x98] sm:$0xff]
    %v3036 = vld [vmem:[%s1 + $0xa0] sm:$0xff]
    %v3037 = vld [vmem:[%s1 + $0xa8] sm:$0xff]
    %v3038 = vld [vmem:[%s1 + $0xb0] sm:$0xff]
    %v3039 = vld [vmem:[%s1 + $0xb8] sm:$0xff]
    %v3040 = vld [vmem:[%s1 + $0xc0] sm:$0xff]
    %v3041 = vld [vmem:[%s1 + $0xc8] sm:$0xff]
    %v3042 = vld [vmem:[%s1 + $0xd0] sm:$0xff]
    %v3043 = vld [vmem:[%s1 + $0xd8] sm:$0xff]
    %v3045 = vsel %vm122, %v3016, 0
    %v3048 = vsel %vm122, %v3017, 0
    %v3051 = vsel %vm122, %v3018, 0
    %v3054 = vsel %vm122, %v3019, 0
    %v3057 = vsel %vm122, %v3020, 0
    %v3060 = vsel %vm122, %v3021, 0
    %v3063 = vsel %vm122, %v3022, 0
    %v3066 = vsel %vm122, %v3023, 0
    %v3069 = vsel %vm122, %v3024, 0
    %v3072 = vsel %vm122, %v3025, 0
    %v3075 = vsel %vm122, %v3026, 0
    %v3078 = vsel %vm122, %v3027, 0
    %v3081 = vsel %vm122, %v3028, 0
    %v3084 = vsel %vm122, %v3029, 0
    %v3087 = vsel %vm122, %v3030, 0
    %v3090 = vsel %vm122, %v3031, 0
    %v3093 = vsel %vm122, %v3032, 0
    %v3096 = vsel %vm122, %v3033, 0
    %v3099 = vsel %vm122, %v3034, 0
    %v3102 = vsel %vm122, %v3035, 0
    %v3105 = vsel %vm122, %v3036, 0
    %v3108 = vsel %vm122, %v3037, 0
    %v3111 = vsel %vm122, %v3038, 0
    %v3114 = vsel %vm122, %v3039, 0
    %v3117 = vsel %vm122, %v3040, 0
    %v3120 = vsel %vm122, %v3041, 0
    %v3123 = vsel %vm122, %v3042, 0
    %v3126 = vsel %vm122, %v3043, 0
    %3128 = vmatpush.msra.mxu0 0.0
    %3129 = vmatpush.msra.mxu0 0.0
    %3130 = vmatpush.msra.mxu0 0.0
    %3131 = vmatpush.msra.mxu0 0.0
    %3132 = vmatpush.msra.mxu0 0.0
    %3133 = vmatpush.msra.mxu0 %v3015
    %3134 = vmatpush.msra.mxu0 %v3014
    %3135 = vmatpush.msra.mxu0 %v3013
    %3136 = vmatpush.msra.mxu0 %v3012
    %3137 = vmatpush.msra.mxu0 %v3011
    %3138 = vmatpush.msra.mxu0 %v3010
    %3139 = vmatpush.msra.mxu0 %v3009
    %3140 = vmatpush.msra.mxu0 %v3008
    %3141 = vmatpush.msra.mxu0 %v3007
    %3142 = vmatpush.msra.mxu0 %v3006
    %3143 = vmatpush.msra.mxu0 %v3005
    %3144 = vmatmul.f32.gmra.mxu0 %v3045
    %v3145 = vpop.f32.mrf.mxu0
    %v3146 = vadd.f32 0.0, %v3145
    %3147 = vmatmul.f32.gmra.mxu0 %v3048
    %v3148 = vpop.f32.mrf.mxu0
    %v3149 = vadd.f32 0.0, %v3148
    %3150 = vmatmul.f32.gmra.mxu0 %v3051
    %v3151 = vpop.f32.mrf.mxu0
    %v3152 = vadd.f32 0.0, %v3151
    %3153 = vmatmul.f32.gmra.mxu0 %v3054
    %v3154 = vpop.f32.mrf.mxu0
    %v3155 = vadd.f32 0.0, %v3154
    %3156 = vmatmul.f32.gmra.mxu0 %v3057
    %v3157 = vpop.f32.mrf.mxu0
    %v3158 = vadd.f32 0.0, %v3157
    %3159 = vmatmul.f32.gmra.mxu0 %v3060
    %v3160 = vpop.f32.mrf.mxu0
    %v3161 = vadd.f32 0.0, %v3160
    %3162 = vmatmul.f32.gmra.mxu0 %v3063
    %v3163 = vpop.f32.mrf.mxu0
    %v3164 = vadd.f32 0.0, %v3163
    %3165 = vmatmul.f32.gmra.mxu0 %v3066
    %v3166 = vpop.f32.mrf.mxu0
    %v3167 = vadd.f32 0.0, %v3166
    %3168 = vmatmul.f32.gmra.mxu0 %v3069
    %v3169 = vpop.f32.mrf.mxu0
    %v3170 = vadd.f32 0.0, %v3169
    %3171 = vmatmul.f32.gmra.mxu0 %v3072
    %v3172 = vpop.f32.mrf.mxu0
    %v3173 = vadd.f32 0.0, %v3172
    %3174 = vmatmul.f32.gmra.mxu0 %v3075
    %v3175 = vpop.f32.mrf.mxu0
    %v3176 = vadd.f32 0.0, %v3175
    %3177 = vmatmul.f32.gmra.mxu0 %v3078
    %v3178 = vpop.f32.mrf.mxu0
    %v3179 = vadd.f32 0.0, %v3178
    %3180 = vmatmul.f32.gmra.mxu0 %v3081
    %v3181 = vpop.f32.mrf.mxu0
    %v3182 = vadd.f32 0.0, %v3181
    %3183 = vmatmul.f32.gmra.mxu0 %v3084
    %v3184 = vpop.f32.mrf.mxu0
    %v3185 = vadd.f32 0.0, %v3184
    %3186 = vmatmul.f32.gmra.mxu0 %v3087
    %v3187 = vpop.f32.mrf.mxu0
    %v3188 = vadd.f32 0.0, %v3187
    %3189 = vmatmul.f32.gmra.mxu0 %v3090
    %v3190 = vpop.f32.mrf.mxu0
    %v3191 = vadd.f32 0.0, %v3190
    %3192 = vmatmul.f32.gmra.mxu0 %v3093
    %v3193 = vpop.f32.mrf.mxu0
    %v3194 = vadd.f32 0.0, %v3193
    %3195 = vmatmul.f32.gmra.mxu0 %v3096
    %v3196 = vpop.f32.mrf.mxu0
    %v3197 = vadd.f32 0.0, %v3196
    %3198 = vmatmul.f32.gmra.mxu0 %v3099
    %v3199 = vpop.f32.mrf.mxu0
    %v3200 = vadd.f32 0.0, %v3199
    %3201 = vmatmul.f32.gmra.mxu0 %v3102
    %v3202 = vpop.f32.mrf.mxu0
    %v3203 = vadd.f32 0.0, %v3202
    %3204 = vmatmul.f32.gmra.mxu0 %v3105
    %v3205 = vpop.f32.mrf.mxu0
    %v3206 = vadd.f32 0.0, %v3205
    %3207 = vmatmul.f32.gmra.mxu0 %v3108
    %v3208 = vpop.f32.mrf.mxu0
    %v3209 = vadd.f32 0.0, %v3208
    %3210 = vmatmul.f32.gmra.mxu0 %v3111
    %v3211 = vpop.f32.mrf.mxu0
    %v3212 = vadd.f32 0.0, %v3211
    %3213 = vmatmul.f32.gmra.mxu0 %v3114
    %v3214 = vpop.f32.mrf.mxu0
    %v3215 = vadd.f32 0.0, %v3214
    %3216 = vmatmul.f32.gmra.mxu0 %v3117
    %v3217 = vpop.f32.mrf.mxu0
    %v3218 = vadd.f32 0.0, %v3217
    %3219 = vmatmul.f32.gmra.mxu0 %v3120
    %v3220 = vpop.f32.mrf.mxu0
    %v3221 = vadd.f32 0.0, %v3220
    %3222 = vmatmul.f32.gmra.mxu0 %v3123
    %v3223 = vpop.f32.mrf.mxu0
    %v3224 = vadd.f32 0.0, %v3223
    %3225 = vmatmul.f32.gmra.mxu0 %v3126
    %v3226 = vpop.f32.mrf.mxu0
    %v3227 = vadd.f32 0.0, %v3226
    %3228 = vdwg.mxu0
    %s3229 = scalar_lea.vmem [#allocation6], 1792
    %v3230 = vld [vmem:[%s3229] sm:$0xff]
    %v3231 = vld [vmem:[%s3229 + $0x8] sm:$0xff]
    %v3232 = vld [vmem:[%s3229 + $0x10] sm:$0xff]
    %v3233 = vld [vmem:[%s3229 + $0x18] sm:$0xff]
    %v3234 = vld [vmem:[%s3229 + $0x20] sm:$0xff]
    %v3235 = vld [vmem:[%s3229 + $0x28] sm:$0xff]
    %v3236 = vld [vmem:[%s3229 + $0x30] sm:$0xff]
    %v3237 = vld [vmem:[%s3229 + $0x38] sm:$0xff]
    %v3238 = vld [vmem:[%s3229 + $0x40] sm:$0xff]
    %v3239 = vld [vmem:[%s3229 + $0x48] sm:$0xff]
    %v3240 = vld [vmem:[%s3229 + $0x50] sm:$0xff]
    %v3241 = vld [vmem:[%s3229 + $0x58] sm:$0xff]
    %v3242 = vld [vmem:[%s3229 + $0x60] sm:$0xff]
    %v3243 = vld [vmem:[%s3229 + $0x68] sm:$0xff]
    %v3244 = vld [vmem:[%s3229 + $0x70] sm:$0xff]
    %v3245 = vld [vmem:[%s3229 + $0x78] sm:$0xff]
    %v3246 = vld [vmem:[%s3229 + $0x80] sm:$0xff]
    %v3247 = vld [vmem:[%s3229 + $0x88] sm:$0xff]
    %v3248 = vld [vmem:[%s3229 + $0x90] sm:$0xff]
    %v3249 = vld [vmem:[%s3229 + $0x98] sm:$0xff]
    %v3250 = vld [vmem:[%s3229 + $0xa0] sm:$0xff]
    %v3251 = vld [vmem:[%s3229 + $0xa8] sm:$0xff]
    %v3252 = vld [vmem:[%s3229 + $0xb0] sm:$0xff]
    %v3253 = vld [vmem:[%s3229 + $0xb8] sm:$0xff]
    %v3254 = vld [vmem:[%s3229 + $0xc0] sm:$0xff]
    %v3255 = vld [vmem:[%s3229 + $0xc8] sm:$0xff]
    %v3256 = vld [vmem:[%s3229 + $0xd0] sm:$0xff]
    %v3257 = vld [vmem:[%s3229 + $0xd8] sm:$0xff]
    %v3258 = vld [vmem:[%s3229 + $0xe0] sm:$0xff]
    %v3259 = vld [vmem:[%s3229 + $0xe8] sm:$0xff]
    %v3260 = vld [vmem:[%s3229 + $0xf0] sm:$0xff]
    %v3261 = vld [vmem:[%s3229 + $0xf8] sm:$0xff]
    %v3262 = vld [vmem:[%s3229 + $0x100] sm:$0xff]
    %v3263 = vld [vmem:[%s3229 + $0x108] sm:$0xff]
    %v3264 = vld [vmem:[%s3229 + $0x110] sm:$0xff]
    %v3265 = vld [vmem:[%s3229 + $0x118] sm:$0xff]
    %v3266 = vld [vmem:[%s3229 + $0x120] sm:$0xff]
    %v3267 = vld [vmem:[%s3229 + $0x128] sm:$0xff]
    %v3268 = vld [vmem:[%s3229 + $0x130] sm:$0xff]
    %v3269 = vld [vmem:[%s3229 + $0x138] sm:$0xff]
    %v3270 = vld [vmem:[%s3229 + $0x140] sm:$0xff]
    %v3271 = vld [vmem:[%s3229 + $0x148] sm:$0xff]
    %v3272 = vld [vmem:[%s3229 + $0x150] sm:$0xff]
    %v3273 = vld [vmem:[%s3229 + $0x158] sm:$0xff]
    %v3274 = vld [vmem:[%s3229 + $0x160] sm:$0xff]
    %v3275 = vld [vmem:[%s3229 + $0x168] sm:$0xff]
    %v3276 = vld [vmem:[%s3229 + $0x170] sm:$0xff]
    %v3277 = vld [vmem:[%s3229 + $0x178] sm:$0xff]
    %v3278 = vld [vmem:[%s3229 + $0x180] sm:$0xff]
    %v3279 = vld [vmem:[%s3229 + $0x188] sm:$0xff]
    %v3280 = vld [vmem:[%s3229 + $0x190] sm:$0xff]
    %v3281 = vld [vmem:[%s3229 + $0x198] sm:$0xff]
    %v3282 = vld [vmem:[%s3229 + $0x1a0] sm:$0xff]
    %v3283 = vld [vmem:[%s3229 + $0x1a8] sm:$0xff]
    %v3284 = vld [vmem:[%s3229 + $0x1b0] sm:$0xff]
    %v3285 = vld [vmem:[%s3229 + $0x1b8] sm:$0xff]
    %v3286 = vld [vmem:[%s3229 + $0x1c0] sm:$0xff]
    %v3287 = vld [vmem:[%s3229 + $0x1c8] sm:$0xff]
    %v3288 = vld [vmem:[%s3229 + $0x1d0] sm:$0xff]
    %v3289 = vld [vmem:[%s3229 + $0x1d8] sm:$0xff]
    %v3290 = vld [vmem:[%s3229 + $0x1e0] sm:$0xff]
    %v3291 = vld [vmem:[%s3229 + $0x1e8] sm:$0xff]
    %v3292 = vld [vmem:[%s3229 + $0x1f0] sm:$0xff]
    %v3293 = vld [vmem:[%s3229 + $0x1f8] sm:$0xff]
    %v3294 = vld [vmem:[%s3229 + $0x200] sm:$0xff]
    %v3295 = vld [vmem:[%s3229 + $0x208] sm:$0xff]
    %v3296 = vld [vmem:[%s3229 + $0x210] sm:$0xff]
    %v3297 = vld [vmem:[%s3229 + $0x218] sm:$0xff]
    %v3298 = vld [vmem:[%s3229 + $0x220] sm:$0xff]
    %v3299 = vld [vmem:[%s3229 + $0x228] sm:$0xff]
    %v3300 = vld [vmem:[%s3229 + $0x230] sm:$0xff]
    %v3301 = vld [vmem:[%s3229 + $0x238] sm:$0xff]
    %v3302 = vld [vmem:[%s3229 + $0x240] sm:$0xff]
    %v3303 = vld [vmem:[%s3229 + $0x248] sm:$0xff]
    %v3304 = vld [vmem:[%s3229 + $0x250] sm:$0xff]
    %v3305 = vld [vmem:[%s3229 + $0x258] sm:$0xff]
    %v3306 = vld [vmem:[%s3229 + $0x260] sm:$0xff]
    %v3307 = vld [vmem:[%s3229 + $0x268] sm:$0xff]
    %v3308 = vld [vmem:[%s3229 + $0x270] sm:$0xff]
    %v3309 = vld [vmem:[%s3229 + $0x278] sm:$0xff]
    %v3310 = vld [vmem:[%s3229 + $0x280] sm:$0xff]
    %v3311 = vld [vmem:[%s3229 + $0x288] sm:$0xff]
    %v3312 = vld [vmem:[%s3229 + $0x290] sm:$0xff]
    %v3313 = vld [vmem:[%s3229 + $0x298] sm:$0xff]
    %v3314 = vld [vmem:[%s3229 + $0x2a0] sm:$0xff]
    %v3315 = vld [vmem:[%s3229 + $0x2a8] sm:$0xff]
    %v3316 = vld [vmem:[%s3229 + $0x2b0] sm:$0xff]
    %v3317 = vld [vmem:[%s3229 + $0x2b8] sm:$0xff]
    %v3318 = vld [vmem:[%s3229 + $0x2c0] sm:$0xff]
    %v3319 = vld [vmem:[%s3229 + $0x2c8] sm:$0xff]
    %v3320 = vld [vmem:[%s3229 + $0x2d0] sm:$0xff]
    %v3321 = vld [vmem:[%s3229 + $0x2d8] sm:$0xff]
    %v3322 = vld [vmem:[%s3229 + $0x2e0] sm:$0xff]
    %v3323 = vld [vmem:[%s3229 + $0x2e8] sm:$0xff]
    %v3324 = vld [vmem:[%s3229 + $0x2f0] sm:$0xff]
    %v3325 = vld [vmem:[%s3229 + $0x2f8] sm:$0xff]
    %v3326 = vld [vmem:[%s3229 + $0x300] sm:$0xff]
    %v3327 = vld [vmem:[%s3229 + $0x308] sm:$0xff]
    %v3328 = vld [vmem:[%s3229 + $0x310] sm:$0xff]
    %v3329 = vld [vmem:[%s3229 + $0x318] sm:$0xff]
    %v3330 = vld [vmem:[%s3229 + $0x320] sm:$0xff]
    %v3331 = vld [vmem:[%s3229 + $0x328] sm:$0xff]
    %v3332 = vld [vmem:[%s3229 + $0x330] sm:$0xff]
    %v3333 = vld [vmem:[%s3229 + $0x338] sm:$0xff]
    %v3334 = vld [vmem:[%s3229 + $0x340] sm:$0xff]
    %v3335 = vld [vmem:[%s3229 + $0x348] sm:$0xff]
    %v3336 = vld [vmem:[%s3229 + $0x350] sm:$0xff]
    %v3337 = vld [vmem:[%s3229 + $0x358] sm:$0xff]
    %v3338 = vld [vmem:[%s3229 + $0x360] sm:$0xff]
    %v3339 = vld [vmem:[%s3229 + $0x368] sm:$0xff]
    %v3340 = vld [vmem:[%s3229 + $0x370] sm:$0xff]
    %v3341 = vld [vmem:[%s3229 + $0x378] sm:$0xff]
    %v3343 = vsel %vm420, %v3146, 0
    %3345 = vmatpush.msra.mxu0 0.0
    %3346 = vmatpush.msra.mxu0 0.0
    %3347 = vmatpush.msra.mxu0 0.0
    %3348 = vmatpush.msra.mxu0 0.0
    %3349 = vmatpush.msra.mxu0 0.0
    %3350 = vmatpush.msra.mxu0 0.0
    %3351 = vmatpush.msra.mxu0 0.0
    %3352 = vmatpush.msra.mxu0 0.0
    %3353 = vmatpush.msra.mxu0 0.0
    %3354 = vmatpush.msra.mxu0 0.0
    %3355 = vmatpush.msra.mxu0 0.0
    %3356 = vmatpush.msra.mxu0 0.0
    %3357 = vmatpush.msra.mxu0 %v3233
    %3358 = vmatpush.msra.mxu0 %v3232
    %3359 = vmatpush.msra.mxu0 %v3231
    %3360 = vmatpush.msra.mxu0 %v3230
    %3361 = vmatmul.f32.gmra.mxu0 %v3343
    %v3362 = vpop.f32.mrf.mxu0
    %v3363 = vadd.f32 0.0, %v3362
    %3364 = vdwg.mxu0
    %v3366 = vsel %vm420, %v3149, 0
    %3368 = vmatpush.msra.mxu0 0.0
    %3369 = vmatpush.msra.mxu0 0.0
    %3370 = vmatpush.msra.mxu0 0.0
    %3371 = vmatpush.msra.mxu0 0.0
    %3372 = vmatpush.msra.mxu0 0.0
    %3373 = vmatpush.msra.mxu0 0.0
    %3374 = vmatpush.msra.mxu0 0.0
    %3375 = vmatpush.msra.mxu0 0.0
    %3376 = vmatpush.msra.mxu0 0.0
    %3377 = vmatpush.msra.mxu0 0.0
    %3378 = vmatpush.msra.mxu0 0.0
    %3379 = vmatpush.msra.mxu0 0.0
    %3380 = vmatpush.msra.mxu0 %v3237
    %3381 = vmatpush.msra.mxu0 %v3236
    %3382 = vmatpush.msra.mxu0 %v3235
    %3383 = vmatpush.msra.mxu0 %v3234
    %3384 = vmatmul.f32.gmra.mxu0 %v3366
    %v3385 = vpop.f32.mrf.mxu0
    %v3386 = vadd.f32 0.0, %v3385
    %3387 = vdwg.mxu0
    %v3389 = vsel %vm420, %v3152, 0
    %3391 = vmatpush.msra.mxu0 0.0
    %3392 = vmatpush.msra.mxu0 0.0
    %3393 = vmatpush.msra.mxu0 0.0
    %3394 = vmatpush.msra.mxu0 0.0
    %3395 = vmatpush.msra.mxu0 0.0
    %3396 = vmatpush.msra.mxu0 0.0
    %3397 = vmatpush.msra.mxu0 0.0
    %3398 = vmatpush.msra.mxu0 0.0
    %3399 = vmatpush.msra.mxu0 0.0
    %3400 = vmatpush.msra.mxu0 0.0
    %3401 = vmatpush.msra.mxu0 0.0
    %3402 = vmatpush.msra.mxu0 0.0
    %3403 = vmatpush.msra.mxu0 %v3241
    %3404 = vmatpush.msra.mxu0 %v3240
    %3405 = vmatpush.msra.mxu0 %v3239
    %3406 = vmatpush.msra.mxu0 %v3238
    %3407 = vmatmul.f32.gmra.mxu0 %v3389
    %v3408 = vpop.f32.mrf.mxu0
    %v3409 = vadd.f32 0.0, %v3408
    %3410 = vdwg.mxu0
    %v3412 = vsel %vm420, %v3155, 0
    %3414 = vmatpush.msra.mxu0 0.0
    %3415 = vmatpush.msra.mxu0 0.0
    %3416 = vmatpush.msra.mxu0 0.0
    %3417 = vmatpush.msra.mxu0 0.0
    %3418 = vmatpush.msra.mxu0 0.0
    %3419 = vmatpush.msra.mxu0 0.0
    %3420 = vmatpush.msra.mxu0 0.0
    %3421 = vmatpush.msra.mxu0 0.0
    %3422 = vmatpush.msra.mxu0 0.0
    %3423 = vmatpush.msra.mxu0 0.0
    %3424 = vmatpush.msra.mxu0 0.0
    %3425 = vmatpush.msra.mxu0 0.0
    %3426 = vmatpush.msra.mxu0 %v3245
    %3427 = vmatpush.msra.mxu0 %v3244
    %3428 = vmatpush.msra.mxu0 %v3243
    %3429 = vmatpush.msra.mxu0 %v3242
    %3430 = vmatmul.f32.gmra.mxu0 %v3412
    %v3431 = vpop.f32.mrf.mxu0
    %v3432 = vadd.f32 0.0, %v3431
    %3433 = vdwg.mxu0
    %v3435 = vsel %vm420, %v3158, 0
    %3437 = vmatpush.msra.mxu0 0.0
    %3438 = vmatpush.msra.mxu0 0.0
    %3439 = vmatpush.msra.mxu0 0.0
    %3440 = vmatpush.msra.mxu0 0.0
    %3441 = vmatpush.msra.mxu0 0.0
    %3442 = vmatpush.msra.mxu0 0.0
    %3443 = vmatpush.msra.mxu0 0.0
    %3444 = vmatpush.msra.mxu0 0.0
    %3445 = vmatpush.msra.mxu0 0.0
    %3446 = vmatpush.msra.mxu0 0.0
    %3447 = vmatpush.msra.mxu0 0.0
    %3448 = vmatpush.msra.mxu0 0.0
    %3449 = vmatpush.msra.mxu0 %v3249
    %3450 = vmatpush.msra.mxu0 %v3248
    %3451 = vmatpush.msra.mxu0 %v3247
    %3452 = vmatpush.msra.mxu0 %v3246
    %3453 = vmatmul.f32.gmra.mxu0 %v3435
    %v3454 = vpop.f32.mrf.mxu0
    %v3455 = vadd.f32 0.0, %v3454
    %3456 = vdwg.mxu0
    %v3458 = vsel %vm420, %v3161, 0
    %3460 = vmatpush.msra.mxu0 0.0
    %3461 = vmatpush.msra.mxu0 0.0
    %3462 = vmatpush.msra.mxu0 0.0
    %3463 = vmatpush.msra.mxu0 0.0
    %3464 = vmatpush.msra.mxu0 0.0
    %3465 = vmatpush.msra.mxu0 0.0
    %3466 = vmatpush.msra.mxu0 0.0
    %3467 = vmatpush.msra.mxu0 0.0
    %3468 = vmatpush.msra.mxu0 0.0
    %3469 = vmatpush.msra.mxu0 0.0
    %3470 = vmatpush.msra.mxu0 0.0
    %3471 = vmatpush.msra.mxu0 0.0
    %3472 = vmatpush.msra.mxu0 %v3253
    %3473 = vmatpush.msra.mxu0 %v3252
    %3474 = vmatpush.msra.mxu0 %v3251
    %3475 = vmatpush.msra.mxu0 %v3250
    %3476 = vmatmul.f32.gmra.mxu0 %v3458
    %v3477 = vpop.f32.mrf.mxu0
    %v3478 = vadd.f32 0.0, %v3477
    %3479 = vdwg.mxu0
    %v3481 = vsel %vm420, %v3164, 0
    %3483 = vmatpush.msra.mxu0 0.0
    %3484 = vmatpush.msra.mxu0 0.0
    %3485 = vmatpush.msra.mxu0 0.0
    %3486 = vmatpush.msra.mxu0 0.0
    %3487 = vmatpush.msra.mxu0 0.0
    %3488 = vmatpush.msra.mxu0 0.0
    %3489 = vmatpush.msra.mxu0 0.0
    %3490 = vmatpush.msra.mxu0 0.0
    %3491 = vmatpush.msra.mxu0 0.0
    %3492 = vmatpush.msra.mxu0 0.0
    %3493 = vmatpush.msra.mxu0 0.0
    %3494 = vmatpush.msra.mxu0 0.0
    %3495 = vmatpush.msra.mxu0 %v3257
    %3496 = vmatpush.msra.mxu0 %v3256
    %3497 = vmatpush.msra.mxu0 %v3255
    %3498 = vmatpush.msra.mxu0 %v3254
    %3499 = vmatmul.f32.gmra.mxu0 %v3481
    %v3500 = vpop.f32.mrf.mxu0
    %v3501 = vadd.f32 0.0, %v3500
    %3502 = vdwg.mxu0
    %v3504 = vsel %vm420, %v3167, 0
    %3506 = vmatpush.msra.mxu0 0.0
    %3507 = vmatpush.msra.mxu0 0.0
    %3508 = vmatpush.msra.mxu0 0.0
    %3509 = vmatpush.msra.mxu0 0.0
    %3510 = vmatpush.msra.mxu0 0.0
    %3511 = vmatpush.msra.mxu0 0.0
    %3512 = vmatpush.msra.mxu0 0.0
    %3513 = vmatpush.msra.mxu0 0.0
    %3514 = vmatpush.msra.mxu0 0.0
    %3515 = vmatpush.msra.mxu0 0.0
    %3516 = vmatpush.msra.mxu0 0.0
    %3517 = vmatpush.msra.mxu0 0.0
    %3518 = vmatpush.msra.mxu0 %v3261
    %3519 = vmatpush.msra.mxu0 %v3260
    %3520 = vmatpush.msra.mxu0 %v3259
    %3521 = vmatpush.msra.mxu0 %v3258
    %3522 = vmatmul.f32.gmra.mxu0 %v3504
    %v3523 = vpop.f32.mrf.mxu0
    %v3524 = vadd.f32 0.0, %v3523
    %3525 = vdwg.mxu0
    %v3527 = vsel %vm420, %v3170, 0
    %3529 = vmatpush.msra.mxu0 0.0
    %3530 = vmatpush.msra.mxu0 0.0
    %3531 = vmatpush.msra.mxu0 0.0
    %3532 = vmatpush.msra.mxu0 0.0
    %3533 = vmatpush.msra.mxu0 0.0
    %3534 = vmatpush.msra.mxu0 0.0
    %3535 = vmatpush.msra.mxu0 0.0
    %3536 = vmatpush.msra.mxu0 0.0
    %3537 = vmatpush.msra.mxu0 0.0
    %3538 = vmatpush.msra.mxu0 0.0
    %3539 = vmatpush.msra.mxu0 0.0
    %3540 = vmatpush.msra.mxu0 0.0
    %3541 = vmatpush.msra.mxu0 %v3265
    %3542 = vmatpush.msra.mxu0 %v3264
    %3543 = vmatpush.msra.mxu0 %v3263
    %3544 = vmatpush.msra.mxu0 %v3262
    %3545 = vmatmul.f32.gmra.mxu0 %v3527
    %v3546 = vpop.f32.mrf.mxu0
    %v3547 = vadd.f32 0.0, %v3546
    %3548 = vdwg.mxu0
    %v3550 = vsel %vm420, %v3173, 0
    %3552 = vmatpush.msra.mxu0 0.0
    %3553 = vmatpush.msra.mxu0 0.0
    %3554 = vmatpush.msra.mxu0 0.0
    %3555 = vmatpush.msra.mxu0 0.0
    %3556 = vmatpush.msra.mxu0 0.0
    %3557 = vmatpush.msra.mxu0 0.0
    %3558 = vmatpush.msra.mxu0 0.0
    %3559 = vmatpush.msra.mxu0 0.0
    %3560 = vmatpush.msra.mxu0 0.0
    %3561 = vmatpush.msra.mxu0 0.0
    %3562 = vmatpush.msra.mxu0 0.0
    %3563 = vmatpush.msra.mxu0 0.0
    %3564 = vmatpush.msra.mxu0 %v3269
    %3565 = vmatpush.msra.mxu0 %v3268
    %3566 = vmatpush.msra.mxu0 %v3267
    %3567 = vmatpush.msra.mxu0 %v3266
    %3568 = vmatmul.f32.gmra.mxu0 %v3550
    %v3569 = vpop.f32.mrf.mxu0
    %v3570 = vadd.f32 0.0, %v3569
    %3571 = vdwg.mxu0
    %v3573 = vsel %vm420, %v3176, 0
    %3575 = vmatpush.msra.mxu0 0.0
    %3576 = vmatpush.msra.mxu0 0.0
    %3577 = vmatpush.msra.mxu0 0.0
    %3578 = vmatpush.msra.mxu0 0.0
    %3579 = vmatpush.msra.mxu0 0.0
    %3580 = vmatpush.msra.mxu0 0.0
    %3581 = vmatpush.msra.mxu0 0.0
    %3582 = vmatpush.msra.mxu0 0.0
    %3583 = vmatpush.msra.mxu0 0.0
    %3584 = vmatpush.msra.mxu0 0.0
    %3585 = vmatpush.msra.mxu0 0.0
    %3586 = vmatpush.msra.mxu0 0.0
    %3587 = vmatpush.msra.mxu0 %v3273
    %3588 = vmatpush.msra.mxu0 %v3272
    %3589 = vmatpush.msra.mxu0 %v3271
    %3590 = vmatpush.msra.mxu0 %v3270
    %3591 = vmatmul.f32.gmra.mxu0 %v3573
    %v3592 = vpop.f32.mrf.mxu0
    %v3593 = vadd.f32 0.0, %v3592
    %3594 = vdwg.mxu0
    %v3596 = vsel %vm420, %v3179, 0
    %3598 = vmatpush.msra.mxu0 0.0
    %3599 = vmatpush.msra.mxu0 0.0
    %3600 = vmatpush.msra.mxu0 0.0
    %3601 = vmatpush.msra.mxu0 0.0
    %3602 = vmatpush.msra.mxu0 0.0
    %3603 = vmatpush.msra.mxu0 0.0
    %3604 = vmatpush.msra.mxu0 0.0
    %3605 = vmatpush.msra.mxu0 0.0
    %3606 = vmatpush.msra.mxu0 0.0
    %3607 = vmatpush.msra.mxu0 0.0
    %3608 = vmatpush.msra.mxu0 0.0
    %3609 = vmatpush.msra.mxu0 0.0
    %3610 = vmatpush.msra.mxu0 %v3277
    %3611 = vmatpush.msra.mxu0 %v3276
    %3612 = vmatpush.msra.mxu0 %v3275
    %3613 = vmatpush.msra.mxu0 %v3274
    %3614 = vmatmul.f32.gmra.mxu0 %v3596
    %v3615 = vpop.f32.mrf.mxu0
    %v3616 = vadd.f32 0.0, %v3615
    %3617 = vdwg.mxu0
    %v3619 = vsel %vm420, %v3182, 0
    %3621 = vmatpush.msra.mxu0 0.0
    %3622 = vmatpush.msra.mxu0 0.0
    %3623 = vmatpush.msra.mxu0 0.0
    %3624 = vmatpush.msra.mxu0 0.0
    %3625 = vmatpush.msra.mxu0 0.0
    %3626 = vmatpush.msra.mxu0 0.0
    %3627 = vmatpush.msra.mxu0 0.0
    %3628 = vmatpush.msra.mxu0 0.0
    %3629 = vmatpush.msra.mxu0 0.0
    %3630 = vmatpush.msra.mxu0 0.0
    %3631 = vmatpush.msra.mxu0 0.0
    %3632 = vmatpush.msra.mxu0 0.0
    %3633 = vmatpush.msra.mxu0 %v3281
    %3634 = vmatpush.msra.mxu0 %v3280
    %3635 = vmatpush.msra.mxu0 %v3279
    %3636 = vmatpush.msra.mxu0 %v3278
    %3637 = vmatmul.f32.gmra.mxu0 %v3619
    %v3638 = vpop.f32.mrf.mxu0
    %v3639 = vadd.f32 0.0, %v3638
    %3640 = vdwg.mxu0
    %v3642 = vsel %vm420, %v3185, 0
    %3644 = vmatpush.msra.mxu0 0.0
    %3645 = vmatpush.msra.mxu0 0.0
    %3646 = vmatpush.msra.mxu0 0.0
    %3647 = vmatpush.msra.mxu0 0.0
    %3648 = vmatpush.msra.mxu0 0.0
    %3649 = vmatpush.msra.mxu0 0.0
    %3650 = vmatpush.msra.mxu0 0.0
    %3651 = vmatpush.msra.mxu0 0.0
    %3652 = vmatpush.msra.mxu0 0.0
    %3653 = vmatpush.msra.mxu0 0.0
    %3654 = vmatpush.msra.mxu0 0.0
    %3655 = vmatpush.msra.mxu0 0.0
    %3656 = vmatpush.msra.mxu0 %v3285
    %3657 = vmatpush.msra.mxu0 %v3284
    %3658 = vmatpush.msra.mxu0 %v3283
    %3659 = vmatpush.msra.mxu0 %v3282
    %3660 = vmatmul.f32.gmra.mxu0 %v3642
    %v3661 = vpop.f32.mrf.mxu0
    %v3662 = vadd.f32 0.0, %v3661
    %3663 = vdwg.mxu0
    %v3665 = vsel %vm420, %v3188, 0
    %3667 = vmatpush.msra.mxu0 0.0
    %3668 = vmatpush.msra.mxu0 0.0
    %3669 = vmatpush.msra.mxu0 0.0
    %3670 = vmatpush.msra.mxu0 0.0
    %3671 = vmatpush.msra.mxu0 0.0
    %3672 = vmatpush.msra.mxu0 0.0
    %3673 = vmatpush.msra.mxu0 0.0
    %3674 = vmatpush.msra.mxu0 0.0
    %3675 = vmatpush.msra.mxu0 0.0
    %3676 = vmatpush.msra.mxu0 0.0
    %3677 = vmatpush.msra.mxu0 0.0
    %3678 = vmatpush.msra.mxu0 0.0
    %3679 = vmatpush.msra.mxu0 %v3289
    %3680 = vmatpush.msra.mxu0 %v3288
    %3681 = vmatpush.msra.mxu0 %v3287
    %3682 = vmatpush.msra.mxu0 %v3286
    %3683 = vmatmul.f32.gmra.mxu0 %v3665
    %v3684 = vpop.f32.mrf.mxu0
    %v3685 = vadd.f32 0.0, %v3684
    %3686 = vdwg.mxu0
    %v3688 = vsel %vm420, %v3191, 0
    %3690 = vmatpush.msra.mxu0 0.0
    %3691 = vmatpush.msra.mxu0 0.0
    %3692 = vmatpush.msra.mxu0 0.0
    %3693 = vmatpush.msra.mxu0 0.0
    %3694 = vmatpush.msra.mxu0 0.0
    %3695 = vmatpush.msra.mxu0 0.0
    %3696 = vmatpush.msra.mxu0 0.0
    %3697 = vmatpush.msra.mxu0 0.0
    %3698 = vmatpush.msra.mxu0 0.0
    %3699 = vmatpush.msra.mxu0 0.0
    %3700 = vmatpush.msra.mxu0 0.0
    %3701 = vmatpush.msra.mxu0 0.0
    %3702 = vmatpush.msra.mxu0 %v3293
    %3703 = vmatpush.msra.mxu0 %v3292
    %3704 = vmatpush.msra.mxu0 %v3291
    %3705 = vmatpush.msra.mxu0 %v3290
    %3706 = vmatmul.f32.gmra.mxu0 %v3688
    %v3707 = vpop.f32.mrf.mxu0
    %v3708 = vadd.f32 0.0, %v3707
    %3709 = vdwg.mxu0
    %v3711 = vsel %vm420, %v3194, 0
    %3713 = vmatpush.msra.mxu0 0.0
    %3714 = vmatpush.msra.mxu0 0.0
    %3715 = vmatpush.msra.mxu0 0.0
    %3716 = vmatpush.msra.mxu0 0.0
    %3717 = vmatpush.msra.mxu0 0.0
    %3718 = vmatpush.msra.mxu0 0.0
    %3719 = vmatpush.msra.mxu0 0.0
    %3720 = vmatpush.msra.mxu0 0.0
    %3721 = vmatpush.msra.mxu0 0.0
    %3722 = vmatpush.msra.mxu0 0.0
    %3723 = vmatpush.msra.mxu0 0.0
    %3724 = vmatpush.msra.mxu0 0.0
    %3725 = vmatpush.msra.mxu0 %v3297
    %3726 = vmatpush.msra.mxu0 %v3296
    %3727 = vmatpush.msra.mxu0 %v3295
    %3728 = vmatpush.msra.mxu0 %v3294
    %3729 = vmatmul.f32.gmra.mxu0 %v3711
    %v3730 = vpop.f32.mrf.mxu0
    %v3731 = vadd.f32 0.0, %v3730
    %3732 = vdwg.mxu0
    %v3734 = vsel %vm420, %v3197, 0
    %3736 = vmatpush.msra.mxu0 0.0
    %3737 = vmatpush.msra.mxu0 0.0
    %3738 = vmatpush.msra.mxu0 0.0
    %3739 = vmatpush.msra.mxu0 0.0
    %3740 = vmatpush.msra.mxu0 0.0
    %3741 = vmatpush.msra.mxu0 0.0
    %3742 = vmatpush.msra.mxu0 0.0
    %3743 = vmatpush.msra.mxu0 0.0
    %3744 = vmatpush.msra.mxu0 0.0
    %3745 = vmatpush.msra.mxu0 0.0
    %3746 = vmatpush.msra.mxu0 0.0
    %3747 = vmatpush.msra.mxu0 0.0
    %3748 = vmatpush.msra.mxu0 %v3301
    %3749 = vmatpush.msra.mxu0 %v3300
    %3750 = vmatpush.msra.mxu0 %v3299
    %3751 = vmatpush.msra.mxu0 %v3298
    %3752 = vmatmul.f32.gmra.mxu0 %v3734
    %v3753 = vpop.f32.mrf.mxu0
    %v3754 = vadd.f32 0.0, %v3753
    %3755 = vdwg.mxu0
    %v3757 = vsel %vm420, %v3200, 0
    %3759 = vmatpush.msra.mxu0 0.0
    %3760 = vmatpush.msra.mxu0 0.0
    %3761 = vmatpush.msra.mxu0 0.0
    %3762 = vmatpush.msra.mxu0 0.0
    %3763 = vmatpush.msra.mxu0 0.0
    %3764 = vmatpush.msra.mxu0 0.0
    %3765 = vmatpush.msra.mxu0 0.0
    %3766 = vmatpush.msra.mxu0 0.0
    %3767 = vmatpush.msra.mxu0 0.0
    %3768 = vmatpush.msra.mxu0 0.0
    %3769 = vmatpush.msra.mxu0 0.0
    %3770 = vmatpush.msra.mxu0 0.0
    %3771 = vmatpush.msra.mxu0 %v3305
    %3772 = vmatpush.msra.mxu0 %v3304
    %3773 = vmatpush.msra.mxu0 %v3303
    %3774 = vmatpush.msra.mxu0 %v3302
    %3775 = vmatmul.f32.gmra.mxu0 %v3757
    %v3776 = vpop.f32.mrf.mxu0
    %v3777 = vadd.f32 0.0, %v3776
    %3778 = vdwg.mxu0
    %v3780 = vsel %vm420, %v3203, 0
    %3782 = vmatpush.msra.mxu0 0.0
    %3783 = vmatpush.msra.mxu0 0.0
    %3784 = vmatpush.msra.mxu0 0.0
    %3785 = vmatpush.msra.mxu0 0.0
    %3786 = vmatpush.msra.mxu0 0.0
    %3787 = vmatpush.msra.mxu0 0.0
    %3788 = vmatpush.msra.mxu0 0.0
    %3789 = vmatpush.msra.mxu0 0.0
    %3790 = vmatpush.msra.mxu0 0.0
    %3791 = vmatpush.msra.mxu0 0.0
    %3792 = vmatpush.msra.mxu0 0.0
    %3793 = vmatpush.msra.mxu0 0.0
    %3794 = vmatpush.msra.mxu0 %v3309
    %3795 = vmatpush.msra.mxu0 %v3308
    %3796 = vmatpush.msra.mxu0 %v3307
    %3797 = vmatpush.msra.mxu0 %v3306
    %3798 = vmatmul.f32.gmra.mxu0 %v3780
    %v3799 = vpop.f32.mrf.mxu0
    %v3800 = vadd.f32 0.0, %v3799
    %3801 = vdwg.mxu0
    %v3803 = vsel %vm420, %v3206, 0
    %3805 = vmatpush.msra.mxu0 0.0
    %3806 = vmatpush.msra.mxu0 0.0
    %3807 = vmatpush.msra.mxu0 0.0
    %3808 = vmatpush.msra.mxu0 0.0
    %3809 = vmatpush.msra.mxu0 0.0
    %3810 = vmatpush.msra.mxu0 0.0
    %3811 = vmatpush.msra.mxu0 0.0
    %3812 = vmatpush.msra.mxu0 0.0
    %3813 = vmatpush.msra.mxu0 0.0
    %3814 = vmatpush.msra.mxu0 0.0
    %3815 = vmatpush.msra.mxu0 0.0
    %3816 = vmatpush.msra.mxu0 0.0
    %3817 = vmatpush.msra.mxu0 %v3313
    %3818 = vmatpush.msra.mxu0 %v3312
    %3819 = vmatpush.msra.mxu0 %v3311
    %3820 = vmatpush.msra.mxu0 %v3310
    %3821 = vmatmul.f32.gmra.mxu0 %v3803
    %v3822 = vpop.f32.mrf.mxu0
    %v3823 = vadd.f32 0.0, %v3822
    %3824 = vdwg.mxu0
    %v3826 = vsel %vm420, %v3209, 0
    %3828 = vmatpush.msra.mxu0 0.0
    %3829 = vmatpush.msra.mxu0 0.0
    %3830 = vmatpush.msra.mxu0 0.0
    %3831 = vmatpush.msra.mxu0 0.0
    %3832 = vmatpush.msra.mxu0 0.0
    %3833 = vmatpush.msra.mxu0 0.0
    %3834 = vmatpush.msra.mxu0 0.0
    %3835 = vmatpush.msra.mxu0 0.0
    %3836 = vmatpush.msra.mxu0 0.0
    %3837 = vmatpush.msra.mxu0 0.0
    %3838 = vmatpush.msra.mxu0 0.0
    %3839 = vmatpush.msra.mxu0 0.0
    %3840 = vmatpush.msra.mxu0 %v3317
    %3841 = vmatpush.msra.mxu0 %v3316
    %3842 = vmatpush.msra.mxu0 %v3315
    %3843 = vmatpush.msra.mxu0 %v3314
    %3844 = vmatmul.f32.gmra.mxu0 %v3826
    %v3845 = vpop.f32.mrf.mxu0
    %v3846 = vadd.f32 0.0, %v3845
    %3847 = vdwg.mxu0
    %v3849 = vsel %vm420, %v3212, 0
    %3851 = vmatpush.msra.mxu0 0.0
    %3852 = vmatpush.msra.mxu0 0.0
    %3853 = vmatpush.msra.mxu0 0.0
    %3854 = vmatpush.msra.mxu0 0.0
    %3855 = vmatpush.msra.mxu0 0.0
    %3856 = vmatpush.msra.mxu0 0.0
    %3857 = vmatpush.msra.mxu0 0.0
    %3858 = vmatpush.msra.mxu0 0.0
    %3859 = vmatpush.msra.mxu0 0.0
    %3860 = vmatpush.msra.mxu0 0.0
    %3861 = vmatpush.msra.mxu0 0.0
    %3862 = vmatpush.msra.mxu0 0.0
    %3863 = vmatpush.msra.mxu0 %v3321
    %3864 = vmatpush.msra.mxu0 %v3320
    %3865 = vmatpush.msra.mxu0 %v3319
    %3866 = vmatpush.msra.mxu0 %v3318
    %3867 = vmatmul.f32.gmra.mxu0 %v3849
    %v3868 = vpop.f32.mrf.mxu0
    %v3869 = vadd.f32 0.0, %v3868
    %3870 = vdwg.mxu0
    %v3872 = vsel %vm420, %v3215, 0
    %3874 = vmatpush.msra.mxu0 0.0
    %3875 = vmatpush.msra.mxu0 0.0
    %3876 = vmatpush.msra.mxu0 0.0
    %3877 = vmatpush.msra.mxu0 0.0
    %3878 = vmatpush.msra.mxu0 0.0
    %3879 = vmatpush.msra.mxu0 0.0
    %3880 = vmatpush.msra.mxu0 0.0
    %3881 = vmatpush.msra.mxu0 0.0
    %3882 = vmatpush.msra.mxu0 0.0
    %3883 = vmatpush.msra.mxu0 0.0
    %3884 = vmatpush.msra.mxu0 0.0
    %3885 = vmatpush.msra.mxu0 0.0
    %3886 = vmatpush.msra.mxu0 %v3325
    %3887 = vmatpush.msra.mxu0 %v3324
    %3888 = vmatpush.msra.mxu0 %v3323
    %3889 = vmatpush.msra.mxu0 %v3322
    %3890 = vmatmul.f32.gmra.mxu0 %v3872
    %v3891 = vpop.f32.mrf.mxu0
    %v3892 = vadd.f32 0.0, %v3891
    %3893 = vdwg.mxu0
    %v3895 = vsel %vm420, %v3218, 0
    %3897 = vmatpush.msra.mxu0 0.0
    %3898 = vmatpush.msra.mxu0 0.0
    %3899 = vmatpush.msra.mxu0 0.0
    %3900 = vmatpush.msra.mxu0 0.0
    %3901 = vmatpush.msra.mxu0 0.0
    %3902 = vmatpush.msra.mxu0 0.0
    %3903 = vmatpush.msra.mxu0 0.0
    %3904 = vmatpush.msra.mxu0 0.0
    %3905 = vmatpush.msra.mxu0 0.0
    %3906 = vmatpush.msra.mxu0 0.0
    %3907 = vmatpush.msra.mxu0 0.0
    %3908 = vmatpush.msra.mxu0 0.0
    %3909 = vmatpush.msra.mxu0 %v3329
    %3910 = vmatpush.msra.mxu0 %v3328
    %3911 = vmatpush.msra.mxu0 %v3327
    %3912 = vmatpush.msra.mxu0 %v3326
    %3913 = vmatmul.f32.gmra.mxu0 %v3895
    %v3914 = vpop.f32.mrf.mxu0
    %v3915 = vadd.f32 0.0, %v3914
    %3916 = vdwg.mxu0
    %v3918 = vsel %vm420, %v3221, 0
    %3920 = vmatpush.msra.mxu0 0.0
    %3921 = vmatpush.msra.mxu0 0.0
    %3922 = vmatpush.msra.mxu0 0.0
    %3923 = vmatpush.msra.mxu0 0.0
    %3924 = vmatpush.msra.mxu0 0.0
    %3925 = vmatpush.msra.mxu0 0.0
    %3926 = vmatpush.msra.mxu0 0.0
    %3927 = vmatpush.msra.mxu0 0.0
    %3928 = vmatpush.msra.mxu0 0.0
    %3929 = vmatpush.msra.mxu0 0.0
    %3930 = vmatpush.msra.mxu0 0.0
    %3931 = vmatpush.msra.mxu0 0.0
    %3932 = vmatpush.msra.mxu0 %v3333
    %3933 = vmatpush.msra.mxu0 %v3332
    %3934 = vmatpush.msra.mxu0 %v3331
    %3935 = vmatpush.msra.mxu0 %v3330
    %3936 = vmatmul.f32.gmra.mxu0 %v3918
    %v3937 = vpop.f32.mrf.mxu0
    %v3938 = vadd.f32 0.0, %v3937
    %3939 = vdwg.mxu0
    %v3941 = vsel %vm420, %v3224, 0
    %3943 = vmatpush.msra.mxu0 0.0
    %3944 = vmatpush.msra.mxu0 0.0
    %3945 = vmatpush.msra.mxu0 0.0
    %3946 = vmatpush.msra.mxu0 0.0
    %3947 = vmatpush.msra.mxu0 0.0
    %3948 = vmatpush.msra.mxu0 0.0
    %3949 = vmatpush.msra.mxu0 0.0
    %3950 = vmatpush.msra.mxu0 0.0
    %3951 = vmatpush.msra.mxu0 0.0
    %3952 = vmatpush.msra.mxu0 0.0
    %3953 = vmatpush.msra.mxu0 0.0
    %3954 = vmatpush.msra.mxu0 0.0
    %3955 = vmatpush.msra.mxu0 %v3337
    %3956 = vmatpush.msra.mxu0 %v3336
    %3957 = vmatpush.msra.mxu0 %v3335
    %3958 = vmatpush.msra.mxu0 %v3334
    %3959 = vmatmul.f32.gmra.mxu0 %v3941
    %v3960 = vpop.f32.mrf.mxu0
    %v3961 = vadd.f32 0.0, %v3960
    %3962 = vdwg.mxu0
    %v3964 = vsel %vm420, %v3227, 0
    %3966 = vmatpush.msra.mxu0 0.0
    %3967 = vmatpush.msra.mxu0 0.0
    %3968 = vmatpush.msra.mxu0 0.0
    %3969 = vmatpush.msra.mxu0 0.0
    %3970 = vmatpush.msra.mxu0 0.0
    %3971 = vmatpush.msra.mxu0 0.0
    %3972 = vmatpush.msra.mxu0 0.0
    %3973 = vmatpush.msra.mxu0 0.0
    %3974 = vmatpush.msra.mxu0 0.0
    %3975 = vmatpush.msra.mxu0 0.0
    %3976 = vmatpush.msra.mxu0 0.0
    %3977 = vmatpush.msra.mxu0 0.0
    %3978 = vmatpush.msra.mxu0 %v3341
    %3979 = vmatpush.msra.mxu0 %v3340
    %3980 = vmatpush.msra.mxu0 %v3339
    %3981 = vmatpush.msra.mxu0 %v3338
    %3982 = vmatmul.f32.gmra.mxu0 %v3964
    %v3983 = vpop.f32.mrf.mxu0
    %v3984 = vadd.f32 0.0, %v3983
    %3985 = vdwg.mxu0
    %v3986 = vld [vmem:[#allocation3] sm:$0xff]
    %v3987 = vld [vmem:[#allocation3 + $0x8] sm:$0xff]
    %v3988 = vld [vmem:[#allocation3 + $0x10] sm:$0xff]
    %v3989 = vld [vmem:[#allocation3 + $0x18] sm:$0xff]
    %v3990 = vld [vmem:[#allocation3 + $0x20] sm:$0xff]
    %v3991 = vld [vmem:[#allocation3 + $0x28] sm:$0xff]
    %v3992 = vld [vmem:[#allocation3 + $0x30] sm:$0xff]
    %v3993 = vld [vmem:[#allocation3 + $0x38] sm:$0xff]
    %v3994 = vld [vmem:[#allocation3 + $0x40] sm:$0xff]
    %v3995 = vld [vmem:[#allocation3 + $0x48] sm:$0xff]
    %v3996 = vld [vmem:[#allocation3 + $0x50] sm:$0xff]
    %v3997 = vld [vmem:[#allocation3 + $0x58] sm:$0xff]
    %v3998 = vld [vmem:[#allocation3 + $0x60] sm:$0xff]
    %v3999 = vld [vmem:[#allocation3 + $0x68] sm:$0xff]
    %v4000 = vld [vmem:[#allocation3 + $0x70] sm:$0xff]
    %v4001 = vld [vmem:[#allocation3 + $0x78] sm:$0xff]
    %v4002 = vld [vmem:[#allocation3 + $0x80] sm:$0xff]
    %v4003 = vld [vmem:[#allocation3 + $0x88] sm:$0xff]
    %v4004 = vld [vmem:[#allocation3 + $0x90] sm:$0xff]
    %v4005 = vld [vmem:[#allocation3 + $0x98] sm:$0xff]
    %v4006 = vld [vmem:[#allocation3 + $0xa0] sm:$0xff]
    %v4007 = vld [vmem:[#allocation3 + $0xa8] sm:$0xff]
    %s4008 = scalar_lea.vmem %s4, 176
    %v4009 = vld [vmem:[%s4008] sm:$0xff]
    %v4010 = vld [vmem:[%s4008 + $0x8] sm:$0xff]
    %v4011 = vld [vmem:[%s4008 + $0x10] sm:$0xff]
    %v4012 = vld [vmem:[%s4008 + $0x18] sm:$0xff]
    %v4013 = vld [vmem:[%s4008 + $0x20] sm:$0xff]
    %v4014 = vld [vmem:[%s4008 + $0x28] sm:$0xff]
    %v4015 = vld [vmem:[%s4008 + $0x30] sm:$0xff]
    %v4016 = vld [vmem:[%s4008 + $0x38] sm:$0xff]
    %v4017 = vld [vmem:[%s4008 + $0x40] sm:$0xff]
    %v4018 = vld [vmem:[%s4008 + $0x48] sm:$0xff]
    %v4019 = vld [vmem:[%s4008 + $0x50] sm:$0xff]
    %v4021 = vsel %vm1098, %v3987, 0
    %v4024 = vsel %vm1098, %v3989, 0
    %v4027 = vsel %vm1098, %v3991, 0
    %v4030 = vsel %vm1098, %v3993, 0
    %v4033 = vsel %vm1098, %v3995, 0
    %v4036 = vsel %vm1098, %v3997, 0
    %v4039 = vsel %vm1098, %v3999, 0
    %v4042 = vsel %vm1098, %v4001, 0
    %v4045 = vsel %vm1098, %v4003, 0
    %v4048 = vsel %vm1098, %v4005, 0
    %v4051 = vsel %vm1098, %v4007, 0
    %4053 = vmatpush.msra.mxu0 %v3708
    %4054 = vmatpush.msra.mxu0 %v3685
    %4055 = vmatpush.msra.mxu0 %v3662
    %4056 = vmatpush.msra.mxu0 %v3639
    %4057 = vmatpush.msra.mxu0 %v3616
    %4058 = vmatpush.msra.mxu0 %v3593
    %4059 = vmatpush.msra.mxu0 %v3570
    %4060 = vmatpush.msra.mxu0 %v3547
    %4061 = vmatpush.msra.mxu0 %v3524
    %4062 = vmatpush.msra.mxu0 %v3501
    %4063 = vmatpush.msra.mxu0 %v3478
    %4064 = vmatpush.msra.mxu0 %v3455
    %4065 = vmatpush.msra.mxu0 %v3432
    %4066 = vmatpush.msra.mxu0 %v3409
    %4067 = vmatpush.msra.mxu0 %v3386
    %4068 = vmatpush.msra.mxu0 %v3363
    %4069 = vmatmul.f32.gmra.mxu0 %v3986
    %v4070 = vpop.f32.mrf.mxu0
    %v4071 = vadd.f32 %v4009, %v4070
    %4072 = vmatmul.f32.gmra.mxu0 %v3988
    %v4073 = vpop.f32.mrf.mxu0
    %v4074 = vadd.f32 %v4010, %v4073
    %4075 = vmatmul.f32.gmra.mxu0 %v3990
    %v4076 = vpop.f32.mrf.mxu0
    %v4077 = vadd.f32 %v4011, %v4076
    %4078 = vmatmul.f32.gmra.mxu0 %v3992
    %v4079 = vpop.f32.mrf.mxu0
    %v4080 = vadd.f32 %v4012, %v4079
    %4081 = vmatmul.f32.gmra.mxu0 %v3994
    %v4082 = vpop.f32.mrf.mxu0
    %v4083 = vadd.f32 %v4013, %v4082
    %4084 = vmatmul.f32.gmra.mxu0 %v3996
    %v4085 = vpop.f32.mrf.mxu0
    %v4086 = vadd.f32 %v4014, %v4085
    %4087 = vmatmul.f32.gmra.mxu0 %v3998
    %v4088 = vpop.f32.mrf.mxu0
    %v4089 = vadd.f32 %v4015, %v4088
    %4090 = vmatmul.f32.gmra.mxu0 %v4000
    %v4091 = vpop.f32.mrf.mxu0
    %v4092 = vadd.f32 %v4016, %v4091
    %4093 = vmatmul.f32.gmra.mxu0 %v4002
    %v4094 = vpop.f32.mrf.mxu0
    %v4095 = vadd.f32 %v4017, %v4094
    %4096 = vmatmul.f32.gmra.mxu0 %v4004
    %v4097 = vpop.f32.mrf.mxu0
    %v4098 = vadd.f32 %v4018, %v4097
    %4099 = vmatmul.f32.gmra.mxu0 %v4006
    %v4100 = vpop.f32.mrf.mxu0
    %v4101 = vadd.f32 %v4019, %v4100
    %4102 = vdwg.mxu0
    %4103 = vmatpush.msra.mxu0 0.0
    %4104 = vmatpush.msra.mxu0 0.0
    %4105 = vmatpush.msra.mxu0 0.0
    %4106 = vmatpush.msra.mxu0 0.0
    %4107 = vmatpush.msra.mxu0 %v3984
    %4108 = vmatpush.msra.mxu0 %v3961
    %4109 = vmatpush.msra.mxu0 %v3938
    %4110 = vmatpush.msra.mxu0 %v3915
    %4111 = vmatpush.msra.mxu0 %v3892
    %4112 = vmatpush.msra.mxu0 %v3869
    %4113 = vmatpush.msra.mxu0 %v3846
    %4114 = vmatpush.msra.mxu0 %v3823
    %4115 = vmatpush.msra.mxu0 %v3800
    %4116 = vmatpush.msra.mxu0 %v3777
    %4117 = vmatpush.msra.mxu0 %v3754
    %4118 = vmatpush.msra.mxu0 %v3731
    %4119 = vmatmul.f32.gmra.mxu0 %v4021
    %v4120 = vpop.f32.mrf.mxu0
    %v4121 = vadd.f32 %v4071, %v4120
    %4122 = vmatmul.f32.gmra.mxu0 %v4024
    %v4123 = vpop.f32.mrf.mxu0
    %v4124 = vadd.f32 %v4074, %v4123
    %4125 = vmatmul.f32.gmra.mxu0 %v4027
    %v4126 = vpop.f32.mrf.mxu0
    %v4127 = vadd.f32 %v4077, %v4126
    %4128 = vmatmul.f32.gmra.mxu0 %v4030
    %v4129 = vpop.f32.mrf.mxu0
    %v4130 = vadd.f32 %v4080, %v4129
    %4131 = vmatmul.f32.gmra.mxu0 %v4033
    %v4132 = vpop.f32.mrf.mxu0
    %v4133 = vadd.f32 %v4083, %v4132
    %4134 = vmatmul.f32.gmra.mxu0 %v4036
    %v4135 = vpop.f32.mrf.mxu0
    %v4136 = vadd.f32 %v4086, %v4135
    %4137 = vmatmul.f32.gmra.mxu0 %v4039
    %v4138 = vpop.f32.mrf.mxu0
    %v4139 = vadd.f32 %v4089, %v4138
    %4140 = vmatmul.f32.gmra.mxu0 %v4042
    %v4141 = vpop.f32.mrf.mxu0
    %v4142 = vadd.f32 %v4092, %v4141
    %4143 = vmatmul.f32.gmra.mxu0 %v4045
    %v4144 = vpop.f32.mrf.mxu0
    %v4145 = vadd.f32 %v4095, %v4144
    %4146 = vmatmul.f32.gmra.mxu0 %v4048
    %v4147 = vpop.f32.mrf.mxu0
    %v4148 = vadd.f32 %v4098, %v4147
    %4149 = vmatmul.f32.gmra.mxu0 %v4051
    %v4150 = vpop.f32.mrf.mxu0
    %v4151 = vadd.f32 %v4101, %v4150
    %4152 = vdwg.mxu0
    %vm4153 = vcmp.ge.f32.partialorder %v4121, 0.0
    %vm4154 = vcmp.ge.f32.partialorder %v4124, 0.0
    %vm4155 = vcmp.ge.f32.partialorder %v4127, 0.0
    %vm4156 = vcmp.ge.f32.partialorder %v4130, 0.0
    %vm4157 = vcmp.ge.f32.partialorder %v4133, 0.0
    %vm4158 = vcmp.ge.f32.partialorder %v4136, 0.0
    %vm4159 = vcmp.ge.f32.partialorder %v4139, 0.0
    %vm4160 = vcmp.ge.f32.partialorder %v4142, 0.0
    %vm4161 = vcmp.ge.f32.partialorder %v4145, 0.0
    %vm4162 = vcmp.ge.f32.partialorder %v4148, 0.0
    %vm4163 = vcmp.ge.f32.partialorder %v4151, 0.0
    %v4164 = vmul.f32 %v4121, 0.01
    %v4165 = vmul.f32 %v4124, 0.01
    %v4166 = vmul.f32 %v4127, 0.01
    %v4167 = vmul.f32 %v4130, 0.01
    %v4168 = vmul.f32 %v4133, 0.01
    %v4169 = vmul.f32 %v4136, 0.01
    %v4170 = vmul.f32 %v4139, 0.01
    %v4171 = vmul.f32 %v4142, 0.01
    %v4172 = vmul.f32 %v4145, 0.01
    %v4173 = vmul.f32 %v4148, 0.01
    %v4174 = vmul.f32 %v4151, 0.01
    %v4175 = vsel %vm4153, %v4121, %v4164
    %v4176 = vsel %vm4154, %v4124, %v4165
    %v4177 = vsel %vm4155, %v4127, %v4166
    %v4178 = vsel %vm4156, %v4130, %v4167
    %v4179 = vsel %vm4157, %v4133, %v4168
    %v4180 = vsel %vm4158, %v4136, %v4169
    %v4181 = vsel %vm4159, %v4139, %v4170
    %v4182 = vsel %vm4160, %v4142, %v4171
    %v4183 = vsel %vm4161, %v4145, %v4172
    %v4184 = vsel %vm4162, %v4148, %v4173
    %v4185 = vsel %vm4163, %v4151, %v4174
    %v4186 = vsel %vm420, %v4175, 0.0
    %4187 = vadd.xlane.f32.xlu0 %v4186
    %v4188 = vpop.xlane.xlu0 %4187
    %v4189 = vsel %vm420, %v4176, 0.0
    %4190 = vadd.xlane.f32.xlu0 %v4189
    %v4191 = vpop.xlane.xlu0 %4190
    %v4192 = vsel %vm420, %v4177, 0.0
    %4193 = vadd.xlane.f32.xlu0 %v4192
    %v4194 = vpop.xlane.xlu0 %4193
    %v4195 = vsel %vm420, %v4178, 0.0
    %4196 = vadd.xlane.f32.xlu0 %v4195
    %v4197 = vpop.xlane.xlu0 %4196
    %v4198 = vsel %vm420, %v4179, 0.0
    %4199 = vadd.xlane.f32.xlu0 %v4198
    %v4200 = vpop.xlane.xlu0 %4199
    %v4201 = vsel %vm420, %v4180, 0.0
    %4202 = vadd.xlane.f32.xlu0 %v4201
    %v4203 = vpop.xlane.xlu0 %4202
    %v4204 = vsel %vm420, %v4181, 0.0
    %4205 = vadd.xlane.f32.xlu0 %v4204
    %v4206 = vpop.xlane.xlu0 %4205
    %v4207 = vsel %vm420, %v4182, 0.0
    %4208 = vadd.xlane.f32.xlu0 %v4207
    %v4209 = vpop.xlane.xlu0 %4208
    %v4210 = vsel %vm420, %v4183, 0.0
    %4211 = vadd.xlane.f32.xlu0 %v4210
    %v4212 = vpop.xlane.xlu0 %4211
    %v4213 = vsel %vm420, %v4184, 0.0
    %4214 = vadd.xlane.f32.xlu0 %v4213
    %v4215 = vpop.xlane.xlu0 %4214
    %v4216 = vsel %vm420, %v4185, 0.0
    %4217 = vadd.xlane.f32.xlu0 %v4216
    %v4218 = vpop.xlane.xlu0 %4217
    %v4219 = vmul.f32 %v4188, %v1304
    %v4220 = vmul.f32 %v4191, %v1304
    %v4221 = vmul.f32 %v4194, %v1304
    %v4222 = vmul.f32 %v4197, %v1304
    %v4223 = vmul.f32 %v4200, %v1304
    %v4224 = vmul.f32 %v4203, %v1304
    %v4225 = vmul.f32 %v4206, %v1304
    %v4226 = vmul.f32 %v4209, %v1304
    %v4227 = vmul.f32 %v4212, %v1304
    %v4228 = vmul.f32 %v4215, %v1304
    %v4229 = vmul.f32 %v4218, %v1304
    %v4230 = vsub.f32 %v4175, %v4219
    %v4231 = vsub.f32 %v4176, %v4220
    %v4232 = vsub.f32 %v4177, %v4221
    %v4233 = vsub.f32 %v4178, %v4222
    %v4234 = vsub.f32 %v4179, %v4223
    %v4235 = vsub.f32 %v4180, %v4224
    %v4236 = vsub.f32 %v4181, %v4225
    %v4237 = vsub.f32 %v4182, %v4226
    %v4238 = vsub.f32 %v4183, %v4227
    %v4239 = vsub.f32 %v4184, %v4228
    %v4240 = vsub.f32 %v4185, %v4229
    %v4241 = vmul.f32 %v4230, %v4230
    %v4242 = vmul.f32 %v4231, %v4231
    %v4243 = vmul.f32 %v4232, %v4232
    %v4244 = vmul.f32 %v4233, %v4233
    %v4245 = vmul.f32 %v4234, %v4234
    %v4246 = vmul.f32 %v4235, %v4235
    %v4247 = vmul.f32 %v4236, %v4236
    %v4248 = vmul.f32 %v4237, %v4237
    %v4249 = vmul.f32 %v4238, %v4238
    %v4250 = vmul.f32 %v4239, %v4239
    %v4251 = vmul.f32 %v4240, %v4240
    %v4252 = vsel %vm420, %v4241, 0.0
    %4253 = vadd.xlane.f32.xlu0 %v4252
    %v4254 = vpop.xlane.xlu0 %4253
    %v4255 = vsel %vm420, %v4242, 0.0
    %4256 = vadd.xlane.f32.xlu0 %v4255
    %v4257 = vpop.xlane.xlu0 %4256
    %v4258 = vsel %vm420, %v4243, 0.0
    %4259 = vadd.xlane.f32.xlu0 %v4258
    %v4260 = vpop.xlane.xlu0 %4259
    %v4261 = vsel %vm420, %v4244, 0.0
    %4262 = vadd.xlane.f32.xlu0 %v4261
    %v4263 = vpop.xlane.xlu0 %4262
    %v4264 = vsel %vm420, %v4245, 0.0
    %4265 = vadd.xlane.f32.xlu0 %v4264
    %v4266 = vpop.xlane.xlu0 %4265
    %v4267 = vsel %vm420, %v4246, 0.0
    %4268 = vadd.xlane.f32.xlu0 %v4267
    %v4269 = vpop.xlane.xlu0 %4268
    %v4270 = vsel %vm420, %v4247, 0.0
    %4271 = vadd.xlane.f32.xlu0 %v4270
    %v4272 = vpop.xlane.xlu0 %4271
    %v4273 = vsel %vm420, %v4248, 0.0
    %4274 = vadd.xlane.f32.xlu0 %v4273
    %v4275 = vpop.xlane.xlu0 %4274
    %v4276 = vsel %vm420, %v4249, 0.0
    %4277 = vadd.xlane.f32.xlu0 %v4276
    %v4278 = vpop.xlane.xlu0 %4277
    %v4279 = vsel %vm420, %v4250, 0.0
    %4280 = vadd.xlane.f32.xlu0 %v4279
    %v4281 = vpop.xlane.xlu0 %4280
    %v4282 = vsel %vm420, %v4251, 0.0
    %4283 = vadd.xlane.f32.xlu0 %v4282
    %v4284 = vpop.xlane.xlu0 %4283
    %v4285 = vmul.f32 %v4254, %v1304
    %v4286 = vmul.f32 %v4257, %v1304
    %v4287 = vmul.f32 %v4260, %v1304
    %v4288 = vmul.f32 %v4263, %v1304
    %v4289 = vmul.f32 %v4266, %v1304
    %v4290 = vmul.f32 %v4269, %v1304
    %v4291 = vmul.f32 %v4272, %v1304
    %v4292 = vmul.f32 %v4275, %v1304
    %v4293 = vmul.f32 %v4278, %v1304
    %v4294 = vmul.f32 %v4281, %v1304
    %v4295 = vmul.f32 %v4284, %v1304
    %v4296 = vadd.f32 %v4285, 1e-05
    %v4297 = vadd.f32 %v4286, 1e-05
    %v4298 = vadd.f32 %v4287, 1e-05
    %v4299 = vadd.f32 %v4288, 1e-05
    %v4300 = vadd.f32 %v4289, 1e-05
    %v4301 = vadd.f32 %v4290, 1e-05
    %v4302 = vadd.f32 %v4291, 1e-05
    %v4303 = vadd.f32 %v4292, 1e-05
    %v4304 = vadd.f32 %v4293, 1e-05
    %v4305 = vadd.f32 %v4294, 1e-05
    %v4306 = vadd.f32 %v4295, 1e-05
    %v4307 = vrsqrt.pop %v4296
    %v4308 = vmul.f32 %v4307, %v4296
    %v4309 = vmul.f32 %v4308, %v4307
    %v4310 = vmul.f32 0.5, %v4309
    %v4311 = vsub.f32 1.5, %v4310
    %v4312 = vmul.f32 %v4307, %v4311
    %vm4313 = vweird.f32 %v4296
    %vm4314 = vweird.f32 %v4307
    %vm4315 = vmor %vm4313, %vm4314
    %v4316 = vsel %vm4315, %v4307, %v4312
    %v4317 = vrsqrt.pop %v4297
    %v4318 = vmul.f32 %v4317, %v4297
    %v4319 = vmul.f32 %v4318, %v4317
    %v4320 = vmul.f32 0.5, %v4319
    %v4321 = vsub.f32 1.5, %v4320
    %v4322 = vmul.f32 %v4317, %v4321
    %vm4323 = vweird.f32 %v4297
    %vm4324 = vweird.f32 %v4317
    %vm4325 = vmor %vm4323, %vm4324
    %v4326 = vsel %vm4325, %v4317, %v4322
    %v4327 = vrsqrt.pop %v4298
    %v4328 = vmul.f32 %v4327, %v4298
    %v4329 = vmul.f32 %v4328, %v4327
    %v4330 = vmul.f32 0.5, %v4329
    %v4331 = vsub.f32 1.5, %v4330
    %v4332 = vmul.f32 %v4327, %v4331
    %vm4333 = vweird.f32 %v4298
    %vm4334 = vweird.f32 %v4327
    %vm4335 = vmor %vm4333, %vm4334
    %v4336 = vsel %vm4335, %v4327, %v4332
    %v4337 = vrsqrt.pop %v4299
    %v4338 = vmul.f32 %v4337, %v4299
    %v4339 = vmul.f32 %v4338, %v4337
    %v4340 = vmul.f32 0.5, %v4339
    %v4341 = vsub.f32 1.5, %v4340
    %v4342 = vmul.f32 %v4337, %v4341
    %vm4343 = vweird.f32 %v4299
    %vm4344 = vweird.f32 %v4337
    %vm4345 = vmor %vm4343, %vm4344
    %v4346 = vsel %vm4345, %v4337, %v4342
    %v4347 = vrsqrt.pop %v4300
    %v4348 = vmul.f32 %v4347, %v4300
    %v4349 = vmul.f32 %v4348, %v4347
    %v4350 = vmul.f32 0.5, %v4349
    %v4351 = vsub.f32 1.5, %v4350
    %v4352 = vmul.f32 %v4347, %v4351
    %vm4353 = vweird.f32 %v4300
    %vm4354 = vweird.f32 %v4347
    %vm4355 = vmor %vm4353, %vm4354
    %v4356 = vsel %vm4355, %v4347, %v4352
    %v4357 = vrsqrt.pop %v4301
    %v4358 = vmul.f32 %v4357, %v4301
    %v4359 = vmul.f32 %v4358, %v4357
    %v4360 = vmul.f32 0.5, %v4359
    %v4361 = vsub.f32 1.5, %v4360
    %v4362 = vmul.f32 %v4357, %v4361
    %vm4363 = vweird.f32 %v4301
    %vm4364 = vweird.f32 %v4357
    %vm4365 = vmor %vm4363, %vm4364
    %v4366 = vsel %vm4365, %v4357, %v4362
    %v4367 = vrsqrt.pop %v4302
    %v4368 = vmul.f32 %v4367, %v4302
    %v4369 = vmul.f32 %v4368, %v4367
    %v4370 = vmul.f32 0.5, %v4369
    %v4371 = vsub.f32 1.5, %v4370
    %v4372 = vmul.f32 %v4367, %v4371
    %vm4373 = vweird.f32 %v4302
    %vm4374 = vweird.f32 %v4367
    %vm4375 = vmor %vm4373, %vm4374
    %v4376 = vsel %vm4375, %v4367, %v4372
    %v4377 = vrsqrt.pop %v4303
    %v4378 = vmul.f32 %v4377, %v4303
    %v4379 = vmul.f32 %v4378, %v4377
    %v4380 = vmul.f32 0.5, %v4379
    %v4381 = vsub.f32 1.5, %v4380
    %v4382 = vmul.f32 %v4377, %v4381
    %vm4383 = vweird.f32 %v4303
    %vm4384 = vweird.f32 %v4377
    %vm4385 = vmor %vm4383, %vm4384
    %v4386 = vsel %vm4385, %v4377, %v4382
    %v4387 = vrsqrt.pop %v4304
    %v4388 = vmul.f32 %v4387, %v4304
    %v4389 = vmul.f32 %v4388, %v4387
    %v4390 = vmul.f32 0.5, %v4389
    %v4391 = vsub.f32 1.5, %v4390
    %v4392 = vmul.f32 %v4387, %v4391
    %vm4393 = vweird.f32 %v4304
    %vm4394 = vweird.f32 %v4387
    %vm4395 = vmor %vm4393, %vm4394
    %v4396 = vsel %vm4395, %v4387, %v4392
    %v4397 = vrsqrt.pop %v4305
    %v4398 = vmul.f32 %v4397, %v4305
    %v4399 = vmul.f32 %v4398, %v4397
    %v4400 = vmul.f32 0.5, %v4399
    %v4401 = vsub.f32 1.5, %v4400
    %v4402 = vmul.f32 %v4397, %v4401
    %vm4403 = vweird.f32 %v4305
    %vm4404 = vweird.f32 %v4397
    %vm4405 = vmor %vm4403, %vm4404
    %v4406 = vsel %vm4405, %v4397, %v4402
    %v4407 = vrsqrt.pop %v4306
    %v4408 = vmul.f32 %v4407, %v4306
    %v4409 = vmul.f32 %v4408, %v4407
    %v4410 = vmul.f32 0.5, %v4409
    %v4411 = vsub.f32 1.5, %v4410
    %v4412 = vmul.f32 %v4407, %v4411
    %vm4413 = vweird.f32 %v4306
    %vm4414 = vweird.f32 %v4407
    %vm4415 = vmor %vm4413, %vm4414
    %v4416 = vsel %vm4415, %v4407, %v4412
    %v4417 = vmul.f32 %v4230, %v4316
    %v4418 = vmul.f32 %v4231, %v4326
    %v4419 = vmul.f32 %v4232, %v4336
    %v4420 = vmul.f32 %v4233, %v4346
    %v4421 = vmul.f32 %v4234, %v4356
    %v4422 = vmul.f32 %v4235, %v4366
    %v4423 = vmul.f32 %v4236, %v4376
    %v4424 = vmul.f32 %v4237, %v4386
    %v4425 = vmul.f32 %v4238, %v4396
    %v4426 = vmul.f32 %v4239, %v4406
    %v4427 = vmul.f32 %v4240, %v4416
    %s4428 = scalar_lea.vmem %s5, 176
    %v4429 = vld [vmem:[%s4428] sm:$0xff]
    %v4430 = vld [vmem:[%s4428 + $0x8] sm:$0xff]
    %v4431 = vld [vmem:[%s4428 + $0x10] sm:$0xff]
    %v4432 = vld [vmem:[%s4428 + $0x18] sm:$0xff]
    %v4433 = vld [vmem:[%s4428 + $0x20] sm:$0xff]
    %v4434 = vld [vmem:[%s4428 + $0x28] sm:$0xff]
    %v4435 = vld [vmem:[%s4428 + $0x30] sm:$0xff]
    %v4436 = vld [vmem:[%s4428 + $0x38] sm:$0xff]
    %v4437 = vld [vmem:[%s4428 + $0x40] sm:$0xff]
    %v4438 = vld [vmem:[%s4428 + $0x48] sm:$0xff]
    %v4439 = vld [vmem:[%s4428 + $0x50] sm:$0xff]
    %v4440 = vmul.f32 %v4417, %v4429
    %v4441 = vmul.f32 %v4418, %v4430
    %v4442 = vmul.f32 %v4419, %v4431
    %v4443 = vmul.f32 %v4420, %v4432
    %v4444 = vmul.f32 %v4421, %v4433
    %v4445 = vmul.f32 %v4422, %v4434
    %v4446 = vmul.f32 %v4423, %v4435
    %v4447 = vmul.f32 %v4424, %v4436
    %v4448 = vmul.f32 %v4425, %v4437
    %v4449 = vmul.f32 %v4426, %v4438
    %v4450 = vmul.f32 %v4427, %v4439
    %s4451 = scalar_lea.vmem %s6, 176
    %v4452 = vld [vmem:[%s4451] sm:$0xff]
    %v4453 = vld [vmem:[%s4451 + $0x8] sm:$0xff]
    %v4454 = vld [vmem:[%s4451 + $0x10] sm:$0xff]
    %v4455 = vld [vmem:[%s4451 + $0x18] sm:$0xff]
    %v4456 = vld [vmem:[%s4451 + $0x20] sm:$0xff]
    %v4457 = vld [vmem:[%s4451 + $0x28] sm:$0xff]
    %v4458 = vld [vmem:[%s4451 + $0x30] sm:$0xff]
    %v4459 = vld [vmem:[%s4451 + $0x38] sm:$0xff]
    %v4460 = vld [vmem:[%s4451 + $0x40] sm:$0xff]
    %v4461 = vld [vmem:[%s4451 + $0x48] sm:$0xff]
    %v4462 = vld [vmem:[%s4451 + $0x50] sm:$0xff]
    %v4463 = vadd.f32 %v4440, %v4452
    %v4464 = vadd.f32 %v4441, %v4453
    %v4465 = vadd.f32 %v4442, %v4454
    %v4466 = vadd.f32 %v4443, %v4455
    %v4467 = vadd.f32 %v4444, %v4456
    %v4468 = vadd.f32 %v4445, %v4457
    %v4469 = vadd.f32 %v4446, %v4458
    %v4470 = vadd.f32 %v4447, %v4459
    %v4471 = vadd.f32 %v4448, %v4460
    %v4472 = vadd.f32 %v4449, %v4461
    %v4473 = vadd.f32 %v4450, %v4462
    %v4474 = vld [vmem:[%s7] sm:$0xff]
    %v4475 = vld [vmem:[%s7 + $0x8] sm:$0xff]
    %v4476 = vld [vmem:[%s7 + $0x10] sm:$0xff]
    %v4477 = vld [vmem:[%s7 + $0x18] sm:$0xff]
    %v4478 = vld [vmem:[%s7 + $0x20] sm:$0xff]
    %v4479 = vld [vmem:[%s7 + $0x28] sm:$0xff]
    %v4480 = vld [vmem:[%s7 + $0x30] sm:$0xff]
    %v4481 = vld [vmem:[%s7 + $0x38] sm:$0xff]
    %v4482 = vld [vmem:[%s7 + $0x40] sm:$0xff]
    %v4483 = vld [vmem:[%s7 + $0x48] sm:$0xff]
    %v4484 = vld [vmem:[%s7 + $0x50] sm:$0xff]
    %v4485 = vmul.f32 %v4463, %v4474
    %v4486 = vmul.f32 %v4464, %v4475
    %v4487 = vmul.f32 %v4465, %v4476
    %v4488 = vmul.f32 %v4466, %v4477
    %v4489 = vmul.f32 %v4467, %v4478
    %v4490 = vmul.f32 %v4468, %v4479
    %v4491 = vmul.f32 %v4469, %v4480
    %v4492 = vmul.f32 %v4470, %v4481
    %v4493 = vmul.f32 %v4471, %v4482
    %v4494 = vmul.f32 %v4472, %v4483
    %v4495 = vmul.f32 %v4473, %v4484
    %v4496 = vsel %vm420, %v4485, 0.0
    %4497 = vadd.xlane.f32.xlu0 %v4496
    %v4498 = vpop.xlane.xlu0 %4497
    %v4499 = vsel %vm420, %v4486, 0.0
    %4500 = vadd.xlane.f32.xlu0 %v4499
    %v4501 = vpop.xlane.xlu0 %4500
    %v4502 = vsel %vm420, %v4487, 0.0
    %4503 = vadd.xlane.f32.xlu0 %v4502
    %v4504 = vpop.xlane.xlu0 %4503
    %v4505 = vsel %vm420, %v4488, 0.0
    %4506 = vadd.xlane.f32.xlu0 %v4505
    %v4507 = vpop.xlane.xlu0 %4506
    %v4508 = vsel %vm420, %v4489, 0.0
    %4509 = vadd.xlane.f32.xlu0 %v4508
    %v4510 = vpop.xlane.xlu0 %4509
    %v4511 = vsel %vm420, %v4490, 0.0
    %4512 = vadd.xlane.f32.xlu0 %v4511
    %v4513 = vpop.xlane.xlu0 %4512
    %v4514 = vsel %vm420, %v4491, 0.0
    %4515 = vadd.xlane.f32.xlu0 %v4514
    %v4516 = vpop.xlane.xlu0 %4515
    %v4517 = vsel %vm420, %v4492, 0.0
    %4518 = vadd.xlane.f32.xlu0 %v4517
    %v4519 = vpop.xlane.xlu0 %4518
    %v4520 = vsel %vm420, %v4493, 0.0
    %4521 = vadd.xlane.f32.xlu0 %v4520
    %v4522 = vpop.xlane.xlu0 %4521
    %v4523 = vsel %vm420, %v4494, 0.0
    %4524 = vadd.xlane.f32.xlu0 %v4523
    %v4525 = vpop.xlane.xlu0 %4524
    %v4526 = vsel %vm420, %v4495, 0.0
    %4527 = vadd.xlane.f32.xlu0 %v4526
    %v4528 = vpop.xlane.xlu0 %4527
    %v4529 = vld [vmem:[#allocation8] sm:$0xff]
    %v4530 = vld [vmem:[#allocation2] sm:$0x1]
    %v4532 = vperm.slane %v4530, 0
    %v4535 = vsel %vm122, %v4529, 0
    %4537 = vmatpush.msra.mxu0 0.0
    %4538 = vmatpush.msra.mxu0 0.0
    %4539 = vmatpush.msra.mxu0 0.0
    %4540 = vmatpush.msra.mxu0 0.0
    %4541 = vmatpush.msra.mxu0 0.0
    %4542 = vmatpush.msra.mxu0 %v4528
    %4543 = vmatpush.msra.mxu0 %v4525
    %4544 = vmatpush.msra.mxu0 %v4522
    %4545 = vmatpush.msra.mxu0 %v4519
    %4546 = vmatpush.msra.mxu0 %v4516
    %4547 = vmatpush.msra.mxu0 %v4513
    %4548 = vmatpush.msra.mxu0 %v4510
    %4549 = vmatpush.msra.mxu0 %v4507
    %4550 = vmatpush.msra.mxu0 %v4504
    %4551 = vmatpush.msra.mxu0 %v4501
    %4552 = vmatpush.msra.mxu0 %v4498
    %4553 = vmatmul.f32.gmra.mxu0 %v4535
    %v4554 = vpop.f32.mrf.mxu0
    %v4555 = vadd.f32 %v4532, %v4554
    %4556 = vdwg.mxu0
    %v4557 = vxor.u32 %v4555, 2147483648
    %v4558 = vmul.f32 %v4557, 1.442695
    %v4559 = vpow.pop %v4558
    %v4560 = vadd.f32 %v4559, 1.0
    %v4561 = vrcp.pop %v4560
    %v4562 = vmul.f32 %v4560, %v4561
    %v4563 = vsub.f32 1.0, %v4562
    %v4564 = vmul.f32 %v4561, %v4563
    %v4565 = vadd.f32 %v4561, %v4564
    %vm4566 = vweird.f32 %v4560
    %vm4567 = vweird.f32 %v4561
    %vm4568 = vmor %vm4566, %vm4567
    %v4569 = vsel %vm4568, %v4561, %v4565
    %v4570 = vand.u32 2147483647, %v4560
    %vm4571 = vcmp.eq.f32.partialorder %v4570, 8.507059e+37
    %v4572 = vand.u32 %v4560, 2147483648
    %v4573 = vor.u32 1.1754944e-38, %v4572
    %v4574 = vsel %vm4571, %v4573, %v4569
    %v4575 = vmul.f32 1.0, %v4574
    %4577 = vset.pattern.permute.xlu0 0
    %4578 = vperm.xlu0 %4577, %v4575
    %v4579 = vpop.permute.xlu0 %4578
    %4581 = vst [vmem:[#allocation9] sm:$0xff] %v4579
    // Predicated region
    $region54: #{tpu_custom_call.1} parent=1 // pred_check
      _
    $region55: #{tpu_custom_call.1} parent=1 // pred_check_branch
      %4583 = sbr.rel (0) target = $region57
    $region56: #{tpu_custom_call.1} parent=1 // pred_region
      %4585 = vsyncadd [#allocation5], 0
      %s4587 = sshll.u32 [#allocation9], 4
      %s4588 = int_to_ptr.vmem [resolvable:$true] %s4587
      %s4589 = sshll.u32 %s10, 4
      %s4590 = int_to_ptr.hbm [resolvable:$true] %s4589
      %4592 = dma.vmem_to_hbm [thread:$0]  %s4588, 128, %s4590, [#allocation5]
    $region57: #{tpu_custom_call.1} parent=1 // pred_fallthru
      _
    // Predicated region
    $region58: #{tpu_custom_call.1} parent=1 // pred_check
      _
    $region59: #{tpu_custom_call.1} parent=1 // pred_check_branch
      %4594 = sbr.rel (0) target = $region61
    $region60: #{tpu_custom_call.1} parent=1 // pred_region
      %4596 = dma.done [#allocation5], 128
    $region61: #{tpu_custom_call.1} parent=1 // pred_fallthru
      _
    %4597 = vsyncpa [#allocation4], 1
    %4598 = vsyncpa [#allocation7], 1
    %4599 = vsyncpa [#allocation5], 1

</llo_original>
